<compile_context>
chip_gen: v7x
topology: tpu7x:2x2x1
jax: 0.10.0
libtpu: 0.0.40
codegen_flags: <defaults>
</compile_context>

<pallas_src>
import functools

import jax
import jax.numpy as jnp
from jax.experimental import pallas as pl
from jax.experimental.pallas import tpu as pltpu


# ----------------------------------------------------------------------------
# Static configuration
# ----------------------------------------------------------------------------

def make_cfg(obs_shape, action_dim, hidden_dim, feature_dim, num_layers,
             num_filters):
    c_in, h, w = obs_shape
    assert h == w, "square observations assumed"
    assert num_layers >= 2, "encoder with >= 2 conv layers assumed"
    s1 = (h - 3) // 2 + 1                       # spatial size after stride-2 conv1
    fs = s1 - 2 * (num_layers - 1)              # final spatial size
    assert fs >= 1
    # Activations of conv layer t are kept flattened in a row space of stride
    # s1 ("slab"); slab_sizes[t] = number of rows kept for layer t's output.
    slab_sizes = [s1 * s1]
    for t in range(1, num_layers):
        sz = s1 - 2 * t
        slab_sizes.append((sz - 1) * (s1 + 1) + 1)
    return dict(cin=c_in, hw=h, s1=s1, fs=fs, slab_sizes=slab_sizes,
                action_dim=action_dim, hidden_dim=hidden_dim,
                feature_dim=feature_dim, num_layers=num_layers,
                num_filters=num_filters)


# ----------------------------------------------------------------------------
# Fused Pallas kernel
# ----------------------------------------------------------------------------

def _make_critic_kernel(cfg):
    L = cfg["num_layers"]
    S = cfg["s1"]
    fs = cfg["fs"]
    nf = cfg["num_filters"]
    feat_dim = cfg["feature_dim"]
    slabs = cfg["slab_sizes"]

    def kernel(p1_ref, act_ref,
               w1_ref, b1_ref, wcs_ref, bcs_ref,
               wfc_ref, bfc_ref, g_ref, beta_ref,
               wq1f_ref, wq1a_ref, bq1_ref,
               wq2_ref, bq2_ref, wq3_ref, bq3_ref,
               o_ref, *scratch):
        # ---- conv1 (stride 2): patches gathered outside; /255 folded in here.
        p1 = p1_ref[0] * (1.0 / 255.0)                        # [S*S, Cin*9]
        a1 = jnp.dot(p1, w1_ref[...],
                     preferred_element_type=jnp.float32) + b1_ref[...]
        scratch[0][...] = jnp.maximum(a1, 0.0)                # [S*S, nf]

        # ---- stride-1 conv layers: 9 shifted row-slices x [nf, nf] matmuls,
        # fully VMEM-resident.  Rows whose column index exceeds the valid
        # output width are dead and never read by later stages.
        for t in range(1, L):
            prev = scratch[t - 1]
            rt = slabs[t]
            acc = jnp.zeros((rt, nf), jnp.float32)
            for ki in range(3):
                for kj in range(3):
                    off = ki * S + kj
                    acc = acc + jnp.dot(prev[pl.ds(off, rt), :],
                                        wcs_ref[t - 1, ki * 3 + kj, :, :],
                                        preferred_element_type=jnp.float32)
            scratch[t][...] = jnp.maximum(acc + bcs_ref[t - 1], 0.0)

        # ---- fc + LayerNorm (output_logits=True -> no tanh).
        last = scratch[L - 1]
        pre = jnp.zeros((1, feat_dim), jnp.float32)
        for i in range(fs):
            for j in range(fs):
                pre = pre + jnp.dot(last[pl.ds(i * S + j, 1), :],
                                    wfc_ref[i * fs + j, :, :],
                                    preferred_element_type=jnp.float32)
        pre = pre + bfc_ref[...]
        mean = jnp.mean(pre, axis=-1, keepdims=True)
        var = jnp.mean(jnp.square(pre - mean), axis=-1, keepdims=True)
        feat = (pre - mean) * jax.lax.rsqrt(var + 1e-5)
        feat = feat * g_ref[...] + beta_ref[...]              # [1, feat_dim]

        # ---- merged twin-Q MLP: concat(feat, action) realised as split
        # matmuls, layer 2 block-diagonal, layer 3 -> [1, 2] = (q1, q2).
        act = act_ref[0]                                      # [1, A]
        h = jnp.dot(feat, wq1f_ref[...], preferred_element_type=jnp.float32)
        h = h + jnp.dot(act, wq1a_ref[...], preferred_element_type=jnp.float32)
        h = jnp.maximum(h + bq1_ref[...], 0.0)
        h = jnp.maximum(
            jnp.dot(h, wq2_ref[...], preferred_element_type=jnp.float32)
            + bq2_ref[...], 0.0)
        q = jnp.dot(h, wq3_ref[...],
                    preferred_element_type=jnp.float32) + bq3_ref[...]
        o_ref[0] = q                                          # [1, 2]

    return kernel


# ----------------------------------------------------------------------------
# JAX-side glue
# ----------------------------------------------------------------------------

def _im2col_s2(x, k, stride):
    """[B, C, H, W] -> [B, OH*OW, C*k*k], feature order (c, ki, kj)."""
    B, C, H, W = x.shape
    OH = (H - k) // stride + 1
    OW = (W - k) // stride + 1
    cols = []
    for i in range(k):
        for j in range(k):
            cols.append(x[:, :, i:i + stride * OH:stride,
                            j:j + stride * OW:stride])
    p = jnp.stack(cols, axis=2)                  # [B, C, k*k, OH, OW]
    p = p.transpose(0, 3, 4, 1, 2)               # [B, OH, OW, C, k*k]
    return p.reshape(B, OH * OW, C * k * k)


def _full_spec(arr):
    nd = arr.ndim
    return pl.BlockSpec(arr.shape, lambda b, _n=nd: (0,) * _n)


def critic_forward(packed, cfg, obs, action):
    """Fused Critic.forward -> (q1, q2), each [B, 1]."""
    B = obs.shape[0]
    s1, cin, A = cfg["s1"], cfg["cin"], cfg["action_dim"]
    p1 = _im2col_s2(obs.astype(jnp.float32), 3, 2)            # [B, S*S, Cin*9]
    act3 = action.astype(jnp.float32).reshape(B, 1, A)

    weight_order = ("w1", "b1", "wcs", "bcs", "wfc", "bfc", "g", "beta",
                    "wq1f", "wq1a", "bq1", "wq2", "bq2", "wq3", "bq3")
    weights = [packed[k] for k in weight_order]

    grid_spec = pltpu.PrefetchScalarGridSpec(
        num_scalar_prefetch=0,
        grid=(B,),
        in_specs=[
            pl.BlockSpec((1, s1 * s1, cin * 9), lambda b: (b, 0, 0)),
            pl.BlockSpec((1, 1, A), lambda b: (b, 0, 0)),
        ] + [_full_spec(w) for w in weights],
        out_specs=pl.BlockSpec((1, 1, 2), lambda b: (b, 0, 0)),
        scratch_shapes=[pltpu.VMEM((r, cfg["num_filters"]), jnp.float32)
                        for r in cfg["slab_sizes"]],
    )
    out = pl.pallas_call(
        _make_critic_kernel(cfg),
        out_shape=jax.ShapeDtypeStruct((B, 1, 2), jnp.float32),
        grid_spec=grid_spec,
        compiler_params=pltpu.CompilerParams(
            dimension_semantics=("parallel",)),
    )(p1, act3, *weights)
    # TODO(synk): detach_encoder only affects gradients, not forward values.
    q12 = out[:, 0, :]
    return q12[:, 0:1], q12[:, 1:2]


# ----------------------------------------------------------------------------
# Parameters (PyTorch layout) + packing into kernel-ready layout
# ----------------------------------------------------------------------------

def init_params(key, obs_shape, action_dim, hidden_dim, feature_dim,
                num_layers, num_filters):
    c_in, h, _ = obs_shape
    keys = iter(jax.random.split(key, 4 * num_layers + 24))

    def rnd(k, shape, scale=0.1):
        return scale * jax.random.normal(k, shape, jnp.float32)

    convs = []
    ch, oh = c_in, h
    for li in range(num_layers):
        stride = 2 if li == 0 else 1
        convs.append((rnd(next(keys), (num_filters, ch, 3, 3)),
                      rnd(next(keys), (num_filters,))))
        oh = (oh - 3) // stride + 1
        ch = num_filters
    flat = num_filters * oh * oh

    def qparams():
        in_dim = feature_dim + action_dim
        return {"w1": rnd(next(keys), (hidden_dim, in_dim)),
                "b1": rnd(next(keys), (hidden_dim,)),
                "w2": rnd(next(keys), (hidden_dim, hidden_dim)),
                "b2": rnd(next(keys), (hidden_dim,)),
                "w3": rnd(next(keys), (1, hidden_dim)),
                "b3": rnd(next(keys), (1,))}

    return {"convs": convs,
            "fc_w": rnd(next(keys), (feature_dim, flat)),
            "fc_b": rnd(next(keys), (feature_dim,)),
            "ln_g": jnp.ones((feature_dim,), jnp.float32),
            "ln_b": jnp.zeros((feature_dim,), jnp.float32),
            "q1": qparams(), "q2": qparams()}


def pack_params(params, cfg):
    nf, fs, feat = cfg["num_filters"], cfg["fs"], cfg["feature_dim"]
    H = cfg["hidden_dim"]
    packed = {}
    w1, b1 = params["convs"][0]
    packed["w1"] = w1.reshape(nf, -1).T                       # [Cin*9, nf]
    packed["b1"] = b1.reshape(1, nf)
    wcs, bcs = [], []
    for (w, b) in params["convs"][1:]:
        wcs.append(jnp.stack([w[:, :, ki, kj].T
                              for ki in range(3) for kj in range(3)], axis=0))
        bcs.append(b.reshape(1, nf))
    packed["wcs"] = jnp.stack(wcs, axis=0)                    # [L-1, 9, nf, nf]
    packed["bcs"] = jnp.stack(bcs, axis=0)                    # [L-1, 1, nf]
    # fc weight [feat, nf*fs*fs]; PyTorch .view(B,-1) flattens NCHW as (c,i,j).
    packed["wfc"] = (params["fc_w"]
                     .reshape(feat, nf, fs, fs)
                     .transpose(2, 3, 1, 0)
                     .reshape(fs * fs, nf, feat))             # [(i,j), nf, feat]
    packed["bfc"] = params["fc_b"].reshape(1, feat)
    packed["g"] = params["ln_g"].reshape(1, feat)
    packed["beta"] = params["ln_b"].reshape(1, feat)
    # merged twin Q
    q1, q2 = params["q1"], params["q2"]
    w1a, w1b = q1["w1"].T, q2["w1"].T                         # [feat+A, H]
    packed["wq1f"] = jnp.concatenate([w1a[:feat], w1b[:feat]], axis=1)
    packed["wq1a"] = jnp.concatenate([w1a[feat:], w1b[feat:]], axis=1)
    packed["bq1"] = jnp.concatenate([q1["b1"], q2["b1"]]).reshape(1, 2 * H)
    z = jnp.zeros((H, H), jnp.float32)
    packed["wq2"] = jnp.block([[q1["w2"].T, z], [z, q2["w2"].T]])
    packed["bq2"] = jnp.concatenate([q1["b2"], q2["b2"]]).reshape(1, 2 * H)
    zc = jnp.zeros((H, 1), jnp.float32)
    packed["wq3"] = jnp.block([[q1["w3"].T, zc], [zc, q2["w3"].T]])
    packed["bq3"] = jnp.concatenate([q1["b3"], q2["b3"]]).reshape(1, 2)
    return packed


# ----------------------------------------------------------------------------
# Pure-JAX reference (mirrors the PyTorch module) for a sanity check
# ----------------------------------------------------------------------------

def critic_reference(params, obs, action):
    x = obs.astype(jnp.float32) / 255.0
    for li, (w, b) in enumerate(params["convs"]):
        stride = 2 if li == 0 else 1
        x = jax.lax.conv_general_dilated(
            x, w, window_strides=(stride, stride), padding="VALID",
            dimension_numbers=("NCHW", "OIHW", "NCHW"))
        x = jnp.maximum(x + b.reshape(1, -1, 1, 1), 0.0)
    h = x.reshape(x.shape[0], -1)
    pre = h @ params["fc_w"].T + params["fc_b"]
    mean = pre.mean(-1, keepdims=True)
    var = ((pre - mean) ** 2).mean(-1, keepdims=True)
    feat = (pre - mean) / jnp.sqrt(var + 1e-5) * params["ln_g"] + params["ln_b"]
    oa = jnp.concatenate([feat, action.astype(jnp.float32)], axis=1)

    def qf(qp):
        h1 = jnp.maximum(oa @ qp["w1"].T + qp["b1"], 0.0)
        h2 = jnp.maximum(h1 @ qp["w2"].T + qp["b2"], 0.0)
        return h2 @ qp["w3"].T + qp["b3"]

    return qf(params["q1"]), qf(params["q2"])


# ----------------------------------------------------------------------------
# main
# ----------------------------------------------------------------------------

if __name__ == "__main__":
    B = 2
    obs_shape = (4, 16, 16)
    action_dim = 4
    hidden_dim = 32
    encoder_feature_dim = 32
    num_layers = 2
    num_filters = 8

    key = jax.random.PRNGKey(0)
    kp, ko, ka = jax.random.split(key, 3)

    params = init_params(kp, obs_shape, action_dim, hidden_dim,
                         encoder_feature_dim, num_layers, num_filters)
    cfg = make_cfg(obs_shape, action_dim, hidden_dim, encoder_feature_dim,
                   num_layers, num_filters)
    packed = pack_params(params, cfg)

    obs = jax.random.uniform(ko, (B,) + obs_shape, jnp.float32,
                             minval=0.0, maxval=255.0)
    action = jax.random.uniform(ka, (B, action_dim), jnp.float32,
                                minval=-1.0, maxval=1.0)

    fwd = jax.jit(functools.partial(critic_forward, packed, cfg))
    q1, q2 = fwd(obs, action)
    jax.block_until_ready((q1, q2))

    assert q1.shape == (B, 1) and q2.shape == (B, 1)
    assert q1.dtype == jnp.float32 and q2.dtype == jnp.float32

    # sanity-check against the pure-JAX reference of the PyTorch module
    r1, r2 = jax.jit(functools.partial(critic_reference, params))(obs, action)
    err = float(jnp.max(jnp.abs(jnp.concatenate([q1 - r1, q2 - r2], axis=1))))
    ref_mag = float(jnp.max(jnp.abs(jnp.concatenate([r1, r2], axis=1))))
    assert err <= 2e-2 * (1.0 + ref_mag), f"kernel/reference mismatch: {err}"

    print("KERNEL_OK")
</pallas_src>

<mosaic_0001>
module attributes {stable_mosaic.version = 11 : i64} {
  func.func @kernel(%arg0: i32, %arg1: memref<1x49x36xf32, #tpu.memory_space<vmem>>, %arg2: memref<1x1x4xf32, #tpu.memory_space<vmem>>, %arg3: memref<36x8xf32, #tpu.memory_space<vmem>>, %arg4: memref<1x8xf32, #tpu.memory_space<vmem>>, %arg5: memref<1x9x8x8xf32, #tpu.memory_space<vmem>>, %arg6: memref<1x1x8xf32, #tpu.memory_space<vmem>>, %arg7: memref<25x8x32xf32, #tpu.memory_space<vmem>>, %arg8: memref<1x32xf32, #tpu.memory_space<vmem>>, %arg9: memref<1x32xf32, #tpu.memory_space<vmem>>, %arg10: memref<1x32xf32, #tpu.memory_space<vmem>>, %arg11: memref<32x64xf32, #tpu.memory_space<vmem>>, %arg12: memref<4x64xf32, #tpu.memory_space<vmem>>, %arg13: memref<1x64xf32, #tpu.memory_space<vmem>>, %arg14: memref<64x64xf32, #tpu.memory_space<vmem>>, %arg15: memref<1x64xf32, #tpu.memory_space<vmem>>, %arg16: memref<64x2xf32, #tpu.memory_space<vmem>>, %arg17: memref<1x2xf32, #tpu.memory_space<vmem>>, %arg18: memref<1x1x2xf32, #tpu.memory_space<vmem>>, %arg19: memref<49x8xf32, #tpu.memory_space<vmem>>, %arg20: memref<33x8xf32, #tpu.memory_space<vmem>>) attributes {dimension_semantics = [#tpu.dimension_semantics<parallel>], iteration_bounds = array<i64: 2>, scalar_prefetch = 0 : i64, scratch_operands = 2 : i64, tpu.core_type = #tpu.core_type<tc>, window_params = [{transform_indices = @transform_0, window_bounds = array<i64: 1, 49, 36>}, {transform_indices = @transform_1, window_bounds = array<i64: 1, 1, 4>}, {pipeline_mode = #tpu.pipeline_mode<synchronous>, transform_indices = @transform_2, window_bounds = array<i64: 36, 8>}, {pipeline_mode = #tpu.pipeline_mode<synchronous>, transform_indices = @transform_3, window_bounds = array<i64: 1, 8>}, {pipeline_mode = #tpu.pipeline_mode<synchronous>, transform_indices = @transform_4, window_bounds = array<i64: 1, 9, 8, 8>}, {pipeline_mode = #tpu.pipeline_mode<synchronous>, transform_indices = @transform_5, window_bounds = array<i64: 1, 1, 8>}, {pipeline_mode = #tpu.pipeline_mode<synchronous>, transform_indices = @transform_6, window_bounds = array<i64: 25, 8, 32>}, {pipeline_mode = #tpu.pipeline_mode<synchronous>, transform_indices = @transform_7, window_bounds = array<i64: 1, 32>}, {pipeline_mode = #tpu.pipeline_mode<synchronous>, transform_indices = @transform_8, window_bounds = array<i64: 1, 32>}, {pipeline_mode = #tpu.pipeline_mode<synchronous>, transform_indices = @transform_9, window_bounds = array<i64: 1, 32>}, {pipeline_mode = #tpu.pipeline_mode<synchronous>, transform_indices = @transform_10, window_bounds = array<i64: 32, 64>}, {pipeline_mode = #tpu.pipeline_mode<synchronous>, transform_indices = @transform_11, window_bounds = array<i64: 4, 64>}, {pipeline_mode = #tpu.pipeline_mode<synchronous>, transform_indices = @transform_12, window_bounds = array<i64: 1, 64>}, {pipeline_mode = #tpu.pipeline_mode<synchronous>, transform_indices = @transform_13, window_bounds = array<i64: 64, 64>}, {pipeline_mode = #tpu.pipeline_mode<synchronous>, transform_indices = @transform_14, window_bounds = array<i64: 1, 64>}, {pipeline_mode = #tpu.pipeline_mode<synchronous>, transform_indices = @transform_15, window_bounds = array<i64: 64, 2>}, {pipeline_mode = #tpu.pipeline_mode<synchronous>, transform_indices = @transform_16, window_bounds = array<i64: 1, 2>}, {transform_indices = @transform_17, window_bounds = array<i64: 1, 1, 2>}]} {
    %c0 = arith.constant 0 : index
    %c0_0 = arith.constant 0 : index
    %c0_1 = arith.constant 0 : index
    %0 = vector.load %arg1[%c0, %c0_0, %c0_1] : memref<1x49x36xf32, #tpu.memory_space<vmem>>, vector<1x49x36xf32>
    %1 = vector.shape_cast %0 : vector<1x49x36xf32> to vector<49x36xf32>
    %cst = arith.constant 0.00392156886 : f32
    %2 = vector.broadcast %cst : f32 to vector<49x36xf32>
    %3 = arith.mulf %1, %2 : vector<49x36xf32>
    %c0_2 = arith.constant 0 : index
    %c0_3 = arith.constant 0 : index
    %4 = vector.load %arg3[%c0_2, %c0_3] : memref<36x8xf32, #tpu.memory_space<vmem>>, vector<36x8xf32>
    %cst_4 = arith.constant dense<0.000000e+00> : vector<49x8xf32>
    %5 = tpu.matmul %3, %4, %cst_4 {dimension_numbers = #tpu.dot_dimension_numbers<[1], [0], [0], [1], [0, 0, 1, 1], [], []>} : vector<49x36xf32>, vector<36x8xf32>, vector<49x8xf32> -> vector<49x8xf32>
    %c0_5 = arith.constant 0 : index
    %c0_6 = arith.constant 0 : index
    %6 = vector.load %arg4[%c0_5, %c0_6] : memref<1x8xf32, #tpu.memory_space<vmem>>, vector<1x8xf32>
    %7 = vector.broadcast %6 : vector<1x8xf32> to vector<49x8xf32>
    %8 = arith.addf %5, %7 : vector<49x8xf32>
    %cst_7 = arith.constant 0.000000e+00 : f32
    %9 = vector.broadcast %cst_7 : f32 to vector<49x8xf32>
    %10 = arith.maximumf %8, %9 : vector<49x8xf32>
    %c0_8 = arith.constant 0 : index
    %c0_9 = arith.constant 0 : index
    %11 = vector.load %arg19[%c0_8, %c0_9] : memref<49x8xf32, #tpu.memory_space<vmem>>, vector<49x8xf32>
    tpu.vector_store %arg19[%c0_8, %c0_9], %10 {strides = array<i32>} : memref<49x8xf32, #tpu.memory_space<vmem>>, vector<49x8xf32>,
    %cst_10 = arith.constant 0.000000e+00 : f32
    %12 = vector.broadcast %cst_10 : f32 to vector<33x8xf32>
    %c0_11 = arith.constant 0 : index
    %c0_12 = arith.constant 0 : index
    %13 = vector.load %arg19[%c0_11, %c0_12] : memref<49x8xf32, #tpu.memory_space<vmem>>, vector<33x8xf32>
    %c0_13 = arith.constant 0 : index
    %c0_14 = arith.constant 0 : index
    %c0_15 = arith.constant 0 : index
    %c0_16 = arith.constant 0 : index
    %14 = vector.load %arg5[%c0_13, %c0_14, %c0_15, %c0_16] : memref<1x9x8x8xf32, #tpu.memory_space<vmem>>, vector<1x1x8x8xf32>
    %15 = vector.shape_cast %14 : vector<1x1x8x8xf32> to vector<8x8xf32>
    %cst_17 = arith.constant dense<0.000000e+00> : vector<33x8xf32>
    %16 = tpu.matmul %13, %15, %cst_17 {dimension_numbers = #tpu.dot_dimension_numbers<[1], [0], [0], [1], [0, 0, 1, 1], [], []>} : vector<33x8xf32>, vector<8x8xf32>, vector<33x8xf32> -> vector<33x8xf32>
    %17 = arith.addf %12, %16 : vector<33x8xf32>
    %c1 = arith.constant 1 : index
    %c0_18 = arith.constant 0 : index
    %18 = vector.load %arg19[%c1, %c0_18] : memref<49x8xf32, #tpu.memory_space<vmem>>, vector<33x8xf32>
    %c0_19 = arith.constant 0 : index
    %c1_20 = arith.constant 1 : index
    %c0_21 = arith.constant 0 : index
    %c0_22 = arith.constant 0 : index
    %19 = vector.load %arg5[%c0_19, %c1_20, %c0_21, %c0_22] : memref<1x9x8x8xf32, #tpu.memory_space<vmem>>, vector<1x1x8x8xf32>
    %20 = vector.shape_cast %19 : vector<1x1x8x8xf32> to vector<8x8xf32>
    %cst_23 = arith.constant dense<0.000000e+00> : vector<33x8xf32>
    %21 = tpu.matmul %18, %20, %cst_23 {dimension_numbers = #tpu.dot_dimension_numbers<[1], [0], [0], [1], [0, 0, 1, 1], [], []>} : vector<33x8xf32>, vector<8x8xf32>, vector<33x8xf32> -> vector<33x8xf32>
    %22 = arith.addf %17, %21 : vector<33x8xf32>
    %c2 = arith.constant 2 : index
    %c0_24 = arith.constant 0 : index
    %23 = vector.load %arg19[%c2, %c0_24] : memref<49x8xf32, #tpu.memory_space<vmem>>, vector<33x8xf32>
    %c0_25 = arith.constant 0 : index
    %c2_26 = arith.constant 2 : index
    %c0_27 = arith.constant 0 : index
    %c0_28 = arith.constant 0 : index
    %24 = vector.load %arg5[%c0_25, %c2_26, %c0_27, %c0_28] : memref<1x9x8x8xf32, #tpu.memory_space<vmem>>, vector<1x1x8x8xf32>
    %25 = vector.shape_cast %24 : vector<1x1x8x8xf32> to vector<8x8xf32>
    %cst_29 = arith.constant dense<0.000000e+00> : vector<33x8xf32>
    %26 = tpu.matmul %23, %25, %cst_29 {dimension_numbers = #tpu.dot_dimension_numbers<[1], [0], [0], [1], [0, 0, 1, 1], [], []>} : vector<33x8xf32>, vector<8x8xf32>, vector<33x8xf32> -> vector<33x8xf32>
    %27 = arith.addf %22, %26 : vector<33x8xf32>
    %c7 = arith.constant 7 : index
    %c0_30 = arith.constant 0 : index
    %28 = vector.load %arg19[%c7, %c0_30] : memref<49x8xf32, #tpu.memory_space<vmem>>, vector<33x8xf32>
    %c0_31 = arith.constant 0 : index
    %c3 = arith.constant 3 : index
    %c0_32 = arith.constant 0 : index
    %c0_33 = arith.constant 0 : index
    %29 = vector.load %arg5[%c0_31, %c3, %c0_32, %c0_33] : memref<1x9x8x8xf32, #tpu.memory_space<vmem>>, vector<1x1x8x8xf32>
    %30 = vector.shape_cast %29 : vector<1x1x8x8xf32> to vector<8x8xf32>
    %cst_34 = arith.constant dense<0.000000e+00> : vector<33x8xf32>
    %31 = tpu.matmul %28, %30, %cst_34 {dimension_numbers = #tpu.dot_dimension_numbers<[1], [0], [0], [1], [0, 0, 1, 1], [], []>} : vector<33x8xf32>, vector<8x8xf32>, vector<33x8xf32> -> vector<33x8xf32>
    %32 = arith.addf %27, %31 : vector<33x8xf32>
    %c8 = arith.constant 8 : index
    %c0_35 = arith.constant 0 : index
    %33 = vector.load %arg19[%c8, %c0_35] : memref<49x8xf32, #tpu.memory_space<vmem>>, vector<33x8xf32>
    %c0_36 = arith.constant 0 : index
    %c4 = arith.constant 4 : index
    %c0_37 = arith.constant 0 : index
    %c0_38 = arith.constant 0 : index
    %34 = vector.load %arg5[%c0_36, %c4, %c0_37, %c0_38] : memref<1x9x8x8xf32, #tpu.memory_space<vmem>>, vector<1x1x8x8xf32>
    %35 = vector.shape_cast %34 : vector<1x1x8x8xf32> to vector<8x8xf32>
    %cst_39 = arith.constant dense<0.000000e+00> : vector<33x8xf32>
    %36 = tpu.matmul %33, %35, %cst_39 {dimension_numbers = #tpu.dot_dimension_numbers<[1], [0], [0], [1], [0, 0, 1, 1], [], []>} : vector<33x8xf32>, vector<8x8xf32>, vector<33x8xf32> -> vector<33x8xf32>
    %37 = arith.addf %32, %36 : vector<33x8xf32>
    %c9 = arith.constant 9 : index
    %c0_40 = arith.constant 0 : index
    %38 = vector.load %arg19[%c9, %c0_40] : memref<49x8xf32, #tpu.memory_space<vmem>>, vector<33x8xf32>
    %c0_41 = arith.constant 0 : index
    %c5 = arith.constant 5 : index
    %c0_42 = arith.constant 0 : index
    %c0_43 = arith.constant 0 : index
    %39 = vector.load %arg5[%c0_41, %c5, %c0_42, %c0_43] : memref<1x9x8x8xf32, #tpu.memory_space<vmem>>, vector<1x1x8x8xf32>
    %40 = vector.shape_cast %39 : vector<1x1x8x8xf32> to vector<8x8xf32>
    %cst_44 = arith.constant dense<0.000000e+00> : vector<33x8xf32>
    %41 = tpu.matmul %38, %40, %cst_44 {dimension_numbers = #tpu.dot_dimension_numbers<[1], [0], [0], [1], [0, 0, 1, 1], [], []>} : vector<33x8xf32>, vector<8x8xf32>, vector<33x8xf32> -> vector<33x8xf32>
    %42 = arith.addf %37, %41 : vector<33x8xf32>
    %c14 = arith.constant 14 : index
    %c0_45 = arith.constant 0 : index
    %43 = vector.load %arg19[%c14, %c0_45] : memref<49x8xf32, #tpu.memory_space<vmem>>, vector<33x8xf32>
    %c0_46 = arith.constant 0 : index
    %c6 = arith.constant 6 : index
    %c0_47 = arith.constant 0 : index
    %c0_48 = arith.constant 0 : index
    %44 = vector.load %arg5[%c0_46, %c6, %c0_47, %c0_48] : memref<1x9x8x8xf32, #tpu.memory_space<vmem>>, vector<1x1x8x8xf32>
    %45 = vector.shape_cast %44 : vector<1x1x8x8xf32> to vector<8x8xf32>
    %cst_49 = arith.constant dense<0.000000e+00> : vector<33x8xf32>
    %46 = tpu.matmul %43, %45, %cst_49 {dimension_numbers = #tpu.dot_dimension_numbers<[1], [0], [0], [1], [0, 0, 1, 1], [], []>} : vector<33x8xf32>, vector<8x8xf32>, vector<33x8xf32> -> vector<33x8xf32>
    %47 = arith.addf %42, %46 : vector<33x8xf32>
    %c15 = arith.constant 15 : index
    %c0_50 = arith.constant 0 : index
    %48 = vector.load %arg19[%c15, %c0_50] : memref<49x8xf32, #tpu.memory_space<vmem>>, vector<33x8xf32>
    %c0_51 = arith.constant 0 : index
    %c7_52 = arith.constant 7 : index
    %c0_53 = arith.constant 0 : index
    %c0_54 = arith.constant 0 : index
    %49 = vector.load %arg5[%c0_51, %c7_52, %c0_53, %c0_54] : memref<1x9x8x8xf32, #tpu.memory_space<vmem>>, vector<1x1x8x8xf32>
    %50 = vector.shape_cast %49 : vector<1x1x8x8xf32> to vector<8x8xf32>
    %cst_55 = arith.constant dense<0.000000e+00> : vector<33x8xf32>
    %51 = tpu.matmul %48, %50, %cst_55 {dimension_numbers = #tpu.dot_dimension_numbers<[1], [0], [0], [1], [0, 0, 1, 1], [], []>} : vector<33x8xf32>, vector<8x8xf32>, vector<33x8xf32> -> vector<33x8xf32>
    %52 = arith.addf %47, %51 : vector<33x8xf32>
    %c16 = arith.constant 16 : index
    %c0_56 = arith.constant 0 : index
    %53 = vector.load %arg19[%c16, %c0_56] : memref<49x8xf32, #tpu.memory_space<vmem>>, vector<33x8xf32>
    %c0_57 = arith.constant 0 : index
    %c8_58 = arith.constant 8 : index
    %c0_59 = arith.constant 0 : index
    %c0_60 = arith.constant 0 : index
    %54 = vector.load %arg5[%c0_57, %c8_58, %c0_59, %c0_60] : memref<1x9x8x8xf32, #tpu.memory_space<vmem>>, vector<1x1x8x8xf32>
    %55 = vector.shape_cast %54 : vector<1x1x8x8xf32> to vector<8x8xf32>
    %cst_61 = arith.constant dense<0.000000e+00> : vector<33x8xf32>
    %56 = tpu.matmul %53, %55, %cst_61 {dimension_numbers = #tpu.dot_dimension_numbers<[1], [0], [0], [1], [0, 0, 1, 1], [], []>} : vector<33x8xf32>, vector<8x8xf32>, vector<33x8xf32> -> vector<33x8xf32>
    %57 = arith.addf %52, %56 : vector<33x8xf32>
    %c0_62 = arith.constant 0 : index
    %c0_63 = arith.constant 0 : index
    %c0_64 = arith.constant 0 : index
    %58 = vector.load %arg6[%c0_62, %c0_63, %c0_64] : memref<1x1x8xf32, #tpu.memory_space<vmem>>, vector<1x1x8xf32>
    %59 = vector.shape_cast %58 : vector<1x1x8xf32> to vector<1x8xf32>
    %60 = vector.broadcast %59 : vector<1x8xf32> to vector<33x8xf32>
    %61 = arith.addf %57, %60 : vector<33x8xf32>
    %cst_65 = arith.constant 0.000000e+00 : f32
    %62 = vector.broadcast %cst_65 : f32 to vector<33x8xf32>
    %63 = arith.maximumf %61, %62 : vector<33x8xf32>
    %c0_66 = arith.constant 0 : index
    %c0_67 = arith.constant 0 : index
    %64 = vector.load %arg20[%c0_66, %c0_67] : memref<33x8xf32, #tpu.memory_space<vmem>>, vector<33x8xf32>
    tpu.vector_store %arg20[%c0_66, %c0_67], %63 {strides = array<i32>} : memref<33x8xf32, #tpu.memory_space<vmem>>, vector<33x8xf32>,
    %cst_68 = arith.constant 0.000000e+00 : f32
    %65 = vector.broadcast %cst_68 : f32 to vector<1x32xf32>
    %c0_69 = arith.constant 0 : index
    %c0_70 = arith.constant 0 : index
    %66 = vector.load %arg20[%c0_69, %c0_70] : memref<33x8xf32, #tpu.memory_space<vmem>>, vector<1x8xf32>
    %c0_71 = arith.constant 0 : index
    %c0_72 = arith.constant 0 : index
    %c0_73 = arith.constant 0 : index
    %67 = vector.load %arg7[%c0_71, %c0_72, %c0_73] : memref<25x8x32xf32, #tpu.memory_space<vmem>>, vector<1x8x32xf32>
    %68 = vector.shape_cast %67 : vector<1x8x32xf32> to vector<8x32xf32>
    %cst_74 = arith.constant dense<0.000000e+00> : vector<1x32xf32>
    %69 = tpu.matmul %66, %68, %cst_74 {dimension_numbers = #tpu.dot_dimension_numbers<[1], [0], [0], [1], [0, 0, 1, 1], [], []>} : vector<1x8xf32>, vector<8x32xf32>, vector<1x32xf32> -> vector<1x32xf32>
    %70 = arith.addf %65, %69 : vector<1x32xf32>
    %c1_75 = arith.constant 1 : index
    %c0_76 = arith.constant 0 : index
    %71 = vector.load %arg20[%c1_75, %c0_76] : memref<33x8xf32, #tpu.memory_space<vmem>>, vector<1x8xf32>
    %c1_77 = arith.constant 1 : index
    %c0_78 = arith.constant 0 : index
    %c0_79 = arith.constant 0 : index
    %72 = vector.load %arg7[%c1_77, %c0_78, %c0_79] : memref<25x8x32xf32, #tpu.memory_space<vmem>>, vector<1x8x32xf32>
    %73 = vector.shape_cast %72 : vector<1x8x32xf32> to vector<8x32xf32>
    %cst_80 = arith.constant dense<0.000000e+00> : vector<1x32xf32>
    %74 = tpu.matmul %71, %73, %cst_80 {dimension_numbers = #tpu.dot_dimension_numbers<[1], [0], [0], [1], [0, 0, 1, 1], [], []>} : vector<1x8xf32>, vector<8x32xf32>, vector<1x32xf32> -> vector<1x32xf32>
    %75 = arith.addf %70, %74 : vector<1x32xf32>
    %c2_81 = arith.constant 2 : index
    %c0_82 = arith.constant 0 : index
    %76 = vector.load %arg20[%c2_81, %c0_82] : memref<33x8xf32, #tpu.memory_space<vmem>>, vector<1x8xf32>
    %c2_83 = arith.constant 2 : index
    %c0_84 = arith.constant 0 : index
    %c0_85 = arith.constant 0 : index
    %77 = vector.load %arg7[%c2_83, %c0_84, %c0_85] : memref<25x8x32xf32, #tpu.memory_space<vmem>>, vector<1x8x32xf32>
    %78 = vector.shape_cast %77 : vector<1x8x32xf32> to vector<8x32xf32>
    %cst_86 = arith.constant dense<0.000000e+00> : vector<1x32xf32>
    %79 = tpu.matmul %76, %78, %cst_86 {dimension_numbers = #tpu.dot_dimension_numbers<[1], [0], [0], [1], [0, 0, 1, 1], [], []>} : vector<1x8xf32>, vector<8x32xf32>, vector<1x32xf32> -> vector<1x32xf32>
    %80 = arith.addf %75, %79 : vector<1x32xf32>
    %c3_87 = arith.constant 3 : index
    %c0_88 = arith.constant 0 : index
    %81 = vector.load %arg20[%c3_87, %c0_88] : memref<33x8xf32, #tpu.memory_space<vmem>>, vector<1x8xf32>
    %c3_89 = arith.constant 3 : index
    %c0_90 = arith.constant 0 : index
    %c0_91 = arith.constant 0 : index
    %82 = vector.load %arg7[%c3_89, %c0_90, %c0_91] : memref<25x8x32xf32, #tpu.memory_space<vmem>>, vector<1x8x32xf32>
    %83 = vector.shape_cast %82 : vector<1x8x32xf32> to vector<8x32xf32>
    %cst_92 = arith.constant dense<0.000000e+00> : vector<1x32xf32>
    %84 = tpu.matmul %81, %83, %cst_92 {dimension_numbers = #tpu.dot_dimension_numbers<[1], [0], [0], [1], [0, 0, 1, 1], [], []>} : vector<1x8xf32>, vector<8x32xf32>, vector<1x32xf32> -> vector<1x32xf32>
    %85 = arith.addf %80, %84 : vector<1x32xf32>
    %c4_93 = arith.constant 4 : index
    %c0_94 = arith.constant 0 : index
    %86 = vector.load %arg20[%c4_93, %c0_94] : memref<33x8xf32, #tpu.memory_space<vmem>>, vector<1x8xf32>
    %c4_95 = arith.constant 4 : index
    %c0_96 = arith.constant 0 : index
    %c0_97 = arith.constant 0 : index
    %87 = vector.load %arg7[%c4_95, %c0_96, %c0_97] : memref<25x8x32xf32, #tpu.memory_space<vmem>>, vector<1x8x32xf32>
    %88 = vector.shape_cast %87 : vector<1x8x32xf32> to vector<8x32xf32>
    %cst_98 = arith.constant dense<0.000000e+00> : vector<1x32xf32>
    %89 = tpu.matmul %86, %88, %cst_98 {dimension_numbers = #tpu.dot_dimension_numbers<[1], [0], [0], [1], [0, 0, 1, 1], [], []>} : vector<1x8xf32>, vector<8x32xf32>, vector<1x32xf32> -> vector<1x32xf32>
    %90 = arith.addf %85, %89 : vector<1x32xf32>
    %c7_99 = arith.constant 7 : index
    %c0_100 = arith.constant 0 : index
    %91 = vector.load %arg20[%c7_99, %c0_100] : memref<33x8xf32, #tpu.memory_space<vmem>>, vector<1x8xf32>
    %c5_101 = arith.constant 5 : index
    %c0_102 = arith.constant 0 : index
    %c0_103 = arith.constant 0 : index
    %92 = vector.load %arg7[%c5_101, %c0_102, %c0_103] : memref<25x8x32xf32, #tpu.memory_space<vmem>>, vector<1x8x32xf32>
    %93 = vector.shape_cast %92 : vector<1x8x32xf32> to vector<8x32xf32>
    %cst_104 = arith.constant dense<0.000000e+00> : vector<1x32xf32>
    %94 = tpu.matmul %91, %93, %cst_104 {dimension_numbers = #tpu.dot_dimension_numbers<[1], [0], [0], [1], [0, 0, 1, 1], [], []>} : vector<1x8xf32>, vector<8x32xf32>, vector<1x32xf32> -> vector<1x32xf32>
    %95 = arith.addf %90, %94 : vector<1x32xf32>
    %c8_105 = arith.constant 8 : index
    %c0_106 = arith.constant 0 : index
    %96 = vector.load %arg20[%c8_105, %c0_106] : memref<33x8xf32, #tpu.memory_space<vmem>>, vector<1x8xf32>
    %c6_107 = arith.constant 6 : index
    %c0_108 = arith.constant 0 : index
    %c0_109 = arith.constant 0 : index
    %97 = vector.load %arg7[%c6_107, %c0_108, %c0_109] : memref<25x8x32xf32, #tpu.memory_space<vmem>>, vector<1x8x32xf32>
    %98 = vector.shape_cast %97 : vector<1x8x32xf32> to vector<8x32xf32>
    %cst_110 = arith.constant dense<0.000000e+00> : vector<1x32xf32>
    %99 = tpu.matmul %96, %98, %cst_110 {dimension_numbers = #tpu.dot_dimension_numbers<[1], [0], [0], [1], [0, 0, 1, 1], [], []>} : vector<1x8xf32>, vector<8x32xf32>, vector<1x32xf32> -> vector<1x32xf32>
    %100 = arith.addf %95, %99 : vector<1x32xf32>
    %c9_111 = arith.constant 9 : index
    %c0_112 = arith.constant 0 : index
    %101 = vector.load %arg20[%c9_111, %c0_112] : memref<33x8xf32, #tpu.memory_space<vmem>>, vector<1x8xf32>
    %c7_113 = arith.constant 7 : index
    %c0_114 = arith.constant 0 : index
    %c0_115 = arith.constant 0 : index
    %102 = vector.load %arg7[%c7_113, %c0_114, %c0_115] : memref<25x8x32xf32, #tpu.memory_space<vmem>>, vector<1x8x32xf32>
    %103 = vector.shape_cast %102 : vector<1x8x32xf32> to vector<8x32xf32>
    %cst_116 = arith.constant dense<0.000000e+00> : vector<1x32xf32>
    %104 = tpu.matmul %101, %103, %cst_116 {dimension_numbers = #tpu.dot_dimension_numbers<[1], [0], [0], [1], [0, 0, 1, 1], [], []>} : vector<1x8xf32>, vector<8x32xf32>, vector<1x32xf32> -> vector<1x32xf32>
    %105 = arith.addf %100, %104 : vector<1x32xf32>
    %c10 = arith.constant 10 : index
    %c0_117 = arith.constant 0 : index
    %106 = vector.load %arg20[%c10, %c0_117] : memref<33x8xf32, #tpu.memory_space<vmem>>, vector<1x8xf32>
    %c8_118 = arith.constant 8 : index
    %c0_119 = arith.constant 0 : index
    %c0_120 = arith.constant 0 : index
    %107 = vector.load %arg7[%c8_118, %c0_119, %c0_120] : memref<25x8x32xf32, #tpu.memory_space<vmem>>, vector<1x8x32xf32>
    %108 = vector.shape_cast %107 : vector<1x8x32xf32> to vector<8x32xf32>
    %cst_121 = arith.constant dense<0.000000e+00> : vector<1x32xf32>
    %109 = tpu.matmul %106, %108, %cst_121 {dimension_numbers = #tpu.dot_dimension_numbers<[1], [0], [0], [1], [0, 0, 1, 1], [], []>} : vector<1x8xf32>, vector<8x32xf32>, vector<1x32xf32> -> vector<1x32xf32>
    %110 = arith.addf %105, %109 : vector<1x32xf32>
    %c11 = arith.constant 11 : index
    %c0_122 = arith.constant 0 : index
    %111 = vector.load %arg20[%c11, %c0_122] : memref<33x8xf32, #tpu.memory_space<vmem>>, vector<1x8xf32>
    %c9_123 = arith.constant 9 : index
    %c0_124 = arith.constant 0 : index
    %c0_125 = arith.constant 0 : index
    %112 = vector.load %arg7[%c9_123, %c0_124, %c0_125] : memref<25x8x32xf32, #tpu.memory_space<vmem>>, vector<1x8x32xf32>
    %113 = vector.shape_cast %112 : vector<1x8x32xf32> to vector<8x32xf32>
    %cst_126 = arith.constant dense<0.000000e+00> : vector<1x32xf32>
    %114 = tpu.matmul %111, %113, %cst_126 {dimension_numbers = #tpu.dot_dimension_numbers<[1], [0], [0], [1], [0, 0, 1, 1], [], []>} : vector<1x8xf32>, vector<8x32xf32>, vector<1x32xf32> -> vector<1x32xf32>
    %115 = arith.addf %110, %114 : vector<1x32xf32>
    %c14_127 = arith.constant 14 : index
    %c0_128 = arith.constant 0 : index
    %116 = vector.load %arg20[%c14_127, %c0_128] : memref<33x8xf32, #tpu.memory_space<vmem>>, vector<1x8xf32>
    %c10_129 = arith.constant 10 : index
    %c0_130 = arith.constant 0 : index
    %c0_131 = arith.constant 0 : index
    %117 = vector.load %arg7[%c10_129, %c0_130, %c0_131] : memref<25x8x32xf32, #tpu.memory_space<vmem>>, vector<1x8x32xf32>
    %118 = vector.shape_cast %117 : vector<1x8x32xf32> to vector<8x32xf32>
    %cst_132 = arith.constant dense<0.000000e+00> : vector<1x32xf32>
    %119 = tpu.matmul %116, %118, %cst_132 {dimension_numbers = #tpu.dot_dimension_numbers<[1], [0], [0], [1], [0, 0, 1, 1], [], []>} : vector<1x8xf32>, vector<8x32xf32>, vector<1x32xf32> -> vector<1x32xf32>
    %120 = arith.addf %115, %119 : vector<1x32xf32>
    %c15_133 = arith.constant 15 : index
    %c0_134 = arith.constant 0 : index
    %121 = vector.load %arg20[%c15_133, %c0_134] : memref<33x8xf32, #tpu.memory_space<vmem>>, vector<1x8xf32>
    %c11_135 = arith.constant 11 : index
    %c0_136 = arith.constant 0 : index
    %c0_137 = arith.constant 0 : index
    %122 = vector.load %arg7[%c11_135, %c0_136, %c0_137] : memref<25x8x32xf32, #tpu.memory_space<vmem>>, vector<1x8x32xf32>
    %123 = vector.shape_cast %122 : vector<1x8x32xf32> to vector<8x32xf32>
    %cst_138 = arith.constant dense<0.000000e+00> : vector<1x32xf32>
    %124 = tpu.matmul %121, %123, %cst_138 {dimension_numbers = #tpu.dot_dimension_numbers<[1], [0], [0], [1], [0, 0, 1, 1], [], []>} : vector<1x8xf32>, vector<8x32xf32>, vector<1x32xf32> -> vector<1x32xf32>
    %125 = arith.addf %120, %124 : vector<1x32xf32>
    %c16_139 = arith.constant 16 : index
    %c0_140 = arith.constant 0 : index
    %126 = vector.load %arg20[%c16_139, %c0_140] : memref<33x8xf32, #tpu.memory_space<vmem>>, vector<1x8xf32>
    %c12 = arith.constant 12 : index
    %c0_141 = arith.constant 0 : index
    %c0_142 = arith.constant 0 : index
    %127 = vector.load %arg7[%c12, %c0_141, %c0_142] : memref<25x8x32xf32, #tpu.memory_space<vmem>>, vector<1x8x32xf32>
    %128 = vector.shape_cast %127 : vector<1x8x32xf32> to vector<8x32xf32>
    %cst_143 = arith.constant dense<0.000000e+00> : vector<1x32xf32>
    %129 = tpu.matmul %126, %128, %cst_143 {dimension_numbers = #tpu.dot_dimension_numbers<[1], [0], [0], [1], [0, 0, 1, 1], [], []>} : vector<1x8xf32>, vector<8x32xf32>, vector<1x32xf32> -> vector<1x32xf32>
    %130 = arith.addf %125, %129 : vector<1x32xf32>
    %c17 = arith.constant 17 : index
    %c0_144 = arith.constant 0 : index
    %131 = vector.load %arg20[%c17, %c0_144] : memref<33x8xf32, #tpu.memory_space<vmem>>, vector<1x8xf32>
    %c13 = arith.constant 13 : index
    %c0_145 = arith.constant 0 : index
    %c0_146 = arith.constant 0 : index
    %132 = vector.load %arg7[%c13, %c0_145, %c0_146] : memref<25x8x32xf32, #tpu.memory_space<vmem>>, vector<1x8x32xf32>
    %133 = vector.shape_cast %132 : vector<1x8x32xf32> to vector<8x32xf32>
    %cst_147 = arith.constant dense<0.000000e+00> : vector<1x32xf32>
    %134 = tpu.matmul %131, %133, %cst_147 {dimension_numbers = #tpu.dot_dimension_numbers<[1], [0], [0], [1], [0, 0, 1, 1], [], []>} : vector<1x8xf32>, vector<8x32xf32>, vector<1x32xf32> -> vector<1x32xf32>
    %135 = arith.addf %130, %134 : vector<1x32xf32>
    %c18 = arith.constant 18 : index
    %c0_148 = arith.constant 0 : index
    %136 = vector.load %arg20[%c18, %c0_148] : memref<33x8xf32, #tpu.memory_space<vmem>>, vector<1x8xf32>
    %c14_149 = arith.constant 14 : index
    %c0_150 = arith.constant 0 : index
    %c0_151 = arith.constant 0 : index
    %137 = vector.load %arg7[%c14_149, %c0_150, %c0_151] : memref<25x8x32xf32, #tpu.memory_space<vmem>>, vector<1x8x32xf32>
    %138 = vector.shape_cast %137 : vector<1x8x32xf32> to vector<8x32xf32>
    %cst_152 = arith.constant dense<0.000000e+00> : vector<1x32xf32>
    %139 = tpu.matmul %136, %138, %cst_152 {dimension_numbers = #tpu.dot_dimension_numbers<[1], [0], [0], [1], [0, 0, 1, 1], [], []>} : vector<1x8xf32>, vector<8x32xf32>, vector<1x32xf32> -> vector<1x32xf32>
    %140 = arith.addf %135, %139 : vector<1x32xf32>
    %c21 = arith.constant 21 : index
    %c0_153 = arith.constant 0 : index
    %141 = vector.load %arg20[%c21, %c0_153] : memref<33x8xf32, #tpu.memory_space<vmem>>, vector<1x8xf32>
    %c15_154 = arith.constant 15 : index
    %c0_155 = arith.constant 0 : index
    %c0_156 = arith.constant 0 : index
    %142 = vector.load %arg7[%c15_154, %c0_155, %c0_156] : memref<25x8x32xf32, #tpu.memory_space<vmem>>, vector<1x8x32xf32>
    %143 = vector.shape_cast %142 : vector<1x8x32xf32> to vector<8x32xf32>
    %cst_157 = arith.constant dense<0.000000e+00> : vector<1x32xf32>
    %144 = tpu.matmul %141, %143, %cst_157 {dimension_numbers = #tpu.dot_dimension_numbers<[1], [0], [0], [1], [0, 0, 1, 1], [], []>} : vector<1x8xf32>, vector<8x32xf32>, vector<1x32xf32> -> vector<1x32xf32>
    %145 = arith.addf %140, %144 : vector<1x32xf32>
    %c22 = arith.constant 22 : index
    %c0_158 = arith.constant 0 : index
    %146 = vector.load %arg20[%c22, %c0_158] : memref<33x8xf32, #tpu.memory_space<vmem>>, vector<1x8xf32>
    %c16_159 = arith.constant 16 : index
    %c0_160 = arith.constant 0 : index
    %c0_161 = arith.constant 0 : index
    %147 = vector.load %arg7[%c16_159, %c0_160, %c0_161] : memref<25x8x32xf32, #tpu.memory_space<vmem>>, vector<1x8x32xf32>
    %148 = vector.shape_cast %147 : vector<1x8x32xf32> to vector<8x32xf32>
    %cst_162 = arith.constant dense<0.000000e+00> : vector<1x32xf32>
    %149 = tpu.matmul %146, %148, %cst_162 {dimension_numbers = #tpu.dot_dimension_numbers<[1], [0], [0], [1], [0, 0, 1, 1], [], []>} : vector<1x8xf32>, vector<8x32xf32>, vector<1x32xf32> -> vector<1x32xf32>
    %150 = arith.addf %145, %149 : vector<1x32xf32>
    %c23 = arith.constant 23 : index
    %c0_163 = arith.constant 0 : index
    %151 = vector.load %arg20[%c23, %c0_163] : memref<33x8xf32, #tpu.memory_space<vmem>>, vector<1x8xf32>
    %c17_164 = arith.constant 17 : index
    %c0_165 = arith.constant 0 : index
    %c0_166 = arith.constant 0 : index
    %152 = vector.load %arg7[%c17_164, %c0_165, %c0_166] : memref<25x8x32xf32, #tpu.memory_space<vmem>>, vector<1x8x32xf32>
    %153 = vector.shape_cast %152 : vector<1x8x32xf32> to vector<8x32xf32>
    %cst_167 = arith.constant dense<0.000000e+00> : vector<1x32xf32>
    %154 = tpu.matmul %151, %153, %cst_167 {dimension_numbers = #tpu.dot_dimension_numbers<[1], [0], [0], [1], [0, 0, 1, 1], [], []>} : vector<1x8xf32>, vector<8x32xf32>, vector<1x32xf32> -> vector<1x32xf32>
    %155 = arith.addf %150, %154 : vector<1x32xf32>
    %c24 = arith.constant 24 : index
    %c0_168 = arith.constant 0 : index
    %156 = vector.load %arg20[%c24, %c0_168] : memref<33x8xf32, #tpu.memory_space<vmem>>, vector<1x8xf32>
    %c18_169 = arith.constant 18 : index
    %c0_170 = arith.constant 0 : index
    %c0_171 = arith.constant 0 : index
    %157 = vector.load %arg7[%c18_169, %c0_170, %c0_171] : memref<25x8x32xf32, #tpu.memory_space<vmem>>, vector<1x8x32xf32>
    %158 = vector.shape_cast %157 : vector<1x8x32xf32> to vector<8x32xf32>
    %cst_172 = arith.constant dense<0.000000e+00> : vector<1x32xf32>
    %159 = tpu.matmul %156, %158, %cst_172 {dimension_numbers = #tpu.dot_dimension_numbers<[1], [0], [0], [1], [0, 0, 1, 1], [], []>} : vector<1x8xf32>, vector<8x32xf32>, vector<1x32xf32> -> vector<1x32xf32>
    %160 = arith.addf %155, %159 : vector<1x32xf32>
    %c25 = arith.constant 25 : index
    %c0_173 = arith.constant 0 : index
    %161 = vector.load %arg20[%c25, %c0_173] : memref<33x8xf32, #tpu.memory_space<vmem>>, vector<1x8xf32>
    %c19 = arith.constant 19 : index
    %c0_174 = arith.constant 0 : index
    %c0_175 = arith.constant 0 : index
    %162 = vector.load %arg7[%c19, %c0_174, %c0_175] : memref<25x8x32xf32, #tpu.memory_space<vmem>>, vector<1x8x32xf32>
    %163 = vector.shape_cast %162 : vector<1x8x32xf32> to vector<8x32xf32>
    %cst_176 = arith.constant dense<0.000000e+00> : vector<1x32xf32>
    %164 = tpu.matmul %161, %163, %cst_176 {dimension_numbers = #tpu.dot_dimension_numbers<[1], [0], [0], [1], [0, 0, 1, 1], [], []>} : vector<1x8xf32>, vector<8x32xf32>, vector<1x32xf32> -> vector<1x32xf32>
    %165 = arith.addf %160, %164 : vector<1x32xf32>
    %c28 = arith.constant 28 : index
    %c0_177 = arith.constant 0 : index
    %166 = vector.load %arg20[%c28, %c0_177] : memref<33x8xf32, #tpu.memory_space<vmem>>, vector<1x8xf32>
    %c20 = arith.constant 20 : index
    %c0_178 = arith.constant 0 : index
    %c0_179 = arith.constant 0 : index
    %167 = vector.load %arg7[%c20, %c0_178, %c0_179] : memref<25x8x32xf32, #tpu.memory_space<vmem>>, vector<1x8x32xf32>
    %168 = vector.shape_cast %167 : vector<1x8x32xf32> to vector<8x32xf32>
    %cst_180 = arith.constant dense<0.000000e+00> : vector<1x32xf32>
    %169 = tpu.matmul %166, %168, %cst_180 {dimension_numbers = #tpu.dot_dimension_numbers<[1], [0], [0], [1], [0, 0, 1, 1], [], []>} : vector<1x8xf32>, vector<8x32xf32>, vector<1x32xf32> -> vector<1x32xf32>
    %170 = arith.addf %165, %169 : vector<1x32xf32>
    %c29 = arith.constant 29 : index
    %c0_181 = arith.constant 0 : index
    %171 = vector.load %arg20[%c29, %c0_181] : memref<33x8xf32, #tpu.memory_space<vmem>>, vector<1x8xf32>
    %c21_182 = arith.constant 21 : index
    %c0_183 = arith.constant 0 : index
    %c0_184 = arith.constant 0 : index
    %172 = vector.load %arg7[%c21_182, %c0_183, %c0_184] : memref<25x8x32xf32, #tpu.memory_space<vmem>>, vector<1x8x32xf32>
    %173 = vector.shape_cast %172 : vector<1x8x32xf32> to vector<8x32xf32>
    %cst_185 = arith.constant dense<0.000000e+00> : vector<1x32xf32>
    %174 = tpu.matmul %171, %173, %cst_185 {dimension_numbers = #tpu.dot_dimension_numbers<[1], [0], [0], [1], [0, 0, 1, 1], [], []>} : vector<1x8xf32>, vector<8x32xf32>, vector<1x32xf32> -> vector<1x32xf32>
    %175 = arith.addf %170, %174 : vector<1x32xf32>
    %c30 = arith.constant 30 : index
    %c0_186 = arith.constant 0 : index
    %176 = vector.load %arg20[%c30, %c0_186] : memref<33x8xf32, #tpu.memory_space<vmem>>, vector<1x8xf32>
    %c22_187 = arith.constant 22 : index
    %c0_188 = arith.constant 0 : index
    %c0_189 = arith.constant 0 : index
    %177 = vector.load %arg7[%c22_187, %c0_188, %c0_189] : memref<25x8x32xf32, #tpu.memory_space<vmem>>, vector<1x8x32xf32>
    %178 = vector.shape_cast %177 : vector<1x8x32xf32> to vector<8x32xf32>
    %cst_190 = arith.constant dense<0.000000e+00> : vector<1x32xf32>
    %179 = tpu.matmul %176, %178, %cst_190 {dimension_numbers = #tpu.dot_dimension_numbers<[1], [0], [0], [1], [0, 0, 1, 1], [], []>} : vector<1x8xf32>, vector<8x32xf32>, vector<1x32xf32> -> vector<1x32xf32>
    %180 = arith.addf %175, %179 : vector<1x32xf32>
    %c31 = arith.constant 31 : index
    %c0_191 = arith.constant 0 : index
    %181 = vector.load %arg20[%c31, %c0_191] : memref<33x8xf32, #tpu.memory_space<vmem>>, vector<1x8xf32>
    %c23_192 = arith.constant 23 : index
    %c0_193 = arith.constant 0 : index
    %c0_194 = arith.constant 0 : index
    %182 = vector.load %arg7[%c23_192, %c0_193, %c0_194] : memref<25x8x32xf32, #tpu.memory_space<vmem>>, vector<1x8x32xf32>
    %183 = vector.shape_cast %182 : vector<1x8x32xf32> to vector<8x32xf32>
    %cst_195 = arith.constant dense<0.000000e+00> : vector<1x32xf32>
    %184 = tpu.matmul %181, %183, %cst_195 {dimension_numbers = #tpu.dot_dimension_numbers<[1], [0], [0], [1], [0, 0, 1, 1], [], []>} : vector<1x8xf32>, vector<8x32xf32>, vector<1x32xf32> -> vector<1x32xf32>
    %185 = arith.addf %180, %184 : vector<1x32xf32>
    %c32 = arith.constant 32 : index
    %c0_196 = arith.constant 0 : index
    %186 = vector.load %arg20[%c32, %c0_196] : memref<33x8xf32, #tpu.memory_space<vmem>>, vector<1x8xf32>
    %c24_197 = arith.constant 24 : index
    %c0_198 = arith.constant 0 : index
    %c0_199 = arith.constant 0 : index
    %187 = vector.load %arg7[%c24_197, %c0_198, %c0_199] : memref<25x8x32xf32, #tpu.memory_space<vmem>>, vector<1x8x32xf32>
    %188 = vector.shape_cast %187 : vector<1x8x32xf32> to vector<8x32xf32>
    %cst_200 = arith.constant dense<0.000000e+00> : vector<1x32xf32>
    %189 = tpu.matmul %186, %188, %cst_200 {dimension_numbers = #tpu.dot_dimension_numbers<[1], [0], [0], [1], [0, 0, 1, 1], [], []>} : vector<1x8xf32>, vector<8x32xf32>, vector<1x32xf32> -> vector<1x32xf32>
    %190 = arith.addf %185, %189 : vector<1x32xf32>
    %c0_201 = arith.constant 0 : index
    %c0_202 = arith.constant 0 : index
    %191 = vector.load %arg8[%c0_201, %c0_202] : memref<1x32xf32, #tpu.memory_space<vmem>>, vector<1x32xf32>
    %192 = arith.addf %190, %191 : vector<1x32xf32>
    %cst_203 = arith.constant dense<0.000000e+00> : vector<1xf32>
    %193 = vector.multi_reduction <add>, %192, %cst_203 [1] : vector<1x32xf32> to vector<1xf32>
    %194 = vector.shape_cast %193 : vector<1xf32> to vector<1x1xf32>
    %cst_204 = arith.constant 3.200000e+01 : f32
    %195 = vector.broadcast %cst_204 : f32 to vector<1x1xf32>
    %196 = arith.divf %194, %195 : vector<1x1xf32>
    %197 = vector.broadcast %196 : vector<1x1xf32> to vector<1x32xf32>
    %198 = arith.subf %192, %197 : vector<1x32xf32>
    %199 = arith.mulf %198, %198 : vector<1x32xf32>
    %cst_205 = arith.constant dense<0.000000e+00> : vector<1xf32>
    %200 = vector.multi_reduction <add>, %199, %cst_205 [1] : vector<1x32xf32> to vector<1xf32>
    %201 = vector.shape_cast %200 : vector<1xf32> to vector<1x1xf32>
    %cst_206 = arith.constant 3.200000e+01 : f32
    %202 = vector.broadcast %cst_206 : f32 to vector<1x1xf32>
    %203 = arith.divf %201, %202 : vector<1x1xf32>
    %204 = vector.broadcast %196 : vector<1x1xf32> to vector<1x32xf32>
    %205 = arith.subf %192, %204 : vector<1x32xf32>
    %cst_207 = arith.constant 9.99999974E-6 : f32
    %206 = vector.broadcast %cst_207 : f32 to vector<1x1xf32>
    %207 = arith.addf %203, %206 : vector<1x1xf32>
    %208 = math.rsqrt %207 : vector<1x1xf32>
    %209 = vector.broadcast %208 : vector<1x1xf32> to vector<1x32xf32>
    %210 = arith.mulf %205, %209 : vector<1x32xf32>
    %c0_208 = arith.constant 0 : index
    %c0_209 = arith.constant 0 : index
    %211 = vector.load %arg9[%c0_208, %c0_209] : memref<1x32xf32, #tpu.memory_space<vmem>>, vector<1x32xf32>
    %212 = arith.mulf %210, %211 : vector<1x32xf32>
    %c0_210 = arith.constant 0 : index
    %c0_211 = arith.constant 0 : index
    %213 = vector.load %arg10[%c0_210, %c0_211] : memref<1x32xf32, #tpu.memory_space<vmem>>, vector<1x32xf32>
    %214 = arith.addf %212, %213 : vector<1x32xf32>
    %c0_212 = arith.constant 0 : index
    %c0_213 = arith.constant 0 : index
    %c0_214 = arith.constant 0 : index
    %215 = vector.load %arg2[%c0_212, %c0_213, %c0_214] : memref<1x1x4xf32, #tpu.memory_space<vmem>>, vector<1x1x4xf32>
    %216 = vector.shape_cast %215 : vector<1x1x4xf32> to vector<1x4xf32>
    %c0_215 = arith.constant 0 : index
    %c0_216 = arith.constant 0 : index
    %217 = vector.load %arg11[%c0_215, %c0_216] : memref<32x64xf32, #tpu.memory_space<vmem>>, vector<32x64xf32>
    %cst_217 = arith.constant dense<0.000000e+00> : vector<1x64xf32>
    %218 = tpu.matmul %214, %217, %cst_217 {dimension_numbers = #tpu.dot_dimension_numbers<[1], [0], [0], [1], [0, 0, 1, 1], [], []>} : vector<1x32xf32>, vector<32x64xf32>, vector<1x64xf32> -> vector<1x64xf32>
    %c0_218 = arith.constant 0 : index
    %c0_219 = arith.constant 0 : index
    %219 = vector.load %arg12[%c0_218, %c0_219] : memref<4x64xf32, #tpu.memory_space<vmem>>, vector<4x64xf32>
    %cst_220 = arith.constant dense<0.000000e+00> : vector<1x64xf32>
    %220 = tpu.matmul %216, %219, %cst_220 {dimension_numbers = #tpu.dot_dimension_numbers<[1], [0], [0], [1], [0, 0, 1, 1], [], []>} : vector<1x4xf32>, vector<4x64xf32>, vector<1x64xf32> -> vector<1x64xf32>
    %221 = arith.addf %218, %220 : vector<1x64xf32>
    %c0_221 = arith.constant 0 : index
    %c0_222 = arith.constant 0 : index
    %222 = vector.load %arg13[%c0_221, %c0_222] : memref<1x64xf32, #tpu.memory_space<vmem>>, vector<1x64xf32>
    %223 = arith.addf %221, %222 : vector<1x64xf32>
    %cst_223 = arith.constant 0.000000e+00 : f32
    %224 = vector.broadcast %cst_223 : f32 to vector<1x64xf32>
    %225 = arith.maximumf %223, %224 : vector<1x64xf32>
    %c0_224 = arith.constant 0 : index
    %c0_225 = arith.constant 0 : index
    %226 = vector.load %arg14[%c0_224, %c0_225] : memref<64x64xf32, #tpu.memory_space<vmem>>, vector<64x64xf32>
    %cst_226 = arith.constant dense<0.000000e+00> : vector<1x64xf32>
    %227 = tpu.matmul %225, %226, %cst_226 {dimension_numbers = #tpu.dot_dimension_numbers<[1], [0], [0], [1], [0, 0, 1, 1], [], []>} : vector<1x64xf32>, vector<64x64xf32>, vector<1x64xf32> -> vector<1x64xf32>
    %c0_227 = arith.constant 0 : index
    %c0_228 = arith.constant 0 : index
    %228 = vector.load %arg15[%c0_227, %c0_228] : memref<1x64xf32, #tpu.memory_space<vmem>>, vector<1x64xf32>
    %229 = arith.addf %227, %228 : vector<1x64xf32>
    %cst_229 = arith.constant 0.000000e+00 : f32
    %230 = vector.broadcast %cst_229 : f32 to vector<1x64xf32>
    %231 = arith.maximumf %229, %230 : vector<1x64xf32>
    %c0_230 = arith.constant 0 : index
    %c0_231 = arith.constant 0 : index
    %232 = vector.load %arg16[%c0_230, %c0_231] : memref<64x2xf32, #tpu.memory_space<vmem>>, vector<64x2xf32>
    %cst_232 = arith.constant dense<0.000000e+00> : vector<1x2xf32>
    %233 = tpu.matmul %231, %232, %cst_232 {dimension_numbers = #tpu.dot_dimension_numbers<[1], [0], [0], [1], [0, 0, 1, 1], [], []>} : vector<1x64xf32>, vector<64x2xf32>, vector<1x2xf32> -> vector<1x2xf32>
    %c0_233 = arith.constant 0 : index
    %c0_234 = arith.constant 0 : index
    %234 = vector.load %arg17[%c0_233, %c0_234] : memref<1x2xf32, #tpu.memory_space<vmem>>, vector<1x2xf32>
    %235 = arith.addf %233, %234 : vector<1x2xf32>
    %c0_235 = arith.constant 0 : index
    %c0_236 = arith.constant 0 : index
    %c0_237 = arith.constant 0 : index
    %236 = vector.load %arg18[%c0_235, %c0_236, %c0_237] : memref<1x1x2xf32, #tpu.memory_space<vmem>>, vector<1x1x2xf32>
    %237 = vector.shape_cast %236 : vector<1x1x2xf32> to vector<1x2xf32>
    %238 = vector.shape_cast %235 : vector<1x2xf32> to vector<1x1x2xf32>
    tpu.vector_store %arg18[%c0_235, %c0_236, %c0_237], %238 {strides = array<i32>} : memref<1x1x2xf32, #tpu.memory_space<vmem>>, vector<1x1x2xf32>,
    return
  }
  func.func @transform_0(%arg0: i32) -> (i32, i32, i32) {
    %c0_i32 = arith.constant 0 : i32
    %c0_i32_0 = arith.constant 0 : i32
    %c0_i32_1 = arith.constant 0 : i32
    return %arg0, %c0_i32, %c0_i32_0 : i32, i32, i32
  }
  func.func @transform_1(%arg0: i32) -> (i32, i32, i32) {
    %c0_i32 = arith.constant 0 : i32
    %c0_i32_0 = arith.constant 0 : i32
    %c0_i32_1 = arith.constant 0 : i32
    return %arg0, %c0_i32, %c0_i32_0 : i32, i32, i32
  }
  func.func @transform_2(%arg0: i32) -> (i32, i32) {
    %c0_i32 = arith.constant 0 : i32
    %c0_i32_0 = arith.constant 0 : i32
    %c0_i32_1 = arith.constant 0 : i32
    return %c0_i32, %c0_i32_0 : i32, i32
  }
  func.func @transform_3(%arg0: i32) -> (i32, i32) {
    %c0_i32 = arith.constant 0 : i32
    %c0_i32_0 = arith.constant 0 : i32
    %c0_i32_1 = arith.constant 0 : i32
    return %c0_i32, %c0_i32_0 : i32, i32
  }
  func.func @transform_4(%arg0: i32) -> (i32, i32, i32, i32) {
    %c0_i32 = arith.constant 0 : i32
    %c0_i32_0 = arith.constant 0 : i32
    %c0_i32_1 = arith.constant 0 : i32
    %c0_i32_2 = arith.constant 0 : i32
    %c0_i32_3 = arith.constant 0 : i32
    return %c0_i32, %c0_i32_0, %c0_i32_1, %c0_i32_2 : i32, i32, i32, i32
  }
  func.func @transform_5(%arg0: i32) -> (i32, i32, i32) {
    %c0_i32 = arith.constant 0 : i32
    %c0_i32_0 = arith.constant 0 : i32
    %c0_i32_1 = arith.constant 0 : i32
    %c0_i32_2 = arith.constant 0 : i32
    return %c0_i32, %c0_i32_0, %c0_i32_1 : i32, i32, i32
  }
  func.func @transform_6(%arg0: i32) -> (i32, i32, i32) {
    %c0_i32 = arith.constant 0 : i32
    %c0_i32_0 = arith.constant 0 : i32
    %c0_i32_1 = arith.constant 0 : i32
    %c0_i32_2 = arith.constant 0 : i32
    return %c0_i32, %c0_i32_0, %c0_i32_1 : i32, i32, i32
  }
  func.func @transform_7(%arg0: i32) -> (i32, i32) {
    %c0_i32 = arith.constant 0 : i32
    %c0_i32_0 = arith.constant 0 : i32
    %c0_i32_1 = arith.constant 0 : i32
    return %c0_i32, %c0_i32_0 : i32, i32
  }
  func.func @transform_8(%arg0: i32) -> (i32, i32) {
    %c0_i32 = arith.constant 0 : i32
    %c0_i32_0 = arith.constant 0 : i32
    %c0_i32_1 = arith.constant 0 : i32
    return %c0_i32, %c0_i32_0 : i32, i32
  }
  func.func @transform_9(%arg0: i32) -> (i32, i32) {
    %c0_i32 = arith.constant 0 : i32
    %c0_i32_0 = arith.constant 0 : i32
    %c0_i32_1 = arith.constant 0 : i32
    return %c0_i32, %c0_i32_0 : i32, i32
  }
  func.func @transform_10(%arg0: i32) -> (i32, i32) {
    %c0_i32 = arith.constant 0 : i32
    %c0_i32_0 = arith.constant 0 : i32
    %c0_i32_1 = arith.constant 0 : i32
    return %c0_i32, %c0_i32_0 : i32, i32
  }
  func.func @transform_11(%arg0: i32) -> (i32, i32) {
    %c0_i32 = arith.constant 0 : i32
    %c0_i32_0 = arith.constant 0 : i32
    %c0_i32_1 = arith.constant 0 : i32
    return %c0_i32, %c0_i32_0 : i32, i32
  }
  func.func @transform_12(%arg0: i32) -> (i32, i32) {
    %c0_i32 = arith.constant 0 : i32
    %c0_i32_0 = arith.constant 0 : i32
    %c0_i32_1 = arith.constant 0 : i32
    return %c0_i32, %c0_i32_0 : i32, i32
  }
  func.func @transform_13(%arg0: i32) -> (i32, i32) {
    %c0_i32 = arith.constant 0 : i32
    %c0_i32_0 = arith.constant 0 : i32
    %c0_i32_1 = arith.constant 0 : i32
    return %c0_i32, %c0_i32_0 : i32, i32
  }
  func.func @transform_14(%arg0: i32) -> (i32, i32) {
    %c0_i32 = arith.constant 0 : i32
    %c0_i32_0 = arith.constant 0 : i32
    %c0_i32_1 = arith.constant 0 : i32
    return %c0_i32, %c0_i32_0 : i32, i32
  }
  func.func @transform_15(%arg0: i32) -> (i32, i32) {
    %c0_i32 = arith.constant 0 : i32
    %c0_i32_0 = arith.constant 0 : i32
    %c0_i32_1 = arith.constant 0 : i32
    return %c0_i32, %c0_i32_0 : i32, i32
  }
  func.func @transform_16(%arg0: i32) -> (i32, i32) {
    %c0_i32 = arith.constant 0 : i32
    %c0_i32_0 = arith.constant 0 : i32
    %c0_i32_1 = arith.constant 0 : i32
    return %c0_i32, %c0_i32_0 : i32, i32
  }
  func.func @transform_17(%arg0: i32) -> (i32, i32, i32) {
    %c0_i32 = arith.constant 0 : i32
    %c0_i32_0 = arith.constant 0 : i32
    %c0_i32_1 = arith.constant 0 : i32
    return %arg0, %c0_i32, %c0_i32_0 : i32, i32, i32
  }
}

</mosaic_0001>

<llo_original>
// kernel: critic_forward.1
$region0: #{critic_forward.1}
  #allocation0 [shape = 'u32[]', space=smem, size = 0x4, offset = 0x4, fixed_abs, tag = 'smem constant byte address 0x4 - core index']
  #allocation1 [shape = 'u32[144,128]{1,0:T(1,128)}', space=vmem, size = 0x12000, scoped, tag = 'internal scratch']
  #allocation2 [shape = 'f32[49,8]{1,0:T(8,128)}', space=vmem, size = 0x7000, scoped, tag = 'scratch operand']
  #allocation3 [shape = 'f32[33,8]{1,0:T(8,128)}', space=vmem, size = 0x5000, scoped, tag = 'scratch operand']
  %s0 = inlined_call_operand.vmem [shape: f32[2,49,36], index: 0, kind: input, shape index: {}]
  %s1 = inlined_call_operand.vmem [shape: f32[2,1,4], index: 1, kind: input, shape index: {}]
  %s2 = inlined_call_operand.vmem [shape: f32[36,8], index: 2, kind: input, shape index: {}]
  %s3 = inlined_call_operand.vmem [shape: f32[1,8], index: 3, kind: input, shape index: {}]
  %s4 = inlined_call_operand.vmem [shape: f32[1,9,8,8], index: 4, kind: input, shape index: {}]
  %s5 = inlined_call_operand.vmem [shape: f32[1,1,8], index: 5, kind: input, shape index: {}]
  %s6 = inlined_call_operand.vmem [shape: f32[25,8,32], index: 6, kind: input, shape index: {}]
  %s7 = inlined_call_operand.vmem [shape: f32[1,32], index: 7, kind: input, shape index: {}]
  %s8 = inlined_call_operand.vmem [shape: f32[1,32], index: 8, kind: input, shape index: {}]
  %s9 = inlined_call_operand.vmem [shape: f32[1,32], index: 9, kind: input, shape index: {}]
  %s10 = inlined_call_operand.vmem [shape: f32[32,64], index: 10, kind: input, shape index: {}]
  %s11 = inlined_call_operand.vmem [shape: f32[4,64], index: 11, kind: input, shape index: {}]
  %s12 = inlined_call_operand.vmem [shape: f32[1,64], index: 12, kind: input, shape index: {}]
  %s13 = inlined_call_operand.vmem [shape: f32[64,64], index: 13, kind: input, shape index: {}]
  %s14 = inlined_call_operand.vmem [shape: f32[1,64], index: 14, kind: input, shape index: {}]
  %s15 = inlined_call_operand.vmem [shape: f32[64,2], index: 15, kind: input, shape index: {}]
  %s16 = inlined_call_operand.vmem [shape: f32[1,2], index: 16, kind: input, shape index: {}]
  %s17 = inlined_call_operand.vmem [shape: f32[2,1,2], index: 17, kind: output, shape index: {}]
  %s18 = sld [smem:[#allocation0]]
  $region101: #{critic_forward.1} parent=0
    _
  %s20 = ssub.s32 1, %s18
  %s21 = scalar_select 0, %s20, %s18
  loop: start=0, step=1, limit=4
  $region2: #{critic_forward.1} parent=0 // loop_pre_header
    _
  $region3: #{critic_forward.1} parent=0 // loop_header
    %s23 = sphi 0, %s27
    %p24 = scmp.ge.s32.totalorder %s23, 4
    %s33 = sphi 0, %s35
    %s36 = sphi 0, %s33
    %s37 = sphi 0, %s36
    %s53 = sphi 0, %s37
    %s59 = sphi 0, %s61
    %s62 = sphi 0, %s59
    %s63 = sphi 0, %s62
    %s79 = sphi 0, %s63
    %s83 = sphi 0, %s83
    %s85 = sphi 0, %s83
    %s86 = sphi 0, %s85
    %s100 = sphi 0, %s86
    %s104 = sphi 0, %s104
    %s106 = sphi 0, %s104
    %s107 = sphi 0, %s106
    %s121 = sphi 0, %s107
    %s125 = sphi 0, %s125
    %s127 = sphi 0, %s125
    %s128 = sphi 0, %s127
    %s142 = sphi 0, %s128
    %s146 = sphi 0, %s146
    %s148 = sphi 0, %s146
    %s149 = sphi 0, %s148
    %s163 = sphi 0, %s149
    %s167 = sphi 0, %s167
    %s169 = sphi 0, %s167
    %s170 = sphi 0, %s169
    %s184 = sphi 0, %s170
    %s188 = sphi 0, %s188
    %s190 = sphi 0, %s188
    %s191 = sphi 0, %s190
    %s205 = sphi 0, %s191
    %s209 = sphi 0, %s209
    %s211 = sphi 0, %s209
    %s212 = sphi 0, %s211
    %s226 = sphi 0, %s212
    %s230 = sphi 0, %s230
    %s232 = sphi 0, %s230
    %s233 = sphi 0, %s232
    %s247 = sphi 0, %s233
    %s251 = sphi 0, %s251
    %s253 = sphi 0, %s251
    %s254 = sphi 0, %s253
    %s268 = sphi 0, %s254
    %s272 = sphi 0, %s272
    %s274 = sphi 0, %s272
    %s275 = sphi 0, %s274
    %s289 = sphi 0, %s275
    %s293 = sphi 0, %s293
    %s295 = sphi 0, %s293
    %s296 = sphi 0, %s295
    %s310 = sphi 0, %s296
    %s314 = sphi 0, %s314
    %s316 = sphi 0, %s314
    %s317 = sphi 0, %s316
    %s331 = sphi 0, %s317
    %s335 = sphi 0, %s335
    %s337 = sphi 0, %s335
    %s338 = sphi 0, %s337
    %s352 = sphi 0, %s338
    %s356 = sphi 0, %s356
    %s358 = sphi 0, %s356
    %s359 = sphi 0, %s358
    %s373 = sphi 0, %s359
    %s377 = sphi 0, %s377
    %s379 = sphi 0, %s377
    %s380 = sphi 0, %s379
    %s394 = sphi 0, %s380
    %s400 = sphi 0, %s402
    %s403 = sphi 0, %s400
    %s404 = sphi 0, %s403
    %s420 = sphi 0, %s404
  $region4: #{critic_forward.1} parent=0 // loop_header_branch
    %26 = sbr.rel (%p24) target = $region8
  $region5: #{critic_forward.1} parent=0 // loop_body
    %s28 = ssub.s32 %s23, 1
    %s29 = ssub.s32 %s23, 2
    %s30 = sadd.s32 %s23, 1
    %s31 = ssub.s32 %s23, %s30
    %p32 = scmp.eq.s32.totalorder %s31, 0
    %s34 = sadd.s32 %s33, 1
    %s35 = scalar_select %p32, %s33, %s34
    %p38 = pneg %p32
    %p39 = scmp.eq.s32.totalorder %s23, 1
    %p40 = por %p38, %p39
    %p41 = scmp.ne.s32.totalorder %s33, %s36
    %p42 = scmp.eq.s32.totalorder %s23, 0
    %p43 = por %p41, %p42
    %p44 = scmp.ne.s32.totalorder %s33, %s36
    %p45 = scmp.eq.s32.totalorder %s28, 1
    %p46 = por %p44, %p45
    %p47 = scmp.ne.s32.totalorder %s36, %s37
    %p48 = scmp.eq.s32.totalorder %s28, 0
    %p49 = por %p47, %p48
    %p50 = scmp.ne.s32.totalorder %s36, %s37
    %p51 = scmp.eq.s32.totalorder %s29, 1
    %p52 = por %p50, %p51
    %p54 = scmp.ne.s32.totalorder %s37, %s53
    %p55 = scmp.eq.s32.totalorder %s29, 0
    %p56 = por %p54, %p55
    %s57 = ssub.s32 %s23, %s30
    %p58 = scmp.eq.s32.totalorder %s57, 0
    %s60 = sadd.s32 %s59, 1
    %s61 = scalar_select %p58, %s59, %s60
    %p64 = pneg %p58
    %p65 = scmp.eq.s32.totalorder %s23, 1
    %p66 = por %p64, %p65
    %p67 = scmp.ne.s32.totalorder %s59, %s62
    %p68 = scmp.eq.s32.totalorder %s23, 0
    %p69 = por %p67, %p68
    %p70 = scmp.ne.s32.totalorder %s59, %s62
    %p71 = scmp.eq.s32.totalorder %s28, 1
    %p72 = por %p70, %p71
    %p73 = scmp.ne.s32.totalorder %s62, %s63
    %p74 = scmp.eq.s32.totalorder %s28, 0
    %p75 = por %p73, %p74
    %p76 = scmp.ne.s32.totalorder %s62, %s63
    %p77 = scmp.eq.s32.totalorder %s29, 1
    %p78 = por %p76, %p77
    %p80 = scmp.ne.s32.totalorder %s63, %s79
    %p81 = scmp.eq.s32.totalorder %s29, 0
    %p82 = por %p80, %p81
    %s84 = sadd.s32 %s83, 1
    %p87 = scmp.eq.s32.totalorder %s23, 1
    %p88 = scmp.ne.s32.totalorder %s83, %s85
    %p89 = scmp.eq.s32.totalorder %s23, 0
    %p90 = por %p88, %p89
    %p91 = scmp.ne.s32.totalorder %s83, %s85
    %p92 = scmp.eq.s32.totalorder %s28, 1
    %p93 = por %p91, %p92
    %p94 = scmp.ne.s32.totalorder %s85, %s86
    %p95 = scmp.eq.s32.totalorder %s28, 0
    %p96 = por %p94, %p95
    %p97 = scmp.ne.s32.totalorder %s85, %s86
    %p98 = scmp.eq.s32.totalorder %s29, 1
    %p99 = por %p97, %p98
    %p101 = scmp.ne.s32.totalorder %s86, %s100
    %p102 = scmp.eq.s32.totalorder %s29, 0
    %p103 = por %p101, %p102
    %s105 = sadd.s32 %s104, 1
    %p108 = scmp.eq.s32.totalorder %s23, 1
    %p109 = scmp.ne.s32.totalorder %s104, %s106
    %p110 = scmp.eq.s32.totalorder %s23, 0
    %p111 = por %p109, %p110
    %p112 = scmp.ne.s32.totalorder %s104, %s106
    %p113 = scmp.eq.s32.totalorder %s28, 1
    %p114 = por %p112, %p113
    %p115 = scmp.ne.s32.totalorder %s106, %s107
    %p116 = scmp.eq.s32.totalorder %s28, 0
    %p117 = por %p115, %p116
    %p118 = scmp.ne.s32.totalorder %s106, %s107
    %p119 = scmp.eq.s32.totalorder %s29, 1
    %p120 = por %p118, %p119
    %p122 = scmp.ne.s32.totalorder %s107, %s121
    %p123 = scmp.eq.s32.totalorder %s29, 0
    %p124 = por %p122, %p123
    %s126 = sadd.s32 %s125, 1
    %p129 = scmp.eq.s32.totalorder %s23, 1
    %p130 = scmp.ne.s32.totalorder %s125, %s127
    %p131 = scmp.eq.s32.totalorder %s23, 0
    %p132 = por %p130, %p131
    %p133 = scmp.ne.s32.totalorder %s125, %s127
    %p134 = scmp.eq.s32.totalorder %s28, 1
    %p135 = por %p133, %p134
    %p136 = scmp.ne.s32.totalorder %s127, %s128
    %p137 = scmp.eq.s32.totalorder %s28, 0
    %p138 = por %p136, %p137
    %p139 = scmp.ne.s32.totalorder %s127, %s128
    %p140 = scmp.eq.s32.totalorder %s29, 1
    %p141 = por %p139, %p140
    %p143 = scmp.ne.s32.totalorder %s128, %s142
    %p144 = scmp.eq.s32.totalorder %s29, 0
    %p145 = por %p143, %p144
    %s147 = sadd.s32 %s146, 1
    %p150 = scmp.eq.s32.totalorder %s23, 1
    %p151 = scmp.ne.s32.totalorder %s146, %s148
    %p152 = scmp.eq.s32.totalorder %s23, 0
    %p153 = por %p151, %p152
    %p154 = scmp.ne.s32.totalorder %s146, %s148
    %p155 = scmp.eq.s32.totalorder %s28, 1
    %p156 = por %p154, %p155
    %p157 = scmp.ne.s32.totalorder %s148, %s149
    %p158 = scmp.eq.s32.totalorder %s28, 0
    %p159 = por %p157, %p158
    %p160 = scmp.ne.s32.totalorder %s148, %s149
    %p161 = scmp.eq.s32.totalorder %s29, 1
    %p162 = por %p160, %p161
    %p164 = scmp.ne.s32.totalorder %s149, %s163
    %p165 = scmp.eq.s32.totalorder %s29, 0
    %p166 = por %p164, %p165
    %s168 = sadd.s32 %s167, 1
    %p171 = scmp.eq.s32.totalorder %s23, 1
    %p172 = scmp.ne.s32.totalorder %s167, %s169
    %p173 = scmp.eq.s32.totalorder %s23, 0
    %p174 = por %p172, %p173
    %p175 = scmp.ne.s32.totalorder %s167, %s169
    %p176 = scmp.eq.s32.totalorder %s28, 1
    %p177 = por %p175, %p176
    %p178 = scmp.ne.s32.totalorder %s169, %s170
    %p179 = scmp.eq.s32.totalorder %s28, 0
    %p180 = por %p178, %p179
    %p181 = scmp.ne.s32.totalorder %s169, %s170
    %p182 = scmp.eq.s32.totalorder %s29, 1
    %p183 = por %p181, %p182
    %p185 = scmp.ne.s32.totalorder %s170, %s184
    %p186 = scmp.eq.s32.totalorder %s29, 0
    %p187 = por %p185, %p186
    %s189 = sadd.s32 %s188, 1
    %p192 = scmp.eq.s32.totalorder %s23, 1
    %p193 = scmp.ne.s32.totalorder %s188, %s190
    %p194 = scmp.eq.s32.totalorder %s23, 0
    %p195 = por %p193, %p194
    %p196 = scmp.ne.s32.totalorder %s188, %s190
    %p197 = scmp.eq.s32.totalorder %s28, 1
    %p198 = por %p196, %p197
    %p199 = scmp.ne.s32.totalorder %s190, %s191
    %p200 = scmp.eq.s32.totalorder %s28, 0
    %p201 = por %p199, %p200
    %p202 = scmp.ne.s32.totalorder %s190, %s191
    %p203 = scmp.eq.s32.totalorder %s29, 1
    %p204 = por %p202, %p203
    %p206 = scmp.ne.s32.totalorder %s191, %s205
    %p207 = scmp.eq.s32.totalorder %s29, 0
    %p208 = por %p206, %p207
    %s210 = sadd.s32 %s209, 1
    %p213 = scmp.eq.s32.totalorder %s23, 1
    %p214 = scmp.ne.s32.totalorder %s209, %s211
    %p215 = scmp.eq.s32.totalorder %s23, 0
    %p216 = por %p214, %p215
    %p217 = scmp.ne.s32.totalorder %s209, %s211
    %p218 = scmp.eq.s32.totalorder %s28, 1
    %p219 = por %p217, %p218
    %p220 = scmp.ne.s32.totalorder %s211, %s212
    %p221 = scmp.eq.s32.totalorder %s28, 0
    %p222 = por %p220, %p221
    %p223 = scmp.ne.s32.totalorder %s211, %s212
    %p224 = scmp.eq.s32.totalorder %s29, 1
    %p225 = por %p223, %p224
    %p227 = scmp.ne.s32.totalorder %s212, %s226
    %p228 = scmp.eq.s32.totalorder %s29, 0
    %p229 = por %p227, %p228
    %s231 = sadd.s32 %s230, 1
    %p234 = scmp.eq.s32.totalorder %s23, 1
    %p235 = scmp.ne.s32.totalorder %s230, %s232
    %p236 = scmp.eq.s32.totalorder %s23, 0
    %p237 = por %p235, %p236
    %p238 = scmp.ne.s32.totalorder %s230, %s232
    %p239 = scmp.eq.s32.totalorder %s28, 1
    %p240 = por %p238, %p239
    %p241 = scmp.ne.s32.totalorder %s232, %s233
    %p242 = scmp.eq.s32.totalorder %s28, 0
    %p243 = por %p241, %p242
    %p244 = scmp.ne.s32.totalorder %s232, %s233
    %p245 = scmp.eq.s32.totalorder %s29, 1
    %p246 = por %p244, %p245
    %p248 = scmp.ne.s32.totalorder %s233, %s247
    %p249 = scmp.eq.s32.totalorder %s29, 0
    %p250 = por %p248, %p249
    %s252 = sadd.s32 %s251, 1
    %p255 = scmp.eq.s32.totalorder %s23, 1
    %p256 = scmp.ne.s32.totalorder %s251, %s253
    %p257 = scmp.eq.s32.totalorder %s23, 0
    %p258 = por %p256, %p257
    %p259 = scmp.ne.s32.totalorder %s251, %s253
    %p260 = scmp.eq.s32.totalorder %s28, 1
    %p261 = por %p259, %p260
    %p262 = scmp.ne.s32.totalorder %s253, %s254
    %p263 = scmp.eq.s32.totalorder %s28, 0
    %p264 = por %p262, %p263
    %p265 = scmp.ne.s32.totalorder %s253, %s254
    %p266 = scmp.eq.s32.totalorder %s29, 1
    %p267 = por %p265, %p266
    %p269 = scmp.ne.s32.totalorder %s254, %s268
    %p270 = scmp.eq.s32.totalorder %s29, 0
    %p271 = por %p269, %p270
    %s273 = sadd.s32 %s272, 1
    %p276 = scmp.eq.s32.totalorder %s23, 1
    %p277 = scmp.ne.s32.totalorder %s272, %s274
    %p278 = scmp.eq.s32.totalorder %s23, 0
    %p279 = por %p277, %p278
    %p280 = scmp.ne.s32.totalorder %s272, %s274
    %p281 = scmp.eq.s32.totalorder %s28, 1
    %p282 = por %p280, %p281
    %p283 = scmp.ne.s32.totalorder %s274, %s275
    %p284 = scmp.eq.s32.totalorder %s28, 0
    %p285 = por %p283, %p284
    %p286 = scmp.ne.s32.totalorder %s274, %s275
    %p287 = scmp.eq.s32.totalorder %s29, 1
    %p288 = por %p286, %p287
    %p290 = scmp.ne.s32.totalorder %s275, %s289
    %p291 = scmp.eq.s32.totalorder %s29, 0
    %p292 = por %p290, %p291
    %s294 = sadd.s32 %s293, 1
    %p297 = scmp.eq.s32.totalorder %s23, 1
    %p298 = scmp.ne.s32.totalorder %s293, %s295
    %p299 = scmp.eq.s32.totalorder %s23, 0
    %p300 = por %p298, %p299
    %p301 = scmp.ne.s32.totalorder %s293, %s295
    %p302 = scmp.eq.s32.totalorder %s28, 1
    %p303 = por %p301, %p302
    %p304 = scmp.ne.s32.totalorder %s295, %s296
    %p305 = scmp.eq.s32.totalorder %s28, 0
    %p306 = por %p304, %p305
    %p307 = scmp.ne.s32.totalorder %s295, %s296
    %p308 = scmp.eq.s32.totalorder %s29, 1
    %p309 = por %p307, %p308
    %p311 = scmp.ne.s32.totalorder %s296, %s310
    %p312 = scmp.eq.s32.totalorder %s29, 0
    %p313 = por %p311, %p312
    %s315 = sadd.s32 %s314, 1
    %p318 = scmp.eq.s32.totalorder %s23, 1
    %p319 = scmp.ne.s32.totalorder %s314, %s316
    %p320 = scmp.eq.s32.totalorder %s23, 0
    %p321 = por %p319, %p320
    %p322 = scmp.ne.s32.totalorder %s314, %s316
    %p323 = scmp.eq.s32.totalorder %s28, 1
    %p324 = por %p322, %p323
    %p325 = scmp.ne.s32.totalorder %s316, %s317
    %p326 = scmp.eq.s32.totalorder %s28, 0
    %p327 = por %p325, %p326
    %p328 = scmp.ne.s32.totalorder %s316, %s317
    %p329 = scmp.eq.s32.totalorder %s29, 1
    %p330 = por %p328, %p329
    %p332 = scmp.ne.s32.totalorder %s317, %s331
    %p333 = scmp.eq.s32.totalorder %s29, 0
    %p334 = por %p332, %p333
    %s336 = sadd.s32 %s335, 1
    %p339 = scmp.eq.s32.totalorder %s23, 1
    %p340 = scmp.ne.s32.totalorder %s335, %s337
    %p341 = scmp.eq.s32.totalorder %s23, 0
    %p342 = por %p340, %p341
    %p343 = scmp.ne.s32.totalorder %s335, %s337
    %p344 = scmp.eq.s32.totalorder %s28, 1
    %p345 = por %p343, %p344
    %p346 = scmp.ne.s32.totalorder %s337, %s338
    %p347 = scmp.eq.s32.totalorder %s28, 0
    %p348 = por %p346, %p347
    %p349 = scmp.ne.s32.totalorder %s337, %s338
    %p350 = scmp.eq.s32.totalorder %s29, 1
    %p351 = por %p349, %p350
    %p353 = scmp.ne.s32.totalorder %s338, %s352
    %p354 = scmp.eq.s32.totalorder %s29, 0
    %p355 = por %p353, %p354
    %s357 = sadd.s32 %s356, 1
    %p360 = scmp.eq.s32.totalorder %s23, 1
    %p361 = scmp.ne.s32.totalorder %s356, %s358
    %p362 = scmp.eq.s32.totalorder %s23, 0
    %p363 = por %p361, %p362
    %p364 = scmp.ne.s32.totalorder %s356, %s358
    %p365 = scmp.eq.s32.totalorder %s28, 1
    %p366 = por %p364, %p365
    %p367 = scmp.ne.s32.totalorder %s358, %s359
    %p368 = scmp.eq.s32.totalorder %s28, 0
    %p369 = por %p367, %p368
    %p370 = scmp.ne.s32.totalorder %s358, %s359
    %p371 = scmp.eq.s32.totalorder %s29, 1
    %p372 = por %p370, %p371
    %p374 = scmp.ne.s32.totalorder %s359, %s373
    %p375 = scmp.eq.s32.totalorder %s29, 0
    %p376 = por %p374, %p375
    %s378 = sadd.s32 %s377, 1
    %p381 = scmp.eq.s32.totalorder %s23, 1
    %p382 = scmp.ne.s32.totalorder %s377, %s379
    %p383 = scmp.eq.s32.totalorder %s23, 0
    %p384 = por %p382, %p383
    %p385 = scmp.ne.s32.totalorder %s377, %s379
    %p386 = scmp.eq.s32.totalorder %s28, 1
    %p387 = por %p385, %p386
    %p388 = scmp.ne.s32.totalorder %s379, %s380
    %p389 = scmp.eq.s32.totalorder %s28, 0
    %p390 = por %p388, %p389
    %p391 = scmp.ne.s32.totalorder %s379, %s380
    %p392 = scmp.eq.s32.totalorder %s29, 1
    %p393 = por %p391, %p392
    %p395 = scmp.ne.s32.totalorder %s380, %s394
    %p396 = scmp.eq.s32.totalorder %s29, 0
    %p397 = por %p395, %p396
    %s398 = ssub.s32 %s23, %s30
    %p399 = scmp.eq.s32.totalorder %s398, 0
    %s401 = sadd.s32 %s400, 1
    %s402 = scalar_select %p399, %s400, %s401
    %p405 = pneg %p399
    %p406 = scmp.eq.s32.totalorder %s23, 1
    %p407 = por %p405, %p406
    %p408 = scmp.ne.s32.totalorder %s400, %s403
    %p409 = scmp.eq.s32.totalorder %s23, 0
    %p410 = por %p408, %p409
    %p411 = scmp.ne.s32.totalorder %s400, %s403
    %p412 = scmp.eq.s32.totalorder %s28, 1
    %p413 = por %p411, %p412
    %p414 = scmp.ne.s32.totalorder %s403, %s404
    %p415 = scmp.eq.s32.totalorder %s28, 0
    %p416 = por %p414, %p415
    %p417 = scmp.ne.s32.totalorder %s403, %s404
    %p418 = scmp.eq.s32.totalorder %s29, 1
    %p419 = por %p417, %p418
    %p421 = scmp.ne.s32.totalorder %s404, %s420
    %p422 = scmp.eq.s32.totalorder %s29, 0
    %p423 = por %p421, %p422
    %p424 = scmp.le.s32.totalorder 1, %s23
    %p425 = scmp.lt.s32.totalorder %s23, 3
    %p426 = pnand %p424, %p425
    %p427 = pneg %p426
    // Predicated region
    $region9: #{critic_forward.1} parent=5 // pred_check
      _
    $region10: #{critic_forward.1} parent=5 // pred_check_branch
      %429 = sbr.rel (%p426) target = $region12
    $region11: #{critic_forward.1} parent=5 // pred_region
      %s430 = ssub.s32 %s23, 1
      // Predicated region
      $region13: #{critic_forward.1} parent=11 // pred_check
        %p431 = pneg %p96
      $region14: #{critic_forward.1} parent=11 // pred_check_branch
        %433 = sbr.rel (%p431) target = $region16
      $region15: #{critic_forward.1} parent=11 // pred_region
        _
      $region16: #{critic_forward.1} parent=11 // pred_fallthru
        _
      // Predicated region
      $region17: #{critic_forward.1} parent=11 // pred_check
        %p434 = pneg %p117
      $region18: #{critic_forward.1} parent=11 // pred_check_branch
        %436 = sbr.rel (%p434) target = $region20
      $region19: #{critic_forward.1} parent=11 // pred_region
        _
      $region20: #{critic_forward.1} parent=11 // pred_fallthru
        _
      // Predicated region
      $region21: #{critic_forward.1} parent=11 // pred_check
        %p437 = pneg %p138
      $region22: #{critic_forward.1} parent=11 // pred_check_branch
        %439 = sbr.rel (%p437) target = $region24
      $region23: #{critic_forward.1} parent=11 // pred_region
        _
      $region24: #{critic_forward.1} parent=11 // pred_fallthru
        _
      // Predicated region
      $region25: #{critic_forward.1} parent=11 // pred_check
        %p440 = pneg %p159
      $region26: #{critic_forward.1} parent=11 // pred_check_branch
        %442 = sbr.rel (%p440) target = $region28
      $region27: #{critic_forward.1} parent=11 // pred_region
        _
      $region28: #{critic_forward.1} parent=11 // pred_fallthru
        _
      // Predicated region
      $region29: #{critic_forward.1} parent=11 // pred_check
        %p443 = pneg %p180
      $region30: #{critic_forward.1} parent=11 // pred_check_branch
        %445 = sbr.rel (%p443) target = $region32
      $region31: #{critic_forward.1} parent=11 // pred_region
        _
      $region32: #{critic_forward.1} parent=11 // pred_fallthru
        _
      // Predicated region
      $region33: #{critic_forward.1} parent=11 // pred_check
        %p446 = pneg %p201
      $region34: #{critic_forward.1} parent=11 // pred_check_branch
        %448 = sbr.rel (%p446) target = $region36
      $region35: #{critic_forward.1} parent=11 // pred_region
        _
      $region36: #{critic_forward.1} parent=11 // pred_fallthru
        _
      // Predicated region
      $region37: #{critic_forward.1} parent=11 // pred_check
        %p449 = pneg %p222
      $region38: #{critic_forward.1} parent=11 // pred_check_branch
        %451 = sbr.rel (%p449) target = $region40
      $region39: #{critic_forward.1} parent=11 // pred_region
        _
      $region40: #{critic_forward.1} parent=11 // pred_fallthru
        _
      // Predicated region
      $region41: #{critic_forward.1} parent=11 // pred_check
        %p452 = pneg %p243
      $region42: #{critic_forward.1} parent=11 // pred_check_branch
        %454 = sbr.rel (%p452) target = $region44
      $region43: #{critic_forward.1} parent=11 // pred_region
        _
      $region44: #{critic_forward.1} parent=11 // pred_fallthru
        _
      // Predicated region
      $region45: #{critic_forward.1} parent=11 // pred_check
        %p455 = pneg %p264
      $region46: #{critic_forward.1} parent=11 // pred_check_branch
        %457 = sbr.rel (%p455) target = $region48
      $region47: #{critic_forward.1} parent=11 // pred_region
        _
      $region48: #{critic_forward.1} parent=11 // pred_fallthru
        _
      // Predicated region
      $region49: #{critic_forward.1} parent=11 // pred_check
        %p458 = pneg %p285
      $region50: #{critic_forward.1} parent=11 // pred_check_branch
        %460 = sbr.rel (%p458) target = $region52
      $region51: #{critic_forward.1} parent=11 // pred_region
        _
      $region52: #{critic_forward.1} parent=11 // pred_fallthru
        _
      // Predicated region
      $region53: #{critic_forward.1} parent=11 // pred_check
        %p461 = pneg %p306
      $region54: #{critic_forward.1} parent=11 // pred_check_branch
        %463 = sbr.rel (%p461) target = $region56
      $region55: #{critic_forward.1} parent=11 // pred_region
        _
      $region56: #{critic_forward.1} parent=11 // pred_fallthru
        _
      // Predicated region
      $region57: #{critic_forward.1} parent=11 // pred_check
        %p464 = pneg %p327
      $region58: #{critic_forward.1} parent=11 // pred_check_branch
        %466 = sbr.rel (%p464) target = $region60
      $region59: #{critic_forward.1} parent=11 // pred_region
        _
      $region60: #{critic_forward.1} parent=11 // pred_fallthru
        _
      // Predicated region
      $region61: #{critic_forward.1} parent=11 // pred_check
        %p467 = pneg %p348
      $region62: #{critic_forward.1} parent=11 // pred_check_branch
        %469 = sbr.rel (%p467) target = $region64
      $region63: #{critic_forward.1} parent=11 // pred_region
        _
      $region64: #{critic_forward.1} parent=11 // pred_fallthru
        _
      // Predicated region
      $region65: #{critic_forward.1} parent=11 // pred_check
        %p470 = pneg %p369
      $region66: #{critic_forward.1} parent=11 // pred_check_branch
        %472 = sbr.rel (%p470) target = $region68
      $region67: #{critic_forward.1} parent=11 // pred_region
        _
      $region68: #{critic_forward.1} parent=11 // pred_fallthru
        _
      // Predicated region
      $region69: #{critic_forward.1} parent=11 // pred_check
        %p473 = pneg %p390
      $region70: #{critic_forward.1} parent=11 // pred_check_branch
        %475 = sbr.rel (%p473) target = $region72
      $region71: #{critic_forward.1} parent=11 // pred_region
        _
      $region72: #{critic_forward.1} parent=11 // pred_fallthru
        _
    $region12: #{critic_forward.1} parent=5 // pred_fallthru
      _
    %p476 = scmp.lt.s32.totalorder %s23, 2
    // Predicated region
    $region73: #{critic_forward.1} parent=5 // pred_check
      %p477 = pneg %p476
    $region74: #{critic_forward.1} parent=5 // pred_check_branch
      %479 = sbr.rel (%p477) target = $region76
    $region75: #{critic_forward.1} parent=5 // pred_region
      // Predicated region
      $region77: #{critic_forward.1} parent=75 // pred_check
        %p480 = pneg %p43
      $region78: #{critic_forward.1} parent=75 // pred_check_branch
        %482 = sbr.rel (%p480) target = $region80
      $region79: #{critic_forward.1} parent=75 // pred_region
        %p483 = scmp.lt.s32.totalorder %s23, 1
        %s484 = scalar_select %p483, %s23, 1
        %s485 = smul.addr %s484, 7
        %s486 = smul.addr %s485, 8
        %s487 = scalar_lea.vmem %s0, %s486
      $region80: #{critic_forward.1} parent=75 // pred_fallthru
        _
      // Predicated region
      $region81: #{critic_forward.1} parent=75 // pred_check
        %p488 = pneg %p69
      $region82: #{critic_forward.1} parent=75 // pred_check_branch
        %490 = sbr.rel (%p488) target = $region84
      $region83: #{critic_forward.1} parent=75 // pred_region
        %p491 = scmp.lt.s32.totalorder %s23, 1
        %s492 = scalar_select %p491, %s23, 1
        %s493 = scalar_lea.vmem %s1, %s492
      $region84: #{critic_forward.1} parent=75 // pred_fallthru
        _
    $region76: #{critic_forward.1} parent=5 // pred_fallthru
      _
    %p494 = scmp.le.s32.totalorder 1, %s23
    %p495 = scmp.lt.s32.totalorder %s23, 3
    %p496 = pnand %p494, %p495
    %p497 = pneg %p496
    // Predicated region
    $region85: #{critic_forward.1} parent=5 // pred_check
      _
    $region86: #{critic_forward.1} parent=5 // pred_check_branch
      %499 = sbr.rel (%p496) target = $region88
    $region87: #{critic_forward.1} parent=5 // pred_region
      %s500 = ssub.s32 %s23, 1
      %p501 = scmp.lt.s32.totalorder %s28, 1
      %s502 = scalar_select %p501, %s28, 1
      %s503 = smul.addr %s502, 7
      %s504 = smul.addr %s503, 8
      %s505 = scalar_lea.vmem %s0, %s504
      %p506 = pneg %p49
      %p507 = pneg %p46
      %p508 = scmp.lt.s32.totalorder %s28, 1
      %s509 = scalar_select %p508, %s28, 1
      %s510 = scalar_lea.vmem %s1, %s509
      %p511 = pneg %p75
      %p512 = pneg %p72
      %p513 = pneg %p96
      %p514 = pneg %p93
      %p515 = pneg %p117
      %p516 = pneg %p114
      %p517 = pneg %p138
      %p518 = pneg %p135
      %p519 = pneg %p159
      %p520 = pneg %p156
      %p521 = pneg %p180
      %p522 = pneg %p177
      %p523 = pneg %p201
      %p524 = pneg %p198
      %p525 = pneg %p222
      %p526 = pneg %p219
      %p527 = pneg %p243
      %p528 = pneg %p240
      %p529 = pneg %p264
      %p530 = pneg %p261
      %p531 = pneg %p285
      %p532 = pneg %p282
      %p533 = pneg %p306
      %p534 = pneg %p303
      %p535 = pneg %p327
      %p536 = pneg %p324
      %p537 = pneg %p348
      %p538 = pneg %p345
      %p539 = pneg %p369
      %p540 = pneg %p366
      %p541 = pneg %p390
      %p542 = pneg %p387
      %p543 = pneg %p416
      %p544 = pneg %p413
      %p545 = scmp.lt.s32.totalorder %s28, 1
      %s546 = scalar_select %p545, %s28, 1
      %s547 = scalar_lea.vmem %s17, %s546
      %p548 = scmp.lt.s32.totalorder %s28, 1
      %s549 = scalar_select %p548, %s28, 1
      %s550 = smul.addr %s549, 7
      %s551 = smul.addr %s550, 8
      %s552 = scalar_lea.vmem %s0, %s551
      %p553 = scmp.lt.s32.totalorder %s28, 1
      %s554 = scalar_select %p553, %s28, 1
      %s555 = scalar_lea.vmem %s1, %s554
      %p556 = scmp.lt.s32.totalorder %s28, 1
      %s557 = scalar_select %p556, %s28, 1
      %s558 = scalar_lea.vmem %s17, %s557
      %v559 = vld [vmem:[%s552] sm:$0xff]
      %v560 = vld [vmem:[%s552 + $0x8] sm:$0xff]
      %v561 = vld [vmem:[%s552 + $0x10] sm:$0xff]
      %v562 = vld [vmem:[%s552 + $0x18] sm:$0xff]
      %v563 = vld [vmem:[%s552 + $0x20] sm:$0xff]
      %v564 = vld [vmem:[%s552 + $0x28] sm:$0xff]
      %v565 = vld [vmem:[%s552 + $0x30] sm:$0x1]
      %v566 = vmul.f32 %v559, 0.003921569
      %v567 = vmul.f32 %v560, 0.003921569
      %v568 = vmul.f32 %v561, 0.003921569
      %v569 = vmul.f32 %v562, 0.003921569
      %v570 = vmul.f32 %v563, 0.003921569
      %v571 = vmul.f32 %v564, 0.003921569
      %v572 = vmul.f32 %v565, 0.003921569
      %v573 = vld [vmem:[%s2] sm:$0xff]
      %v574 = vld [vmem:[%s2 + $0x8] sm:$0xff]
      %v575 = vld [vmem:[%s2 + $0x10] sm:$0xff]
      %v576 = vld [vmem:[%s2 + $0x18] sm:$0xff]
      %v577 = vld [vmem:[%s2 + $0x20] sm:$0xf]
      %v578 = vld [vmem:[%s3] sm:$0x1]
      %v580 = vlaneseq
      %v581 = vshrl.u32 %v580, 7
      %v582 = vsub.s32 0, %v581
      %v583 = vrot.slane %v578, %v582
      %vm585 = vcmask 293888
      %v587 = vsel %vm585, %v566, 0
      %v590 = vsel %vm585, %v567, 0
      %v593 = vsel %vm585, %v568, 0
      %v596 = vsel %vm585, %v569, 0
      %v599 = vsel %vm585, %v570, 0
      %v602 = vsel %vm585, %v571, 0
      %v605 = vsel %vm585, %v572, 0
      %vm607 = vcmask 1043456
      %v609 = vsel %vm607, %v577, 0
      %611 = vmatprep.subr.mxu0 0.0
      %612 = vmatpush1.msra.mxu0 %v573
      %613 = vmatprep.subr.mxu0 0.0
      %614 = vmatpush1.msra.mxu0 %v574
      %615 = vmatprep.subr.mxu0 0.0
      %616 = vmatpush1.msra.mxu0 %v575
      %617 = vmatprep.subr.mxu0 0.0
      %618 = vmatpush1.msra.mxu0 %v576
      %619 = vmatprep.subr.mxu0 0.0
      %620 = vmatpush1.msra.mxu0 %v609
      %621 = vmatprep.subr.mxu0 0.0
      %622 = vmatpush1.msra.mxu0 0.0
      %623 = vmatprep.subr.mxu0 0.0
      %624 = vmatpush1.msra.mxu0 0.0
      %625 = vmatprep.subr.mxu0 0.0
      %626 = vmatpush1.msra.mxu0 0.0
      %627 = vmatprep.subr.mxu0 0.0
      %628 = vmatpush1.msra.mxu0 0.0
      %629 = vmatprep.subr.mxu0 0.0
      %630 = vmatpush1.msra.mxu0 0.0
      %631 = vmatprep.subr.mxu0 0.0
      %632 = vmatpush1.msra.mxu0 0.0
      %633 = vmatprep.subr.mxu0 0.0
      %634 = vmatpush1.msra.mxu0 0.0
      %635 = vmatprep.subr.mxu0 0.0
      %636 = vmatpush1.msra.mxu0 0.0
      %637 = vmatprep.subr.mxu0 0.0
      %638 = vmatpush1.msra.mxu0 0.0
      %639 = vmatprep.subr.mxu0 0.0
      %640 = vmatpush1.msra.mxu0 0.0
      %641 = vmatprep.subr.mxu0 0.0
      %642 = vmatpush1.msra.mxu0 0.0
      %643 = vmatprep.subr.mxu0 0.0
      %644 = vmatpush1.msra.mxu0 0.0
      %645 = vmatprep.subr.mxu0 0.0
      %646 = vmatpush1.msra.mxu0 0.0
      %647 = vmatprep.subr.mxu0 0.0
      %648 = vmatpush1.msra.mxu0 0.0
      %649 = vmatprep.subr.mxu0 0.0
      %650 = vmatpush1.msra.mxu0 0.0
      %651 = vmatprep.subr.mxu0 0.0
      %652 = vmatpush1.msra.mxu0 0.0
      %653 = vmatprep.subr.mxu0 0.0
      %654 = vmatpush1.msra.mxu0 0.0
      %655 = vmatprep.subr.mxu0 0.0
      %656 = vmatpush1.msra.mxu0 0.0
      %657 = vmatprep.subr.mxu0 0.0
      %658 = vmatpush1.msra.mxu0 0.0
      %659 = vmatprep.subr.mxu0 0.0
      %660 = vmatpush1.msra.mxu0 0.0
      %661 = vmatprep.subr.mxu0 0.0
      %662 = vmatpush1.msra.mxu0 0.0
      %663 = vmatprep.subr.mxu0 0.0
      %664 = vmatpush1.msra.mxu0 0.0
      %665 = vmatprep.subr.mxu0 0.0
      %666 = vmatpush1.msra.mxu0 0.0
      %667 = vmatprep.subr.mxu0 0.0
      %668 = vmatpush1.msra.mxu0 0.0
      %669 = vmatprep.subr.mxu0 0.0
      %670 = vmatpush1.msra.mxu0 0.0
      %671 = vmatprep.subr.mxu0 0.0
      %672 = vmatpush1.msra.mxu0 0.0
      %673 = vmatprep.subr.mxu0 0.0
      %674 = vmatpush1.msra.mxu0 0.0
      %675 = vmatprep.mubr.f32.mxu0 0.0
      %676 = vmatmul.mubr.f32.gmra.mrb[0].mxu0 %v587
      %v677 = vpop.f32.mrb[0].mxu0
      %v678 = vadd.f32 %v583, %v677
      %v679 = vpop.f32.mrb[0].mxu0
      %680 = vmatprep.mubr.f32.mxu0 0.0
      %681 = vmatmul.mubr.f32.gmra.mrb[0].mxu0 %v590
      %v682 = vpop.f32.mrb[0].mxu0
      %v683 = vadd.f32 %v583, %v682
      %v684 = vpop.f32.mrb[0].mxu0
      %685 = vmatprep.mubr.f32.mxu0 0.0
      %686 = vmatmul.mubr.f32.gmra.mrb[0].mxu0 %v593
      %v687 = vpop.f32.mrb[0].mxu0
      %v688 = vadd.f32 %v583, %v687
      %v689 = vpop.f32.mrb[0].mxu0
      %690 = vmatprep.mubr.f32.mxu0 0.0
      %691 = vmatmul.mubr.f32.gmra.mrb[0].mxu0 %v596
      %v692 = vpop.f32.mrb[0].mxu0
      %v693 = vadd.f32 %v583, %v692
      %v694 = vpop.f32.mrb[0].mxu0
      %695 = vmatprep.mubr.f32.mxu0 0.0
      %696 = vmatmul.mubr.f32.gmra.mrb[0].mxu0 %v599
      %v697 = vpop.f32.mrb[0].mxu0
      %v698 = vadd.f32 %v583, %v697
      %v699 = vpop.f32.mrb[0].mxu0
      %700 = vmatprep.mubr.f32.mxu0 0.0
      %701 = vmatmul.mubr.f32.gmra.mrb[0].mxu0 %v602
      %v702 = vpop.f32.mrb[0].mxu0
      %v703 = vadd.f32 %v583, %v702
      %v704 = vpop.f32.mrb[0].mxu0
      %705 = vmatprep.mubr.f32.mxu0 0.0
      %706 = vmatmul.mubr.f32.gmra.mrb[0].mxu0 %v605
      %v707 = vpop.f32.mrb[0].mxu0
      %v708 = vadd.f32 %v583, %v707
      %v709 = vpop.f32.mrb[0].mxu0
      %710 = vdwg.mxu0
      %v711 = vmax.f32 %v678, 0.0
      %v712 = vmax.f32 %v683, 0.0
      %v713 = vmax.f32 %v688, 0.0
      %v714 = vmax.f32 %v693, 0.0
      %v715 = vmax.f32 %v698, 0.0
      %v716 = vmax.f32 %v703, 0.0
      %v717 = vmax.f32 %v708, 0.0
      %vm718 = vcmask 64512
      %719 = vst.msk [vmem:[#allocation2] sm:$0xff] %vm718, %v711
      %720 = vst.msk [vmem:[#allocation2 + $0x8] sm:$0xff] %vm718, %v712
      %721 = vst.msk [vmem:[#allocation2 + $0x10] sm:$0xff] %vm718, %v713
      %722 = vst.msk [vmem:[#allocation2 + $0x18] sm:$0xff] %vm718, %v714
      %723 = vst.msk [vmem:[#allocation2 + $0x20] sm:$0xff] %vm718, %v715
      %724 = vst.msk [vmem:[#allocation2 + $0x28] sm:$0xff] %vm718, %v716
      %vm725 = vcmask 57344
      %726 = vst.msk [vmem:[#allocation2 + $0x30] sm:$0x1] %vm725, %v717
      %v727 = vld [vmem:[#allocation2] sm:$0xff]
      %v728 = vld [vmem:[#allocation2 + $0x8] sm:$0xff]
      %v729 = vld [vmem:[#allocation2 + $0x10] sm:$0xff]
      %v730 = vld [vmem:[#allocation2 + $0x18] sm:$0xff]
      %v731 = vld [vmem:[#allocation2 + $0x20] sm:$0x1]
      %v732 = vld [vmem:[%s4] sm:$0xff]
      %v733 = vld [vmem:[#allocation2 + $0x1] sm:$0xff]
      %v734 = vld [vmem:[#allocation2 + $0x9] sm:$0xff]
      %v735 = vld [vmem:[#allocation2 + $0x11] sm:$0xff]
      %v736 = vld [vmem:[#allocation2 + $0x19] sm:$0xff]
      %v737 = vld [vmem:[#allocation2 + $0x21] sm:$0x1]
      %s738 = scalar_lea.vmem %s4, 8
      %v739 = vld [vmem:[%s738] sm:$0xff]
      %v741 = vsel %vm718, %v733, 0
      %v744 = vsel %vm718, %v734, 0
      %v747 = vsel %vm718, %v735, 0
      %v750 = vsel %vm718, %v736, 0
      %v753 = vsel %vm718, %v737, 0
      %755 = vmatprep.subr.mxu0 0.0
      %756 = vmatpush1.msra.mxu0 %v739
      %757 = vmatprep.subr.mxu0 0.0
      %758 = vmatpush1.msra.mxu0 0.0
      %759 = vmatprep.subr.mxu0 0.0
      %760 = vmatpush1.msra.mxu0 0.0
      %761 = vmatprep.subr.mxu0 0.0
      %762 = vmatpush1.msra.mxu0 0.0
      %763 = vmatprep.subr.mxu0 0.0
      %764 = vmatpush1.msra.mxu0 0.0
      %765 = vmatprep.subr.mxu0 0.0
      %766 = vmatpush1.msra.mxu0 0.0
      %767 = vmatprep.subr.mxu0 0.0
      %768 = vmatpush1.msra.mxu0 0.0
      %769 = vmatprep.subr.mxu0 0.0
      %770 = vmatpush1.msra.mxu0 0.0
      %771 = vmatprep.subr.mxu0 0.0
      %772 = vmatpush1.msra.mxu0 0.0
      %773 = vmatprep.subr.mxu0 0.0
      %774 = vmatpush1.msra.mxu0 0.0
      %775 = vmatprep.subr.mxu0 0.0
      %776 = vmatpush1.msra.mxu0 0.0
      %777 = vmatprep.subr.mxu0 0.0
      %778 = vmatpush1.msra.mxu0 0.0
      %779 = vmatprep.subr.mxu0 0.0
      %780 = vmatpush1.msra.mxu0 0.0
      %781 = vmatprep.subr.mxu0 0.0
      %782 = vmatpush1.msra.mxu0 0.0
      %783 = vmatprep.subr.mxu0 0.0
      %784 = vmatpush1.msra.mxu0 0.0
      %785 = vmatprep.subr.mxu0 0.0
      %786 = vmatpush1.msra.mxu0 0.0
      %787 = vmatprep.subr.mxu0 0.0
      %788 = vmatpush1.msra.mxu0 0.0
      %789 = vmatprep.subr.mxu0 0.0
      %790 = vmatpush1.msra.mxu0 0.0
      %791 = vmatprep.subr.mxu0 0.0
      %792 = vmatpush1.msra.mxu0 0.0
      %793 = vmatprep.subr.mxu0 0.0
      %794 = vmatpush1.msra.mxu0 0.0
      %795 = vmatprep.subr.mxu0 0.0
      %796 = vmatpush1.msra.mxu0 0.0
      %797 = vmatprep.subr.mxu0 0.0
      %798 = vmatpush1.msra.mxu0 0.0
      %799 = vmatprep.subr.mxu0 0.0
      %800 = vmatpush1.msra.mxu0 0.0
      %801 = vmatprep.subr.mxu0 0.0
      %802 = vmatpush1.msra.mxu0 0.0
      %803 = vmatprep.subr.mxu0 0.0
      %804 = vmatpush1.msra.mxu0 0.0
      %805 = vmatprep.subr.mxu0 0.0
      %806 = vmatpush1.msra.mxu0 0.0
      %807 = vmatprep.subr.mxu0 0.0
      %808 = vmatpush1.msra.mxu0 0.0
      %809 = vmatprep.subr.mxu0 0.0
      %810 = vmatpush1.msra.mxu0 0.0
      %811 = vmatprep.subr.mxu0 0.0
      %812 = vmatpush1.msra.mxu0 0.0
      %813 = vmatprep.subr.mxu0 0.0
      %814 = vmatpush1.msra.mxu0 0.0
      %815 = vmatprep.subr.mxu0 0.0
      %816 = vmatpush1.msra.mxu0 0.0
      %817 = vmatprep.subr.mxu0 0.0
      %818 = vmatpush1.msra.mxu0 0.0
      %819 = vmatprep.mubr.f32.mxu0 0.0
      %820 = vmatmul.mubr.f32.gmra.mrb[0].mxu0 %v741
      %v821 = vpop.f32.mrb[0].mxu0
      %v822 = vadd.f32 0.0, %v821
      %v823 = vpop.f32.mrb[0].mxu0
      %824 = vmatprep.mubr.f32.mxu0 0.0
      %825 = vmatmul.mubr.f32.gmra.mrb[0].mxu0 %v744
      %v826 = vpop.f32.mrb[0].mxu0
      %v827 = vadd.f32 0.0, %v826
      %v828 = vpop.f32.mrb[0].mxu0
      %829 = vmatprep.mubr.f32.mxu0 0.0
      %830 = vmatmul.mubr.f32.gmra.mrb[0].mxu0 %v747
      %v831 = vpop.f32.mrb[0].mxu0
      %v832 = vadd.f32 0.0, %v831
      %v833 = vpop.f32.mrb[0].mxu0
      %834 = vmatprep.mubr.f32.mxu0 0.0
      %835 = vmatmul.mubr.f32.gmra.mrb[0].mxu0 %v750
      %v836 = vpop.f32.mrb[0].mxu0
      %v837 = vadd.f32 0.0, %v836
      %v838 = vpop.f32.mrb[0].mxu0
      %839 = vmatprep.mubr.f32.mxu0 0.0
      %840 = vmatmul.mubr.f32.gmra.mrb[0].mxu0 %v753
      %v841 = vpop.f32.mrb[0].mxu0
      %v842 = vadd.f32 0.0, %v841
      %v843 = vpop.f32.mrb[0].mxu0
      %844 = vdwg.mxu0
      %v846 = vsel %vm718, %v727, 0
      %v849 = vsel %vm718, %v728, 0
      %v852 = vsel %vm718, %v729, 0
      %v855 = vsel %vm718, %v730, 0
      %v858 = vsel %vm718, %v731, 0
      %860 = vmatprep.subr.mxu0 0.0
      %861 = vmatpush1.msra.mxu0 %v732
      %862 = vmatprep.subr.mxu0 0.0
      %863 = vmatpush1.msra.mxu0 0.0
      %864 = vmatprep.subr.mxu0 0.0
      %865 = vmatpush1.msra.mxu0 0.0
      %866 = vmatprep.subr.mxu0 0.0
      %867 = vmatpush1.msra.mxu0 0.0
      %868 = vmatprep.subr.mxu0 0.0
      %869 = vmatpush1.msra.mxu0 0.0
      %870 = vmatprep.subr.mxu0 0.0
      %871 = vmatpush1.msra.mxu0 0.0
      %872 = vmatprep.subr.mxu0 0.0
      %873 = vmatpush1.msra.mxu0 0.0
      %874 = vmatprep.subr.mxu0 0.0
      %875 = vmatpush1.msra.mxu0 0.0
      %876 = vmatprep.subr.mxu0 0.0
      %877 = vmatpush1.msra.mxu0 0.0
      %878 = vmatprep.subr.mxu0 0.0
      %879 = vmatpush1.msra.mxu0 0.0
      %880 = vmatprep.subr.mxu0 0.0
      %881 = vmatpush1.msra.mxu0 0.0
      %882 = vmatprep.subr.mxu0 0.0
      %883 = vmatpush1.msra.mxu0 0.0
      %884 = vmatprep.subr.mxu0 0.0
      %885 = vmatpush1.msra.mxu0 0.0
      %886 = vmatprep.subr.mxu0 0.0
      %887 = vmatpush1.msra.mxu0 0.0
      %888 = vmatprep.subr.mxu0 0.0
      %889 = vmatpush1.msra.mxu0 0.0
      %890 = vmatprep.subr.mxu0 0.0
      %891 = vmatpush1.msra.mxu0 0.0
      %892 = vmatprep.subr.mxu0 0.0
      %893 = vmatpush1.msra.mxu0 0.0
      %894 = vmatprep.subr.mxu0 0.0
      %895 = vmatpush1.msra.mxu0 0.0
      %896 = vmatprep.subr.mxu0 0.0
      %897 = vmatpush1.msra.mxu0 0.0
      %898 = vmatprep.subr.mxu0 0.0
      %899 = vmatpush1.msra.mxu0 0.0
      %900 = vmatprep.subr.mxu0 0.0
      %901 = vmatpush1.msra.mxu0 0.0
      %902 = vmatprep.subr.mxu0 0.0
      %903 = vmatpush1.msra.mxu0 0.0
      %904 = vmatprep.subr.mxu0 0.0
      %905 = vmatpush1.msra.mxu0 0.0
      %906 = vmatprep.subr.mxu0 0.0
      %907 = vmatpush1.msra.mxu0 0.0
      %908 = vmatprep.subr.mxu0 0.0
      %909 = vmatpush1.msra.mxu0 0.0
      %910 = vmatprep.subr.mxu0 0.0
      %911 = vmatpush1.msra.mxu0 0.0
      %912 = vmatprep.subr.mxu0 0.0
      %913 = vmatpush1.msra.mxu0 0.0
      %914 = vmatprep.subr.mxu0 0.0
      %915 = vmatpush1.msra.mxu0 0.0
      %916 = vmatprep.subr.mxu0 0.0
      %917 = vmatpush1.msra.mxu0 0.0
      %918 = vmatprep.subr.mxu0 0.0
      %919 = vmatpush1.msra.mxu0 0.0
      %920 = vmatprep.subr.mxu0 0.0
      %921 = vmatpush1.msra.mxu0 0.0
      %922 = vmatprep.subr.mxu0 0.0
      %923 = vmatpush1.msra.mxu0 0.0
      %924 = vmatprep.mubr.f32.mxu0 0.0
      %925 = vmatmul.mubr.f32.gmra.mrb[0].mxu0 %v846
      %v926 = vpop.f32.mrb[0].mxu0
      %v927 = vadd.f32 %v822, %v926
      %v928 = vpop.f32.mrb[0].mxu0
      %929 = vmatprep.mubr.f32.mxu0 0.0
      %930 = vmatmul.mubr.f32.gmra.mrb[0].mxu0 %v849
      %v931 = vpop.f32.mrb[0].mxu0
      %v932 = vadd.f32 %v827, %v931
      %v933 = vpop.f32.mrb[0].mxu0
      %934 = vmatprep.mubr.f32.mxu0 0.0
      %935 = vmatmul.mubr.f32.gmra.mrb[0].mxu0 %v852
      %v936 = vpop.f32.mrb[0].mxu0
      %v937 = vadd.f32 %v832, %v936
      %v938 = vpop.f32.mrb[0].mxu0
      %939 = vmatprep.mubr.f32.mxu0 0.0
      %940 = vmatmul.mubr.f32.gmra.mrb[0].mxu0 %v855
      %v941 = vpop.f32.mrb[0].mxu0
      %v942 = vadd.f32 %v837, %v941
      %v943 = vpop.f32.mrb[0].mxu0
      %944 = vmatprep.mubr.f32.mxu0 0.0
      %945 = vmatmul.mubr.f32.gmra.mrb[0].mxu0 %v858
      %v946 = vpop.f32.mrb[0].mxu0
      %v947 = vadd.f32 %v842, %v946
      %v948 = vpop.f32.mrb[0].mxu0
      %949 = vdwg.mxu0
      %v950 = vld [vmem:[#allocation2 + $0x2] sm:$0xff]
      %v951 = vld [vmem:[#allocation2 + $0xa] sm:$0xff]
      %v952 = vld [vmem:[#allocation2 + $0x12] sm:$0xff]
      %v953 = vld [vmem:[#allocation2 + $0x1a] sm:$0xff]
      %v954 = vld [vmem:[#allocation2 + $0x22] sm:$0x1]
      %s955 = scalar_lea.vmem %s4, 16
      %v956 = vld [vmem:[%s955] sm:$0xff]
      %v958 = vsel %vm718, %v950, 0
      %v961 = vsel %vm718, %v951, 0
      %v964 = vsel %vm718, %v952, 0
      %v967 = vsel %vm718, %v953, 0
      %v970 = vsel %vm718, %v954, 0
      %972 = vmatprep.subr.mxu0 0.0
      %973 = vmatpush1.msra.mxu0 %v956
      %974 = vmatprep.subr.mxu0 0.0
      %975 = vmatpush1.msra.mxu0 0.0
      %976 = vmatprep.subr.mxu0 0.0
      %977 = vmatpush1.msra.mxu0 0.0
      %978 = vmatprep.subr.mxu0 0.0
      %979 = vmatpush1.msra.mxu0 0.0
      %980 = vmatprep.subr.mxu0 0.0
      %981 = vmatpush1.msra.mxu0 0.0
      %982 = vmatprep.subr.mxu0 0.0
      %983 = vmatpush1.msra.mxu0 0.0
      %984 = vmatprep.subr.mxu0 0.0
      %985 = vmatpush1.msra.mxu0 0.0
      %986 = vmatprep.subr.mxu0 0.0
      %987 = vmatpush1.msra.mxu0 0.0
      %988 = vmatprep.subr.mxu0 0.0
      %989 = vmatpush1.msra.mxu0 0.0
      %990 = vmatprep.subr.mxu0 0.0
      %991 = vmatpush1.msra.mxu0 0.0
      %992 = vmatprep.subr.mxu0 0.0
      %993 = vmatpush1.msra.mxu0 0.0
      %994 = vmatprep.subr.mxu0 0.0
      %995 = vmatpush1.msra.mxu0 0.0
      %996 = vmatprep.subr.mxu0 0.0
      %997 = vmatpush1.msra.mxu0 0.0
      %998 = vmatprep.subr.mxu0 0.0
      %999 = vmatpush1.msra.mxu0 0.0
      %1000 = vmatprep.subr.mxu0 0.0
      %1001 = vmatpush1.msra.mxu0 0.0
      %1002 = vmatprep.subr.mxu0 0.0
      %1003 = vmatpush1.msra.mxu0 0.0
      %1004 = vmatprep.subr.mxu0 0.0
      %1005 = vmatpush1.msra.mxu0 0.0
      %1006 = vmatprep.subr.mxu0 0.0
      %1007 = vmatpush1.msra.mxu0 0.0
      %1008 = vmatprep.subr.mxu0 0.0
      %1009 = vmatpush1.msra.mxu0 0.0
      %1010 = vmatprep.subr.mxu0 0.0
      %1011 = vmatpush1.msra.mxu0 0.0
      %1012 = vmatprep.subr.mxu0 0.0
      %1013 = vmatpush1.msra.mxu0 0.0
      %1014 = vmatprep.subr.mxu0 0.0
      %1015 = vmatpush1.msra.mxu0 0.0
      %1016 = vmatprep.subr.mxu0 0.0
      %1017 = vmatpush1.msra.mxu0 0.0
      %1018 = vmatprep.subr.mxu0 0.0
      %1019 = vmatpush1.msra.mxu0 0.0
      %1020 = vmatprep.subr.mxu0 0.0
      %1021 = vmatpush1.msra.mxu0 0.0
      %1022 = vmatprep.subr.mxu0 0.0
      %1023 = vmatpush1.msra.mxu0 0.0
      %1024 = vmatprep.subr.mxu0 0.0
      %1025 = vmatpush1.msra.mxu0 0.0
      %1026 = vmatprep.subr.mxu0 0.0
      %1027 = vmatpush1.msra.mxu0 0.0
      %1028 = vmatprep.subr.mxu0 0.0
      %1029 = vmatpush1.msra.mxu0 0.0
      %1030 = vmatprep.subr.mxu0 0.0
      %1031 = vmatpush1.msra.mxu0 0.0
      %1032 = vmatprep.subr.mxu0 0.0
      %1033 = vmatpush1.msra.mxu0 0.0
      %1034 = vmatprep.subr.mxu0 0.0
      %1035 = vmatpush1.msra.mxu0 0.0
      %1036 = vmatprep.mubr.f32.mxu0 0.0
      %1037 = vmatmul.mubr.f32.gmra.mrb[0].mxu0 %v958
      %v1038 = vpop.f32.mrb[0].mxu0
      %v1039 = vadd.f32 0.0, %v1038
      %v1040 = vpop.f32.mrb[0].mxu0
      %1041 = vmatprep.mubr.f32.mxu0 0.0
      %1042 = vmatmul.mubr.f32.gmra.mrb[0].mxu0 %v961
      %v1043 = vpop.f32.mrb[0].mxu0
      %v1044 = vadd.f32 0.0, %v1043
      %v1045 = vpop.f32.mrb[0].mxu0
      %1046 = vmatprep.mubr.f32.mxu0 0.0
      %1047 = vmatmul.mubr.f32.gmra.mrb[0].mxu0 %v964
      %v1048 = vpop.f32.mrb[0].mxu0
      %v1049 = vadd.f32 0.0, %v1048
      %v1050 = vpop.f32.mrb[0].mxu0
      %1051 = vmatprep.mubr.f32.mxu0 0.0
      %1052 = vmatmul.mubr.f32.gmra.mrb[0].mxu0 %v967
      %v1053 = vpop.f32.mrb[0].mxu0
      %v1054 = vadd.f32 0.0, %v1053
      %v1055 = vpop.f32.mrb[0].mxu0
      %1056 = vmatprep.mubr.f32.mxu0 0.0
      %1057 = vmatmul.mubr.f32.gmra.mrb[0].mxu0 %v970
      %v1058 = vpop.f32.mrb[0].mxu0
      %v1059 = vadd.f32 0.0, %v1058
      %v1060 = vpop.f32.mrb[0].mxu0
      %1061 = vdwg.mxu0
      %v1062 = vadd.f32 %v927, %v1039
      %v1063 = vadd.f32 %v932, %v1044
      %v1064 = vadd.f32 %v937, %v1049
      %v1065 = vadd.f32 %v942, %v1054
      %v1066 = vadd.f32 %v947, %v1059
      %v1067 = vld [vmem:[#allocation2 + $0x7] sm:$0xff]
      %v1068 = vld [vmem:[#allocation2 + $0xf] sm:$0xff]
      %v1069 = vld [vmem:[#allocation2 + $0x17] sm:$0xff]
      %v1070 = vld [vmem:[#allocation2 + $0x1f] sm:$0xff]
      %v1071 = vld [vmem:[#allocation2 + $0x27] sm:$0x1]
      %s1072 = scalar_lea.vmem %s4, 24
      %v1073 = vld [vmem:[%s1072] sm:$0xff]
      %v1075 = vsel %vm718, %v1067, 0
      %v1078 = vsel %vm718, %v1068, 0
      %v1081 = vsel %vm718, %v1069, 0
      %v1084 = vsel %vm718, %v1070, 0
      %v1087 = vsel %vm718, %v1071, 0
      %1089 = vmatprep.subr.mxu0 0.0
      %1090 = vmatpush1.msra.mxu0 %v1073
      %1091 = vmatprep.subr.mxu0 0.0
      %1092 = vmatpush1.msra.mxu0 0.0
      %1093 = vmatprep.subr.mxu0 0.0
      %1094 = vmatpush1.msra.mxu0 0.0
      %1095 = vmatprep.subr.mxu0 0.0
      %1096 = vmatpush1.msra.mxu0 0.0
      %1097 = vmatprep.subr.mxu0 0.0
      %1098 = vmatpush1.msra.mxu0 0.0
      %1099 = vmatprep.subr.mxu0 0.0
      %1100 = vmatpush1.msra.mxu0 0.0
      %1101 = vmatprep.subr.mxu0 0.0
      %1102 = vmatpush1.msra.mxu0 0.0
      %1103 = vmatprep.subr.mxu0 0.0
      %1104 = vmatpush1.msra.mxu0 0.0
      %1105 = vmatprep.subr.mxu0 0.0
      %1106 = vmatpush1.msra.mxu0 0.0
      %1107 = vmatprep.subr.mxu0 0.0
      %1108 = vmatpush1.msra.mxu0 0.0
      %1109 = vmatprep.subr.mxu0 0.0
      %1110 = vmatpush1.msra.mxu0 0.0
      %1111 = vmatprep.subr.mxu0 0.0
      %1112 = vmatpush1.msra.mxu0 0.0
      %1113 = vmatprep.subr.mxu0 0.0
      %1114 = vmatpush1.msra.mxu0 0.0
      %1115 = vmatprep.subr.mxu0 0.0
      %1116 = vmatpush1.msra.mxu0 0.0
      %1117 = vmatprep.subr.mxu0 0.0
      %1118 = vmatpush1.msra.mxu0 0.0
      %1119 = vmatprep.subr.mxu0 0.0
      %1120 = vmatpush1.msra.mxu0 0.0
      %1121 = vmatprep.subr.mxu0 0.0
      %1122 = vmatpush1.msra.mxu0 0.0
      %1123 = vmatprep.subr.mxu0 0.0
      %1124 = vmatpush1.msra.mxu0 0.0
      %1125 = vmatprep.subr.mxu0 0.0
      %1126 = vmatpush1.msra.mxu0 0.0
      %1127 = vmatprep.subr.mxu0 0.0
      %1128 = vmatpush1.msra.mxu0 0.0
      %1129 = vmatprep.subr.mxu0 0.0
      %1130 = vmatpush1.msra.mxu0 0.0
      %1131 = vmatprep.subr.mxu0 0.0
      %1132 = vmatpush1.msra.mxu0 0.0
      %1133 = vmatprep.subr.mxu0 0.0
      %1134 = vmatpush1.msra.mxu0 0.0
      %1135 = vmatprep.subr.mxu0 0.0
      %1136 = vmatpush1.msra.mxu0 0.0
      %1137 = vmatprep.subr.mxu0 0.0
      %1138 = vmatpush1.msra.mxu0 0.0
      %1139 = vmatprep.subr.mxu0 0.0
      %1140 = vmatpush1.msra.mxu0 0.0
      %1141 = vmatprep.subr.mxu0 0.0
      %1142 = vmatpush1.msra.mxu0 0.0
      %1143 = vmatprep.subr.mxu0 0.0
      %1144 = vmatpush1.msra.mxu0 0.0
      %1145 = vmatprep.subr.mxu0 0.0
      %1146 = vmatpush1.msra.mxu0 0.0
      %1147 = vmatprep.subr.mxu0 0.0
      %1148 = vmatpush1.msra.mxu0 0.0
      %1149 = vmatprep.subr.mxu0 0.0
      %1150 = vmatpush1.msra.mxu0 0.0
      %1151 = vmatprep.subr.mxu0 0.0
      %1152 = vmatpush1.msra.mxu0 0.0
      %1153 = vmatprep.mubr.f32.mxu0 0.0
      %1154 = vmatmul.mubr.f32.gmra.mrb[0].mxu0 %v1075
      %v1155 = vpop.f32.mrb[0].mxu0
      %v1156 = vadd.f32 0.0, %v1155
      %v1157 = vpop.f32.mrb[0].mxu0
      %1158 = vmatprep.mubr.f32.mxu0 0.0
      %1159 = vmatmul.mubr.f32.gmra.mrb[0].mxu0 %v1078
      %v1160 = vpop.f32.mrb[0].mxu0
      %v1161 = vadd.f32 0.0, %v1160
      %v1162 = vpop.f32.mrb[0].mxu0
      %1163 = vmatprep.mubr.f32.mxu0 0.0
      %1164 = vmatmul.mubr.f32.gmra.mrb[0].mxu0 %v1081
      %v1165 = vpop.f32.mrb[0].mxu0
      %v1166 = vadd.f32 0.0, %v1165
      %v1167 = vpop.f32.mrb[0].mxu0
      %1168 = vmatprep.mubr.f32.mxu0 0.0
      %1169 = vmatmul.mubr.f32.gmra.mrb[0].mxu0 %v1084
      %v1170 = vpop.f32.mrb[0].mxu0
      %v1171 = vadd.f32 0.0, %v1170
      %v1172 = vpop.f32.mrb[0].mxu0
      %1173 = vmatprep.mubr.f32.mxu0 0.0
      %1174 = vmatmul.mubr.f32.gmra.mrb[0].mxu0 %v1087
      %v1175 = vpop.f32.mrb[0].mxu0
      %v1176 = vadd.f32 0.0, %v1175
      %v1177 = vpop.f32.mrb[0].mxu0
      %1178 = vdwg.mxu0
      %v1179 = vadd.f32 %v1062, %v1156
      %v1180 = vadd.f32 %v1063, %v1161
      %v1181 = vadd.f32 %v1064, %v1166
      %v1182 = vadd.f32 %v1065, %v1171
      %v1183 = vadd.f32 %v1066, %v1176
      %v1184 = vld [vmem:[#allocation2 + $0x8] sm:$0xff]
      %v1185 = vld [vmem:[#allocation2 + $0x10] sm:$0xff]
      %v1186 = vld [vmem:[#allocation2 + $0x18] sm:$0xff]
      %v1187 = vld [vmem:[#allocation2 + $0x20] sm:$0xff]
      %v1188 = vld [vmem:[#allocation2 + $0x28] sm:$0x1]
      %s1189 = scalar_lea.vmem %s4, 32
      %v1190 = vld [vmem:[%s1189] sm:$0xff]
      %v1192 = vsel %vm718, %v1184, 0
      %v1195 = vsel %vm718, %v1185, 0
      %v1198 = vsel %vm718, %v1186, 0
      %v1201 = vsel %vm718, %v1187, 0
      %v1204 = vsel %vm718, %v1188, 0
      %1206 = vmatprep.subr.mxu0 0.0
      %1207 = vmatpush1.msra.mxu0 %v1190
      %1208 = vmatprep.subr.mxu0 0.0
      %1209 = vmatpush1.msra.mxu0 0.0
      %1210 = vmatprep.subr.mxu0 0.0
      %1211 = vmatpush1.msra.mxu0 0.0
      %1212 = vmatprep.subr.mxu0 0.0
      %1213 = vmatpush1.msra.mxu0 0.0
      %1214 = vmatprep.subr.mxu0 0.0
      %1215 = vmatpush1.msra.mxu0 0.0
      %1216 = vmatprep.subr.mxu0 0.0
      %1217 = vmatpush1.msra.mxu0 0.0
      %1218 = vmatprep.subr.mxu0 0.0
      %1219 = vmatpush1.msra.mxu0 0.0
      %1220 = vmatprep.subr.mxu0 0.0
      %1221 = vmatpush1.msra.mxu0 0.0
      %1222 = vmatprep.subr.mxu0 0.0
      %1223 = vmatpush1.msra.mxu0 0.0
      %1224 = vmatprep.subr.mxu0 0.0
      %1225 = vmatpush1.msra.mxu0 0.0
      %1226 = vmatprep.subr.mxu0 0.0
      %1227 = vmatpush1.msra.mxu0 0.0
      %1228 = vmatprep.subr.mxu0 0.0
      %1229 = vmatpush1.msra.mxu0 0.0
      %1230 = vmatprep.subr.mxu0 0.0
      %1231 = vmatpush1.msra.mxu0 0.0
      %1232 = vmatprep.subr.mxu0 0.0
      %1233 = vmatpush1.msra.mxu0 0.0
      %1234 = vmatprep.subr.mxu0 0.0
      %1235 = vmatpush1.msra.mxu0 0.0
      %1236 = vmatprep.subr.mxu0 0.0
      %1237 = vmatpush1.msra.mxu0 0.0
      %1238 = vmatprep.subr.mxu0 0.0
      %1239 = vmatpush1.msra.mxu0 0.0
      %1240 = vmatprep.subr.mxu0 0.0
      %1241 = vmatpush1.msra.mxu0 0.0
      %1242 = vmatprep.subr.mxu0 0.0
      %1243 = vmatpush1.msra.mxu0 0.0
      %1244 = vmatprep.subr.mxu0 0.0
      %1245 = vmatpush1.msra.mxu0 0.0
      %1246 = vmatprep.subr.mxu0 0.0
      %1247 = vmatpush1.msra.mxu0 0.0
      %1248 = vmatprep.subr.mxu0 0.0
      %1249 = vmatpush1.msra.mxu0 0.0
      %1250 = vmatprep.subr.mxu0 0.0
      %1251 = vmatpush1.msra.mxu0 0.0
      %1252 = vmatprep.subr.mxu0 0.0
      %1253 = vmatpush1.msra.mxu0 0.0
      %1254 = vmatprep.subr.mxu0 0.0
      %1255 = vmatpush1.msra.mxu0 0.0
      %1256 = vmatprep.subr.mxu0 0.0
      %1257 = vmatpush1.msra.mxu0 0.0
      %1258 = vmatprep.subr.mxu0 0.0
      %1259 = vmatpush1.msra.mxu0 0.0
      %1260 = vmatprep.subr.mxu0 0.0
      %1261 = vmatpush1.msra.mxu0 0.0
      %1262 = vmatprep.subr.mxu0 0.0
      %1263 = vmatpush1.msra.mxu0 0.0
      %1264 = vmatprep.subr.mxu0 0.0
      %1265 = vmatpush1.msra.mxu0 0.0
      %1266 = vmatprep.subr.mxu0 0.0
      %1267 = vmatpush1.msra.mxu0 0.0
      %1268 = vmatprep.subr.mxu0 0.0
      %1269 = vmatpush1.msra.mxu0 0.0
      %1270 = vmatprep.mubr.f32.mxu0 0.0
      %1271 = vmatmul.mubr.f32.gmra.mrb[0].mxu0 %v1192
      %v1272 = vpop.f32.mrb[0].mxu0
      %v1273 = vadd.f32 0.0, %v1272
      %v1274 = vpop.f32.mrb[0].mxu0
      %1275 = vmatprep.mubr.f32.mxu0 0.0
      %1276 = vmatmul.mubr.f32.gmra.mrb[0].mxu0 %v1195
      %v1277 = vpop.f32.mrb[0].mxu0
      %v1278 = vadd.f32 0.0, %v1277
      %v1279 = vpop.f32.mrb[0].mxu0
      %1280 = vmatprep.mubr.f32.mxu0 0.0
      %1281 = vmatmul.mubr.f32.gmra.mrb[0].mxu0 %v1198
      %v1282 = vpop.f32.mrb[0].mxu0
      %v1283 = vadd.f32 0.0, %v1282
      %v1284 = vpop.f32.mrb[0].mxu0
      %1285 = vmatprep.mubr.f32.mxu0 0.0
      %1286 = vmatmul.mubr.f32.gmra.mrb[0].mxu0 %v1201
      %v1287 = vpop.f32.mrb[0].mxu0
      %v1288 = vadd.f32 0.0, %v1287
      %v1289 = vpop.f32.mrb[0].mxu0
      %1290 = vmatprep.mubr.f32.mxu0 0.0
      %1291 = vmatmul.mubr.f32.gmra.mrb[0].mxu0 %v1204
      %v1292 = vpop.f32.mrb[0].mxu0
      %v1293 = vadd.f32 0.0, %v1292
      %v1294 = vpop.f32.mrb[0].mxu0
      %1295 = vdwg.mxu0
      %v1296 = vadd.f32 %v1179, %v1273
      %v1297 = vadd.f32 %v1180, %v1278
      %v1298 = vadd.f32 %v1181, %v1283
      %v1299 = vadd.f32 %v1182, %v1288
      %v1300 = vadd.f32 %v1183, %v1293
      %v1301 = vld [vmem:[#allocation2 + $0x9] sm:$0xff]
      %v1302 = vld [vmem:[#allocation2 + $0x11] sm:$0xff]
      %v1303 = vld [vmem:[#allocation2 + $0x19] sm:$0xff]
      %v1304 = vld [vmem:[#allocation2 + $0x21] sm:$0xff]
      %v1305 = vld [vmem:[#allocation2 + $0x29] sm:$0x1]
      %s1306 = scalar_lea.vmem %s4, 40
      %v1307 = vld [vmem:[%s1306] sm:$0xff]
      %v1309 = vsel %vm718, %v1301, 0
      %v1312 = vsel %vm718, %v1302, 0
      %v1315 = vsel %vm718, %v1303, 0
      %v1318 = vsel %vm718, %v1304, 0
      %v1321 = vsel %vm718, %v1305, 0
      %1323 = vmatprep.subr.mxu0 0.0
      %1324 = vmatpush1.msra.mxu0 %v1307
      %1325 = vmatprep.subr.mxu0 0.0
      %1326 = vmatpush1.msra.mxu0 0.0
      %1327 = vmatprep.subr.mxu0 0.0
      %1328 = vmatpush1.msra.mxu0 0.0
      %1329 = vmatprep.subr.mxu0 0.0
      %1330 = vmatpush1.msra.mxu0 0.0
      %1331 = vmatprep.subr.mxu0 0.0
      %1332 = vmatpush1.msra.mxu0 0.0
      %1333 = vmatprep.subr.mxu0 0.0
      %1334 = vmatpush1.msra.mxu0 0.0
      %1335 = vmatprep.subr.mxu0 0.0
      %1336 = vmatpush1.msra.mxu0 0.0
      %1337 = vmatprep.subr.mxu0 0.0
      %1338 = vmatpush1.msra.mxu0 0.0
      %1339 = vmatprep.subr.mxu0 0.0
      %1340 = vmatpush1.msra.mxu0 0.0
      %1341 = vmatprep.subr.mxu0 0.0
      %1342 = vmatpush1.msra.mxu0 0.0
      %1343 = vmatprep.subr.mxu0 0.0
      %1344 = vmatpush1.msra.mxu0 0.0
      %1345 = vmatprep.subr.mxu0 0.0
      %1346 = vmatpush1.msra.mxu0 0.0
      %1347 = vmatprep.subr.mxu0 0.0
      %1348 = vmatpush1.msra.mxu0 0.0
      %1349 = vmatprep.subr.mxu0 0.0
      %1350 = vmatpush1.msra.mxu0 0.0
      %1351 = vmatprep.subr.mxu0 0.0
      %1352 = vmatpush1.msra.mxu0 0.0
      %1353 = vmatprep.subr.mxu0 0.0
      %1354 = vmatpush1.msra.mxu0 0.0
      %1355 = vmatprep.subr.mxu0 0.0
      %1356 = vmatpush1.msra.mxu0 0.0
      %1357 = vmatprep.subr.mxu0 0.0
      %1358 = vmatpush1.msra.mxu0 0.0
      %1359 = vmatprep.subr.mxu0 0.0
      %1360 = vmatpush1.msra.mxu0 0.0
      %1361 = vmatprep.subr.mxu0 0.0
      %1362 = vmatpush1.msra.mxu0 0.0
      %1363 = vmatprep.subr.mxu0 0.0
      %1364 = vmatpush1.msra.mxu0 0.0
      %1365 = vmatprep.subr.mxu0 0.0
      %1366 = vmatpush1.msra.mxu0 0.0
      %1367 = vmatprep.subr.mxu0 0.0
      %1368 = vmatpush1.msra.mxu0 0.0
      %1369 = vmatprep.subr.mxu0 0.0
      %1370 = vmatpush1.msra.mxu0 0.0
      %1371 = vmatprep.subr.mxu0 0.0
      %1372 = vmatpush1.msra.mxu0 0.0
      %1373 = vmatprep.subr.mxu0 0.0
      %1374 = vmatpush1.msra.mxu0 0.0
      %1375 = vmatprep.subr.mxu0 0.0
      %1376 = vmatpush1.msra.mxu0 0.0
      %1377 = vmatprep.subr.mxu0 0.0
      %1378 = vmatpush1.msra.mxu0 0.0
      %1379 = vmatprep.subr.mxu0 0.0
      %1380 = vmatpush1.msra.mxu0 0.0
      %1381 = vmatprep.subr.mxu0 0.0
      %1382 = vmatpush1.msra.mxu0 0.0
      %1383 = vmatprep.subr.mxu0 0.0
      %1384 = vmatpush1.msra.mxu0 0.0
      %1385 = vmatprep.subr.mxu0 0.0
      %1386 = vmatpush1.msra.mxu0 0.0
      %1387 = vmatprep.mubr.f32.mxu0 0.0
      %1388 = vmatmul.mubr.f32.gmra.mrb[0].mxu0 %v1309
      %v1389 = vpop.f32.mrb[0].mxu0
      %v1390 = vadd.f32 0.0, %v1389
      %v1391 = vpop.f32.mrb[0].mxu0
      %1392 = vmatprep.mubr.f32.mxu0 0.0
      %1393 = vmatmul.mubr.f32.gmra.mrb[0].mxu0 %v1312
      %v1394 = vpop.f32.mrb[0].mxu0
      %v1395 = vadd.f32 0.0, %v1394
      %v1396 = vpop.f32.mrb[0].mxu0
      %1397 = vmatprep.mubr.f32.mxu0 0.0
      %1398 = vmatmul.mubr.f32.gmra.mrb[0].mxu0 %v1315
      %v1399 = vpop.f32.mrb[0].mxu0
      %v1400 = vadd.f32 0.0, %v1399
      %v1401 = vpop.f32.mrb[0].mxu0
      %1402 = vmatprep.mubr.f32.mxu0 0.0
      %1403 = vmatmul.mubr.f32.gmra.mrb[0].mxu0 %v1318
      %v1404 = vpop.f32.mrb[0].mxu0
      %v1405 = vadd.f32 0.0, %v1404
      %v1406 = vpop.f32.mrb[0].mxu0
      %1407 = vmatprep.mubr.f32.mxu0 0.0
      %1408 = vmatmul.mubr.f32.gmra.mrb[0].mxu0 %v1321
      %v1409 = vpop.f32.mrb[0].mxu0
      %v1410 = vadd.f32 0.0, %v1409
      %v1411 = vpop.f32.mrb[0].mxu0
      %1412 = vdwg.mxu0
      %v1413 = vadd.f32 %v1296, %v1390
      %v1414 = vadd.f32 %v1297, %v1395
      %v1415 = vadd.f32 %v1298, %v1400
      %v1416 = vadd.f32 %v1299, %v1405
      %v1417 = vadd.f32 %v1300, %v1410
      %v1418 = vld [vmem:[#allocation2 + $0xe] sm:$0xff]
      %v1419 = vld [vmem:[#allocation2 + $0x16] sm:$0xff]
      %v1420 = vld [vmem:[#allocation2 + $0x1e] sm:$0xff]
      %v1421 = vld [vmem:[#allocation2 + $0x26] sm:$0xff]
      %v1422 = vld [vmem:[#allocation2 + $0x2e] sm:$0x1]
      %s1423 = scalar_lea.vmem %s4, 48
      %v1424 = vld [vmem:[%s1423] sm:$0xff]
      %v1426 = vsel %vm718, %v1418, 0
      %v1429 = vsel %vm718, %v1419, 0
      %v1432 = vsel %vm718, %v1420, 0
      %v1435 = vsel %vm718, %v1421, 0
      %v1438 = vsel %vm718, %v1422, 0
      %1440 = vmatprep.subr.mxu0 0.0
      %1441 = vmatpush1.msra.mxu0 %v1424
      %1442 = vmatprep.subr.mxu0 0.0
      %1443 = vmatpush1.msra.mxu0 0.0
      %1444 = vmatprep.subr.mxu0 0.0
      %1445 = vmatpush1.msra.mxu0 0.0
      %1446 = vmatprep.subr.mxu0 0.0
      %1447 = vmatpush1.msra.mxu0 0.0
      %1448 = vmatprep.subr.mxu0 0.0
      %1449 = vmatpush1.msra.mxu0 0.0
      %1450 = vmatprep.subr.mxu0 0.0
      %1451 = vmatpush1.msra.mxu0 0.0
      %1452 = vmatprep.subr.mxu0 0.0
      %1453 = vmatpush1.msra.mxu0 0.0
      %1454 = vmatprep.subr.mxu0 0.0
      %1455 = vmatpush1.msra.mxu0 0.0
      %1456 = vmatprep.subr.mxu0 0.0
      %1457 = vmatpush1.msra.mxu0 0.0
      %1458 = vmatprep.subr.mxu0 0.0
      %1459 = vmatpush1.msra.mxu0 0.0
      %1460 = vmatprep.subr.mxu0 0.0
      %1461 = vmatpush1.msra.mxu0 0.0
      %1462 = vmatprep.subr.mxu0 0.0
      %1463 = vmatpush1.msra.mxu0 0.0
      %1464 = vmatprep.subr.mxu0 0.0
      %1465 = vmatpush1.msra.mxu0 0.0
      %1466 = vmatprep.subr.mxu0 0.0
      %1467 = vmatpush1.msra.mxu0 0.0
      %1468 = vmatprep.subr.mxu0 0.0
      %1469 = vmatpush1.msra.mxu0 0.0
      %1470 = vmatprep.subr.mxu0 0.0
      %1471 = vmatpush1.msra.mxu0 0.0
      %1472 = vmatprep.subr.mxu0 0.0
      %1473 = vmatpush1.msra.mxu0 0.0
      %1474 = vmatprep.subr.mxu0 0.0
      %1475 = vmatpush1.msra.mxu0 0.0
      %1476 = vmatprep.subr.mxu0 0.0
      %1477 = vmatpush1.msra.mxu0 0.0
      %1478 = vmatprep.subr.mxu0 0.0
      %1479 = vmatpush1.msra.mxu0 0.0
      %1480 = vmatprep.subr.mxu0 0.0
      %1481 = vmatpush1.msra.mxu0 0.0
      %1482 = vmatprep.subr.mxu0 0.0
      %1483 = vmatpush1.msra.mxu0 0.0
      %1484 = vmatprep.subr.mxu0 0.0
      %1485 = vmatpush1.msra.mxu0 0.0
      %1486 = vmatprep.subr.mxu0 0.0
      %1487 = vmatpush1.msra.mxu0 0.0
      %1488 = vmatprep.subr.mxu0 0.0
      %1489 = vmatpush1.msra.mxu0 0.0
      %1490 = vmatprep.subr.mxu0 0.0
      %1491 = vmatpush1.msra.mxu0 0.0
      %1492 = vmatprep.subr.mxu0 0.0
      %1493 = vmatpush1.msra.mxu0 0.0
      %1494 = vmatprep.subr.mxu0 0.0
      %1495 = vmatpush1.msra.mxu0 0.0
      %1496 = vmatprep.subr.mxu0 0.0
      %1497 = vmatpush1.msra.mxu0 0.0
      %1498 = vmatprep.subr.mxu0 0.0
      %1499 = vmatpush1.msra.mxu0 0.0
      %1500 = vmatprep.subr.mxu0 0.0
      %1501 = vmatpush1.msra.mxu0 0.0
      %1502 = vmatprep.subr.mxu0 0.0
      %1503 = vmatpush1.msra.mxu0 0.0
      %1504 = vmatprep.mubr.f32.mxu0 0.0
      %1505 = vmatmul.mubr.f32.gmra.mrb[0].mxu0 %v1426
      %v1506 = vpop.f32.mrb[0].mxu0
      %v1507 = vadd.f32 0.0, %v1506
      %v1508 = vpop.f32.mrb[0].mxu0
      %1509 = vmatprep.mubr.f32.mxu0 0.0
      %1510 = vmatmul.mubr.f32.gmra.mrb[0].mxu0 %v1429
      %v1511 = vpop.f32.mrb[0].mxu0
      %v1512 = vadd.f32 0.0, %v1511
      %v1513 = vpop.f32.mrb[0].mxu0
      %1514 = vmatprep.mubr.f32.mxu0 0.0
      %1515 = vmatmul.mubr.f32.gmra.mrb[0].mxu0 %v1432
      %v1516 = vpop.f32.mrb[0].mxu0
      %v1517 = vadd.f32 0.0, %v1516
      %v1518 = vpop.f32.mrb[0].mxu0
      %1519 = vmatprep.mubr.f32.mxu0 0.0
      %1520 = vmatmul.mubr.f32.gmra.mrb[0].mxu0 %v1435
      %v1521 = vpop.f32.mrb[0].mxu0
      %v1522 = vadd.f32 0.0, %v1521
      %v1523 = vpop.f32.mrb[0].mxu0
      %1524 = vmatprep.mubr.f32.mxu0 0.0
      %1525 = vmatmul.mubr.f32.gmra.mrb[0].mxu0 %v1438
      %v1526 = vpop.f32.mrb[0].mxu0
      %v1527 = vadd.f32 0.0, %v1526
      %v1528 = vpop.f32.mrb[0].mxu0
      %1529 = vdwg.mxu0
      %v1530 = vadd.f32 %v1413, %v1507
      %v1531 = vadd.f32 %v1414, %v1512
      %v1532 = vadd.f32 %v1415, %v1517
      %v1533 = vadd.f32 %v1416, %v1522
      %v1534 = vadd.f32 %v1417, %v1527
      %v1535 = vld [vmem:[#allocation2 + $0xf] sm:$0xff]
      %v1536 = vld [vmem:[#allocation2 + $0x17] sm:$0xff]
      %v1537 = vld [vmem:[#allocation2 + $0x1f] sm:$0xff]
      %v1538 = vld [vmem:[#allocation2 + $0x27] sm:$0xff]
      %v1539 = vld [vmem:[#allocation2 + $0x2f] sm:$0x1]
      %s1540 = scalar_lea.vmem %s4, 56
      %v1541 = vld [vmem:[%s1540] sm:$0xff]
      %v1543 = vsel %vm718, %v1535, 0
      %v1546 = vsel %vm718, %v1536, 0
      %v1549 = vsel %vm718, %v1537, 0
      %v1552 = vsel %vm718, %v1538, 0
      %v1555 = vsel %vm718, %v1539, 0
      %1557 = vmatprep.subr.mxu0 0.0
      %1558 = vmatpush1.msra.mxu0 %v1541
      %1559 = vmatprep.subr.mxu0 0.0
      %1560 = vmatpush1.msra.mxu0 0.0
      %1561 = vmatprep.subr.mxu0 0.0
      %1562 = vmatpush1.msra.mxu0 0.0
      %1563 = vmatprep.subr.mxu0 0.0
      %1564 = vmatpush1.msra.mxu0 0.0
      %1565 = vmatprep.subr.mxu0 0.0
      %1566 = vmatpush1.msra.mxu0 0.0
      %1567 = vmatprep.subr.mxu0 0.0
      %1568 = vmatpush1.msra.mxu0 0.0
      %1569 = vmatprep.subr.mxu0 0.0
      %1570 = vmatpush1.msra.mxu0 0.0
      %1571 = vmatprep.subr.mxu0 0.0
      %1572 = vmatpush1.msra.mxu0 0.0
      %1573 = vmatprep.subr.mxu0 0.0
      %1574 = vmatpush1.msra.mxu0 0.0
      %1575 = vmatprep.subr.mxu0 0.0
      %1576 = vmatpush1.msra.mxu0 0.0
      %1577 = vmatprep.subr.mxu0 0.0
      %1578 = vmatpush1.msra.mxu0 0.0
      %1579 = vmatprep.subr.mxu0 0.0
      %1580 = vmatpush1.msra.mxu0 0.0
      %1581 = vmatprep.subr.mxu0 0.0
      %1582 = vmatpush1.msra.mxu0 0.0
      %1583 = vmatprep.subr.mxu0 0.0
      %1584 = vmatpush1.msra.mxu0 0.0
      %1585 = vmatprep.subr.mxu0 0.0
      %1586 = vmatpush1.msra.mxu0 0.0
      %1587 = vmatprep.subr.mxu0 0.0
      %1588 = vmatpush1.msra.mxu0 0.0
      %1589 = vmatprep.subr.mxu0 0.0
      %1590 = vmatpush1.msra.mxu0 0.0
      %1591 = vmatprep.subr.mxu0 0.0
      %1592 = vmatpush1.msra.mxu0 0.0
      %1593 = vmatprep.subr.mxu0 0.0
      %1594 = vmatpush1.msra.mxu0 0.0
      %1595 = vmatprep.subr.mxu0 0.0
      %1596 = vmatpush1.msra.mxu0 0.0
      %1597 = vmatprep.subr.mxu0 0.0
      %1598 = vmatpush1.msra.mxu0 0.0
      %1599 = vmatprep.subr.mxu0 0.0
      %1600 = vmatpush1.msra.mxu0 0.0
      %1601 = vmatprep.subr.mxu0 0.0
      %1602 = vmatpush1.msra.mxu0 0.0
      %1603 = vmatprep.subr.mxu0 0.0
      %1604 = vmatpush1.msra.mxu0 0.0
      %1605 = vmatprep.subr.mxu0 0.0
      %1606 = vmatpush1.msra.mxu0 0.0
      %1607 = vmatprep.subr.mxu0 0.0
      %1608 = vmatpush1.msra.mxu0 0.0
      %1609 = vmatprep.subr.mxu0 0.0
      %1610 = vmatpush1.msra.mxu0 0.0
      %1611 = vmatprep.subr.mxu0 0.0
      %1612 = vmatpush1.msra.mxu0 0.0
      %1613 = vmatprep.subr.mxu0 0.0
      %1614 = vmatpush1.msra.mxu0 0.0
      %1615 = vmatprep.subr.mxu0 0.0
      %1616 = vmatpush1.msra.mxu0 0.0
      %1617 = vmatprep.subr.mxu0 0.0
      %1618 = vmatpush1.msra.mxu0 0.0
      %1619 = vmatprep.subr.mxu0 0.0
      %1620 = vmatpush1.msra.mxu0 0.0
      %1621 = vmatprep.mubr.f32.mxu0 0.0
      %1622 = vmatmul.mubr.f32.gmra.mrb[0].mxu0 %v1543
      %v1623 = vpop.f32.mrb[0].mxu0
      %v1624 = vadd.f32 0.0, %v1623
      %v1625 = vpop.f32.mrb[0].mxu0
      %1626 = vmatprep.mubr.f32.mxu0 0.0
      %1627 = vmatmul.mubr.f32.gmra.mrb[0].mxu0 %v1546
      %v1628 = vpop.f32.mrb[0].mxu0
      %v1629 = vadd.f32 0.0, %v1628
      %v1630 = vpop.f32.mrb[0].mxu0
      %1631 = vmatprep.mubr.f32.mxu0 0.0
      %1632 = vmatmul.mubr.f32.gmra.mrb[0].mxu0 %v1549
      %v1633 = vpop.f32.mrb[0].mxu0
      %v1634 = vadd.f32 0.0, %v1633
      %v1635 = vpop.f32.mrb[0].mxu0
      %1636 = vmatprep.mubr.f32.mxu0 0.0
      %1637 = vmatmul.mubr.f32.gmra.mrb[0].mxu0 %v1552
      %v1638 = vpop.f32.mrb[0].mxu0
      %v1639 = vadd.f32 0.0, %v1638
      %v1640 = vpop.f32.mrb[0].mxu0
      %1641 = vmatprep.mubr.f32.mxu0 0.0
      %1642 = vmatmul.mubr.f32.gmra.mrb[0].mxu0 %v1555
      %v1643 = vpop.f32.mrb[0].mxu0
      %v1644 = vadd.f32 0.0, %v1643
      %v1645 = vpop.f32.mrb[0].mxu0
      %1646 = vdwg.mxu0
      %v1647 = vadd.f32 %v1530, %v1624
      %v1648 = vadd.f32 %v1531, %v1629
      %v1649 = vadd.f32 %v1532, %v1634
      %v1650 = vadd.f32 %v1533, %v1639
      %v1651 = vadd.f32 %v1534, %v1644
      %v1652 = vld [vmem:[#allocation2 + $0x10] sm:$0xff]
      %v1653 = vld [vmem:[#allocation2 + $0x18] sm:$0xff]
      %v1654 = vld [vmem:[#allocation2 + $0x20] sm:$0xff]
      %v1655 = vld [vmem:[#allocation2 + $0x28] sm:$0xff]
      %v1656 = vld [vmem:[#allocation2 + $0x30] sm:$0x1]
      %s1657 = scalar_lea.vmem %s4, 64
      %v1658 = vld [vmem:[%s1657] sm:$0xff]
      %v1660 = vsel %vm718, %v1652, 0
      %v1663 = vsel %vm718, %v1653, 0
      %v1666 = vsel %vm718, %v1654, 0
      %v1669 = vsel %vm718, %v1655, 0
      %v1672 = vsel %vm718, %v1656, 0
      %1674 = vmatprep.subr.mxu0 0.0
      %1675 = vmatpush1.msra.mxu0 %v1658
      %1676 = vmatprep.subr.mxu0 0.0
      %1677 = vmatpush1.msra.mxu0 0.0
      %1678 = vmatprep.subr.mxu0 0.0
      %1679 = vmatpush1.msra.mxu0 0.0
      %1680 = vmatprep.subr.mxu0 0.0
      %1681 = vmatpush1.msra.mxu0 0.0
      %1682 = vmatprep.subr.mxu0 0.0
      %1683 = vmatpush1.msra.mxu0 0.0
      %1684 = vmatprep.subr.mxu0 0.0
      %1685 = vmatpush1.msra.mxu0 0.0
      %1686 = vmatprep.subr.mxu0 0.0
      %1687 = vmatpush1.msra.mxu0 0.0
      %1688 = vmatprep.subr.mxu0 0.0
      %1689 = vmatpush1.msra.mxu0 0.0
      %1690 = vmatprep.subr.mxu0 0.0
      %1691 = vmatpush1.msra.mxu0 0.0
      %1692 = vmatprep.subr.mxu0 0.0
      %1693 = vmatpush1.msra.mxu0 0.0
      %1694 = vmatprep.subr.mxu0 0.0
      %1695 = vmatpush1.msra.mxu0 0.0
      %1696 = vmatprep.subr.mxu0 0.0
      %1697 = vmatpush1.msra.mxu0 0.0
      %1698 = vmatprep.subr.mxu0 0.0
      %1699 = vmatpush1.msra.mxu0 0.0
      %1700 = vmatprep.subr.mxu0 0.0
      %1701 = vmatpush1.msra.mxu0 0.0
      %1702 = vmatprep.subr.mxu0 0.0
      %1703 = vmatpush1.msra.mxu0 0.0
      %1704 = vmatprep.subr.mxu0 0.0
      %1705 = vmatpush1.msra.mxu0 0.0
      %1706 = vmatprep.subr.mxu0 0.0
      %1707 = vmatpush1.msra.mxu0 0.0
      %1708 = vmatprep.subr.mxu0 0.0
      %1709 = vmatpush1.msra.mxu0 0.0
      %1710 = vmatprep.subr.mxu0 0.0
      %1711 = vmatpush1.msra.mxu0 0.0
      %1712 = vmatprep.subr.mxu0 0.0
      %1713 = vmatpush1.msra.mxu0 0.0
      %1714 = vmatprep.subr.mxu0 0.0
      %1715 = vmatpush1.msra.mxu0 0.0
      %1716 = vmatprep.subr.mxu0 0.0
      %1717 = vmatpush1.msra.mxu0 0.0
      %1718 = vmatprep.subr.mxu0 0.0
      %1719 = vmatpush1.msra.mxu0 0.0
      %1720 = vmatprep.subr.mxu0 0.0
      %1721 = vmatpush1.msra.mxu0 0.0
      %1722 = vmatprep.subr.mxu0 0.0
      %1723 = vmatpush1.msra.mxu0 0.0
      %1724 = vmatprep.subr.mxu0 0.0
      %1725 = vmatpush1.msra.mxu0 0.0
      %1726 = vmatprep.subr.mxu0 0.0
      %1727 = vmatpush1.msra.mxu0 0.0
      %1728 = vmatprep.subr.mxu0 0.0
      %1729 = vmatpush1.msra.mxu0 0.0
      %1730 = vmatprep.subr.mxu0 0.0
      %1731 = vmatpush1.msra.mxu0 0.0
      %1732 = vmatprep.subr.mxu0 0.0
      %1733 = vmatpush1.msra.mxu0 0.0
      %1734 = vmatprep.subr.mxu0 0.0
      %1735 = vmatpush1.msra.mxu0 0.0
      %1736 = vmatprep.subr.mxu0 0.0
      %1737 = vmatpush1.msra.mxu0 0.0
      %1738 = vmatprep.mubr.f32.mxu0 0.0
      %1739 = vmatmul.mubr.f32.gmra.mrb[0].mxu0 %v1660
      %v1740 = vpop.f32.mrb[0].mxu0
      %v1741 = vadd.f32 0.0, %v1740
      %v1742 = vpop.f32.mrb[0].mxu0
      %1743 = vmatprep.mubr.f32.mxu0 0.0
      %1744 = vmatmul.mubr.f32.gmra.mrb[0].mxu0 %v1663
      %v1745 = vpop.f32.mrb[0].mxu0
      %v1746 = vadd.f32 0.0, %v1745
      %v1747 = vpop.f32.mrb[0].mxu0
      %1748 = vmatprep.mubr.f32.mxu0 0.0
      %1749 = vmatmul.mubr.f32.gmra.mrb[0].mxu0 %v1666
      %v1750 = vpop.f32.mrb[0].mxu0
      %v1751 = vadd.f32 0.0, %v1750
      %v1752 = vpop.f32.mrb[0].mxu0
      %1753 = vmatprep.mubr.f32.mxu0 0.0
      %1754 = vmatmul.mubr.f32.gmra.mrb[0].mxu0 %v1669
      %v1755 = vpop.f32.mrb[0].mxu0
      %v1756 = vadd.f32 0.0, %v1755
      %v1757 = vpop.f32.mrb[0].mxu0
      %1758 = vmatprep.mubr.f32.mxu0 0.0
      %1759 = vmatmul.mubr.f32.gmra.mrb[0].mxu0 %v1672
      %v1760 = vpop.f32.mrb[0].mxu0
      %v1761 = vadd.f32 0.0, %v1760
      %v1762 = vpop.f32.mrb[0].mxu0
      %1763 = vdwg.mxu0
      %v1764 = vadd.f32 %v1647, %v1741
      %v1765 = vadd.f32 %v1648, %v1746
      %v1766 = vadd.f32 %v1649, %v1751
      %v1767 = vadd.f32 %v1650, %v1756
      %v1768 = vadd.f32 %v1651, %v1761
      %v1769 = vld [vmem:[%s5] sm:$0x1]
      %v1771 = vlaneseq
      %v1772 = vshrl.u32 %v1771, 7
      %v1773 = vsub.s32 0, %v1772
      %v1774 = vrot.slane %v1769, %v1773
      %v1776 = vadd.f32 %v1764, %v1774
      %v1777 = vadd.f32 %v1765, %v1774
      %v1778 = vadd.f32 %v1766, %v1774
      %v1779 = vadd.f32 %v1767, %v1774
      %v1780 = vadd.f32 %v1768, %v1774
      %v1781 = vmax.f32 %v1776, 0.0
      %v1782 = vmax.f32 %v1777, 0.0
      %v1783 = vmax.f32 %v1778, 0.0
      %v1784 = vmax.f32 %v1779, 0.0
      %v1785 = vmax.f32 %v1780, 0.0
      %1786 = vst.msk [vmem:[#allocation3] sm:$0xff] %vm718, %v1781
      %1787 = vst.msk [vmem:[#allocation3 + $0x8] sm:$0xff] %vm718, %v1782
      %1788 = vst.msk [vmem:[#allocation3 + $0x10] sm:$0xff] %vm718, %v1783
      %1789 = vst.msk [vmem:[#allocation3 + $0x18] sm:$0xff] %vm718, %v1784
      %1790 = vst.msk [vmem:[#allocation3 + $0x20] sm:$0x1] %vm725, %v1785
      %v1791 = vld [vmem:[#allocation3] sm:$0x1]
      %v1792 = vld [vmem:[%s6] sm:$0xff]
      %v1793 = vld [vmem:[#allocation3 + $0x1] sm:$0x1]
      %s1794 = scalar_lea.vmem %s6, 8
      %v1795 = vld [vmem:[%s1794] sm:$0xff]
      %v1797 = vsel %vm718, %v1793, 0
      %1799 = vmatprep.subr.mxu0 0.0
      %1800 = vmatpush1.msra.mxu0 %v1795
      %1801 = vmatprep.subr.mxu0 0.0
      %1802 = vmatpush1.msra.mxu0 0.0
      %1803 = vmatprep.subr.mxu0 0.0
      %1804 = vmatpush1.msra.mxu0 0.0
      %1805 = vmatprep.subr.mxu0 0.0
      %1806 = vmatpush1.msra.mxu0 0.0
      %1807 = vmatprep.subr.mxu0 0.0
      %1808 = vmatpush1.msra.mxu0 0.0
      %1809 = vmatprep.subr.mxu0 0.0
      %1810 = vmatpush1.msra.mxu0 0.0
      %1811 = vmatprep.subr.mxu0 0.0
      %1812 = vmatpush1.msra.mxu0 0.0
      %1813 = vmatprep.subr.mxu0 0.0
      %1814 = vmatpush1.msra.mxu0 0.0
      %1815 = vmatprep.subr.mxu0 0.0
      %1816 = vmatpush1.msra.mxu0 0.0
      %1817 = vmatprep.subr.mxu0 0.0
      %1818 = vmatpush1.msra.mxu0 0.0
      %1819 = vmatprep.subr.mxu0 0.0
      %1820 = vmatpush1.msra.mxu0 0.0
      %1821 = vmatprep.subr.mxu0 0.0
      %1822 = vmatpush1.msra.mxu0 0.0
      %1823 = vmatprep.subr.mxu0 0.0
      %1824 = vmatpush1.msra.mxu0 0.0
      %1825 = vmatprep.subr.mxu0 0.0
      %1826 = vmatpush1.msra.mxu0 0.0
      %1827 = vmatprep.subr.mxu0 0.0
      %1828 = vmatpush1.msra.mxu0 0.0
      %1829 = vmatprep.subr.mxu0 0.0
      %1830 = vmatpush1.msra.mxu0 0.0
      %1831 = vmatprep.subr.mxu0 0.0
      %1832 = vmatpush1.msra.mxu0 0.0
      %1833 = vmatprep.subr.mxu0 0.0
      %1834 = vmatpush1.msra.mxu0 0.0
      %1835 = vmatprep.subr.mxu0 0.0
      %1836 = vmatpush1.msra.mxu0 0.0
      %1837 = vmatprep.subr.mxu0 0.0
      %1838 = vmatpush1.msra.mxu0 0.0
      %1839 = vmatprep.subr.mxu0 0.0
      %1840 = vmatpush1.msra.mxu0 0.0
      %1841 = vmatprep.subr.mxu0 0.0
      %1842 = vmatpush1.msra.mxu0 0.0
      %1843 = vmatprep.subr.mxu0 0.0
      %1844 = vmatpush1.msra.mxu0 0.0
      %1845 = vmatprep.subr.mxu0 0.0
      %1846 = vmatpush1.msra.mxu0 0.0
      %1847 = vmatprep.subr.mxu0 0.0
      %1848 = vmatpush1.msra.mxu0 0.0
      %1849 = vmatprep.subr.mxu0 0.0
      %1850 = vmatpush1.msra.mxu0 0.0
      %1851 = vmatprep.subr.mxu0 0.0
      %1852 = vmatpush1.msra.mxu0 0.0
      %1853 = vmatprep.subr.mxu0 0.0
      %1854 = vmatpush1.msra.mxu0 0.0
      %1855 = vmatprep.subr.mxu0 0.0
      %1856 = vmatpush1.msra.mxu0 0.0
      %1857 = vmatprep.subr.mxu0 0.0
      %1858 = vmatpush1.msra.mxu0 0.0
      %1859 = vmatprep.subr.mxu0 0.0
      %1860 = vmatpush1.msra.mxu0 0.0
      %1861 = vmatprep.subr.mxu0 0.0
      %1862 = vmatpush1.msra.mxu0 0.0
      %1863 = vmatprep.mubr.f32.mxu0 0.0
      %1864 = vmatmul.mubr.f32.gmra.mrb[0].mxu0 %v1797
      %v1865 = vpop.f32.mrb[0].mxu0
      %v1866 = vadd.f32 0.0, %v1865
      %v1867 = vpop.f32.mrb[0].mxu0
      %1868 = vdwg.mxu0
      %v1870 = vsel %vm718, %v1791, 0
      %1872 = vmatprep.subr.mxu0 0.0
      %1873 = vmatpush1.msra.mxu0 %v1792
      %1874 = vmatprep.subr.mxu0 0.0
      %1875 = vmatpush1.msra.mxu0 0.0
      %1876 = vmatprep.subr.mxu0 0.0
      %1877 = vmatpush1.msra.mxu0 0.0
      %1878 = vmatprep.subr.mxu0 0.0
      %1879 = vmatpush1.msra.mxu0 0.0
      %1880 = vmatprep.subr.mxu0 0.0
      %1881 = vmatpush1.msra.mxu0 0.0
      %1882 = vmatprep.subr.mxu0 0.0
      %1883 = vmatpush1.msra.mxu0 0.0
      %1884 = vmatprep.subr.mxu0 0.0
      %1885 = vmatpush1.msra.mxu0 0.0
      %1886 = vmatprep.subr.mxu0 0.0
      %1887 = vmatpush1.msra.mxu0 0.0
      %1888 = vmatprep.subr.mxu0 0.0
      %1889 = vmatpush1.msra.mxu0 0.0
      %1890 = vmatprep.subr.mxu0 0.0
      %1891 = vmatpush1.msra.mxu0 0.0
      %1892 = vmatprep.subr.mxu0 0.0
      %1893 = vmatpush1.msra.mxu0 0.0
      %1894 = vmatprep.subr.mxu0 0.0
      %1895 = vmatpush1.msra.mxu0 0.0
      %1896 = vmatprep.subr.mxu0 0.0
      %1897 = vmatpush1.msra.mxu0 0.0
      %1898 = vmatprep.subr.mxu0 0.0
      %1899 = vmatpush1.msra.mxu0 0.0
      %1900 = vmatprep.subr.mxu0 0.0
      %1901 = vmatpush1.msra.mxu0 0.0
      %1902 = vmatprep.subr.mxu0 0.0
      %1903 = vmatpush1.msra.mxu0 0.0
      %1904 = vmatprep.subr.mxu0 0.0
      %1905 = vmatpush1.msra.mxu0 0.0
      %1906 = vmatprep.subr.mxu0 0.0
      %1907 = vmatpush1.msra.mxu0 0.0
      %1908 = vmatprep.subr.mxu0 0.0
      %1909 = vmatpush1.msra.mxu0 0.0
      %1910 = vmatprep.subr.mxu0 0.0
      %1911 = vmatpush1.msra.mxu0 0.0
      %1912 = vmatprep.subr.mxu0 0.0
      %1913 = vmatpush1.msra.mxu0 0.0
      %1914 = vmatprep.subr.mxu0 0.0
      %1915 = vmatpush1.msra.mxu0 0.0
      %1916 = vmatprep.subr.mxu0 0.0
      %1917 = vmatpush1.msra.mxu0 0.0
      %1918 = vmatprep.subr.mxu0 0.0
      %1919 = vmatpush1.msra.mxu0 0.0
      %1920 = vmatprep.subr.mxu0 0.0
      %1921 = vmatpush1.msra.mxu0 0.0
      %1922 = vmatprep.subr.mxu0 0.0
      %1923 = vmatpush1.msra.mxu0 0.0
      %1924 = vmatprep.subr.mxu0 0.0
      %1925 = vmatpush1.msra.mxu0 0.0
      %1926 = vmatprep.subr.mxu0 0.0
      %1927 = vmatpush1.msra.mxu0 0.0
      %1928 = vmatprep.subr.mxu0 0.0
      %1929 = vmatpush1.msra.mxu0 0.0
      %1930 = vmatprep.subr.mxu0 0.0
      %1931 = vmatpush1.msra.mxu0 0.0
      %1932 = vmatprep.subr.mxu0 0.0
      %1933 = vmatpush1.msra.mxu0 0.0
      %1934 = vmatprep.subr.mxu0 0.0
      %1935 = vmatpush1.msra.mxu0 0.0
      %1936 = vmatprep.mubr.f32.mxu0 0.0
      %1937 = vmatmul.mubr.f32.gmra.mrb[0].mxu0 %v1870
      %v1938 = vpop.f32.mrb[0].mxu0
      %v1939 = vadd.f32 %v1866, %v1938
      %v1940 = vpop.f32.mrb[0].mxu0
      %1941 = vdwg.mxu0
      %v1942 = vld [vmem:[#allocation3 + $0x2] sm:$0x1]
      %s1943 = scalar_lea.vmem %s6, 16
      %v1944 = vld [vmem:[%s1943] sm:$0xff]
      %v1946 = vsel %vm718, %v1942, 0
      %1948 = vmatprep.subr.mxu0 0.0
      %1949 = vmatpush1.msra.mxu0 %v1944
      %1950 = vmatprep.subr.mxu0 0.0
      %1951 = vmatpush1.msra.mxu0 0.0
      %1952 = vmatprep.subr.mxu0 0.0
      %1953 = vmatpush1.msra.mxu0 0.0
      %1954 = vmatprep.subr.mxu0 0.0
      %1955 = vmatpush1.msra.mxu0 0.0
      %1956 = vmatprep.subr.mxu0 0.0
      %1957 = vmatpush1.msra.mxu0 0.0
      %1958 = vmatprep.subr.mxu0 0.0
      %1959 = vmatpush1.msra.mxu0 0.0
      %1960 = vmatprep.subr.mxu0 0.0
      %1961 = vmatpush1.msra.mxu0 0.0
      %1962 = vmatprep.subr.mxu0 0.0
      %1963 = vmatpush1.msra.mxu0 0.0
      %1964 = vmatprep.subr.mxu0 0.0
      %1965 = vmatpush1.msra.mxu0 0.0
      %1966 = vmatprep.subr.mxu0 0.0
      %1967 = vmatpush1.msra.mxu0 0.0
      %1968 = vmatprep.subr.mxu0 0.0
      %1969 = vmatpush1.msra.mxu0 0.0
      %1970 = vmatprep.subr.mxu0 0.0
      %1971 = vmatpush1.msra.mxu0 0.0
      %1972 = vmatprep.subr.mxu0 0.0
      %1973 = vmatpush1.msra.mxu0 0.0
      %1974 = vmatprep.subr.mxu0 0.0
      %1975 = vmatpush1.msra.mxu0 0.0
      %1976 = vmatprep.subr.mxu0 0.0
      %1977 = vmatpush1.msra.mxu0 0.0
      %1978 = vmatprep.subr.mxu0 0.0
      %1979 = vmatpush1.msra.mxu0 0.0
      %1980 = vmatprep.subr.mxu0 0.0
      %1981 = vmatpush1.msra.mxu0 0.0
      %1982 = vmatprep.subr.mxu0 0.0
      %1983 = vmatpush1.msra.mxu0 0.0
      %1984 = vmatprep.subr.mxu0 0.0
      %1985 = vmatpush1.msra.mxu0 0.0
      %1986 = vmatprep.subr.mxu0 0.0
      %1987 = vmatpush1.msra.mxu0 0.0
      %1988 = vmatprep.subr.mxu0 0.0
      %1989 = vmatpush1.msra.mxu0 0.0
      %1990 = vmatprep.subr.mxu0 0.0
      %1991 = vmatpush1.msra.mxu0 0.0
      %1992 = vmatprep.subr.mxu0 0.0
      %1993 = vmatpush1.msra.mxu0 0.0
      %1994 = vmatprep.subr.mxu0 0.0
      %1995 = vmatpush1.msra.mxu0 0.0
      %1996 = vmatprep.subr.mxu0 0.0
      %1997 = vmatpush1.msra.mxu0 0.0
      %1998 = vmatprep.subr.mxu0 0.0
      %1999 = vmatpush1.msra.mxu0 0.0
      %2000 = vmatprep.subr.mxu0 0.0
      %2001 = vmatpush1.msra.mxu0 0.0
      %2002 = vmatprep.subr.mxu0 0.0
      %2003 = vmatpush1.msra.mxu0 0.0
      %2004 = vmatprep.subr.mxu0 0.0
      %2005 = vmatpush1.msra.mxu0 0.0
      %2006 = vmatprep.subr.mxu0 0.0
      %2007 = vmatpush1.msra.mxu0 0.0
      %2008 = vmatprep.subr.mxu0 0.0
      %2009 = vmatpush1.msra.mxu0 0.0
      %2010 = vmatprep.subr.mxu0 0.0
      %2011 = vmatpush1.msra.mxu0 0.0
      %2012 = vmatprep.mubr.f32.mxu0 0.0
      %2013 = vmatmul.mubr.f32.gmra.mrb[0].mxu0 %v1946
      %v2014 = vpop.f32.mrb[0].mxu0
      %v2015 = vadd.f32 0.0, %v2014
      %v2016 = vpop.f32.mrb[0].mxu0
      %2017 = vdwg.mxu0
      %v2018 = vadd.f32 %v1939, %v2015
      %v2019 = vld [vmem:[#allocation3 + $0x3] sm:$0x1]
      %s2020 = scalar_lea.vmem %s6, 24
      %v2021 = vld [vmem:[%s2020] sm:$0xff]
      %v2023 = vsel %vm718, %v2019, 0
      %2025 = vmatprep.subr.mxu0 0.0
      %2026 = vmatpush1.msra.mxu0 %v2021
      %2027 = vmatprep.subr.mxu0 0.0
      %2028 = vmatpush1.msra.mxu0 0.0
      %2029 = vmatprep.subr.mxu0 0.0
      %2030 = vmatpush1.msra.mxu0 0.0
      %2031 = vmatprep.subr.mxu0 0.0
      %2032 = vmatpush1.msra.mxu0 0.0
      %2033 = vmatprep.subr.mxu0 0.0
      %2034 = vmatpush1.msra.mxu0 0.0
      %2035 = vmatprep.subr.mxu0 0.0
      %2036 = vmatpush1.msra.mxu0 0.0
      %2037 = vmatprep.subr.mxu0 0.0
      %2038 = vmatpush1.msra.mxu0 0.0
      %2039 = vmatprep.subr.mxu0 0.0
      %2040 = vmatpush1.msra.mxu0 0.0
      %2041 = vmatprep.subr.mxu0 0.0
      %2042 = vmatpush1.msra.mxu0 0.0
      %2043 = vmatprep.subr.mxu0 0.0
      %2044 = vmatpush1.msra.mxu0 0.0
      %2045 = vmatprep.subr.mxu0 0.0
      %2046 = vmatpush1.msra.mxu0 0.0
      %2047 = vmatprep.subr.mxu0 0.0
      %2048 = vmatpush1.msra.mxu0 0.0
      %2049 = vmatprep.subr.mxu0 0.0
      %2050 = vmatpush1.msra.mxu0 0.0
      %2051 = vmatprep.subr.mxu0 0.0
      %2052 = vmatpush1.msra.mxu0 0.0
      %2053 = vmatprep.subr.mxu0 0.0
      %2054 = vmatpush1.msra.mxu0 0.0
      %2055 = vmatprep.subr.mxu0 0.0
      %2056 = vmatpush1.msra.mxu0 0.0
      %2057 = vmatprep.subr.mxu0 0.0
      %2058 = vmatpush1.msra.mxu0 0.0
      %2059 = vmatprep.subr.mxu0 0.0
      %2060 = vmatpush1.msra.mxu0 0.0
      %2061 = vmatprep.subr.mxu0 0.0
      %2062 = vmatpush1.msra.mxu0 0.0
      %2063 = vmatprep.subr.mxu0 0.0
      %2064 = vmatpush1.msra.mxu0 0.0
      %2065 = vmatprep.subr.mxu0 0.0
      %2066 = vmatpush1.msra.mxu0 0.0
      %2067 = vmatprep.subr.mxu0 0.0
      %2068 = vmatpush1.msra.mxu0 0.0
      %2069 = vmatprep.subr.mxu0 0.0
      %2070 = vmatpush1.msra.mxu0 0.0
      %2071 = vmatprep.subr.mxu0 0.0
      %2072 = vmatpush1.msra.mxu0 0.0
      %2073 = vmatprep.subr.mxu0 0.0
      %2074 = vmatpush1.msra.mxu0 0.0
      %2075 = vmatprep.subr.mxu0 0.0
      %2076 = vmatpush1.msra.mxu0 0.0
      %2077 = vmatprep.subr.mxu0 0.0
      %2078 = vmatpush1.msra.mxu0 0.0
      %2079 = vmatprep.subr.mxu0 0.0
      %2080 = vmatpush1.msra.mxu0 0.0
      %2081 = vmatprep.subr.mxu0 0.0
      %2082 = vmatpush1.msra.mxu0 0.0
      %2083 = vmatprep.subr.mxu0 0.0
      %2084 = vmatpush1.msra.mxu0 0.0
      %2085 = vmatprep.subr.mxu0 0.0
      %2086 = vmatpush1.msra.mxu0 0.0
      %2087 = vmatprep.subr.mxu0 0.0
      %2088 = vmatpush1.msra.mxu0 0.0
      %2089 = vmatprep.mubr.f32.mxu0 0.0
      %2090 = vmatmul.mubr.f32.gmra.mrb[0].mxu0 %v2023
      %v2091 = vpop.f32.mrb[0].mxu0
      %v2092 = vadd.f32 0.0, %v2091
      %v2093 = vpop.f32.mrb[0].mxu0
      %2094 = vdwg.mxu0
      %v2095 = vadd.f32 %v2018, %v2092
      %v2096 = vld [vmem:[#allocation3 + $0x4] sm:$0x1]
      %s2097 = scalar_lea.vmem %s6, 32
      %v2098 = vld [vmem:[%s2097] sm:$0xff]
      %v2100 = vsel %vm718, %v2096, 0
      %2102 = vmatprep.subr.mxu0 0.0
      %2103 = vmatpush1.msra.mxu0 %v2098
      %2104 = vmatprep.subr.mxu0 0.0
      %2105 = vmatpush1.msra.mxu0 0.0
      %2106 = vmatprep.subr.mxu0 0.0
      %2107 = vmatpush1.msra.mxu0 0.0
      %2108 = vmatprep.subr.mxu0 0.0
      %2109 = vmatpush1.msra.mxu0 0.0
      %2110 = vmatprep.subr.mxu0 0.0
      %2111 = vmatpush1.msra.mxu0 0.0
      %2112 = vmatprep.subr.mxu0 0.0
      %2113 = vmatpush1.msra.mxu0 0.0
      %2114 = vmatprep.subr.mxu0 0.0
      %2115 = vmatpush1.msra.mxu0 0.0
      %2116 = vmatprep.subr.mxu0 0.0
      %2117 = vmatpush1.msra.mxu0 0.0
      %2118 = vmatprep.subr.mxu0 0.0
      %2119 = vmatpush1.msra.mxu0 0.0
      %2120 = vmatprep.subr.mxu0 0.0
      %2121 = vmatpush1.msra.mxu0 0.0
      %2122 = vmatprep.subr.mxu0 0.0
      %2123 = vmatpush1.msra.mxu0 0.0
      %2124 = vmatprep.subr.mxu0 0.0
      %2125 = vmatpush1.msra.mxu0 0.0
      %2126 = vmatprep.subr.mxu0 0.0
      %2127 = vmatpush1.msra.mxu0 0.0
      %2128 = vmatprep.subr.mxu0 0.0
      %2129 = vmatpush1.msra.mxu0 0.0
      %2130 = vmatprep.subr.mxu0 0.0
      %2131 = vmatpush1.msra.mxu0 0.0
      %2132 = vmatprep.subr.mxu0 0.0
      %2133 = vmatpush1.msra.mxu0 0.0
      %2134 = vmatprep.subr.mxu0 0.0
      %2135 = vmatpush1.msra.mxu0 0.0
      %2136 = vmatprep.subr.mxu0 0.0
      %2137 = vmatpush1.msra.mxu0 0.0
      %2138 = vmatprep.subr.mxu0 0.0
      %2139 = vmatpush1.msra.mxu0 0.0
      %2140 = vmatprep.subr.mxu0 0.0
      %2141 = vmatpush1.msra.mxu0 0.0
      %2142 = vmatprep.subr.mxu0 0.0
      %2143 = vmatpush1.msra.mxu0 0.0
      %2144 = vmatprep.subr.mxu0 0.0
      %2145 = vmatpush1.msra.mxu0 0.0
      %2146 = vmatprep.subr.mxu0 0.0
      %2147 = vmatpush1.msra.mxu0 0.0
      %2148 = vmatprep.subr.mxu0 0.0
      %2149 = vmatpush1.msra.mxu0 0.0
      %2150 = vmatprep.subr.mxu0 0.0
      %2151 = vmatpush1.msra.mxu0 0.0
      %2152 = vmatprep.subr.mxu0 0.0
      %2153 = vmatpush1.msra.mxu0 0.0
      %2154 = vmatprep.subr.mxu0 0.0
      %2155 = vmatpush1.msra.mxu0 0.0
      %2156 = vmatprep.subr.mxu0 0.0
      %2157 = vmatpush1.msra.mxu0 0.0
      %2158 = vmatprep.subr.mxu0 0.0
      %2159 = vmatpush1.msra.mxu0 0.0
      %2160 = vmatprep.subr.mxu0 0.0
      %2161 = vmatpush1.msra.mxu0 0.0
      %2162 = vmatprep.subr.mxu0 0.0
      %2163 = vmatpush1.msra.mxu0 0.0
      %2164 = vmatprep.subr.mxu0 0.0
      %2165 = vmatpush1.msra.mxu0 0.0
      %2166 = vmatprep.mubr.f32.mxu0 0.0
      %2167 = vmatmul.mubr.f32.gmra.mrb[0].mxu0 %v2100
      %v2168 = vpop.f32.mrb[0].mxu0
      %v2169 = vadd.f32 0.0, %v2168
      %v2170 = vpop.f32.mrb[0].mxu0
      %2171 = vdwg.mxu0
      %v2172 = vadd.f32 %v2095, %v2169
      %v2173 = vld [vmem:[#allocation3 + $0x7] sm:$0x1]
      %s2174 = scalar_lea.vmem %s6, 40
      %v2175 = vld [vmem:[%s2174] sm:$0xff]
      %v2177 = vsel %vm718, %v2173, 0
      %2179 = vmatprep.subr.mxu0 0.0
      %2180 = vmatpush1.msra.mxu0 %v2175
      %2181 = vmatprep.subr.mxu0 0.0
      %2182 = vmatpush1.msra.mxu0 0.0
      %2183 = vmatprep.subr.mxu0 0.0
      %2184 = vmatpush1.msra.mxu0 0.0
      %2185 = vmatprep.subr.mxu0 0.0
      %2186 = vmatpush1.msra.mxu0 0.0
      %2187 = vmatprep.subr.mxu0 0.0
      %2188 = vmatpush1.msra.mxu0 0.0
      %2189 = vmatprep.subr.mxu0 0.0
      %2190 = vmatpush1.msra.mxu0 0.0
      %2191 = vmatprep.subr.mxu0 0.0
      %2192 = vmatpush1.msra.mxu0 0.0
      %2193 = vmatprep.subr.mxu0 0.0
      %2194 = vmatpush1.msra.mxu0 0.0
      %2195 = vmatprep.subr.mxu0 0.0
      %2196 = vmatpush1.msra.mxu0 0.0
      %2197 = vmatprep.subr.mxu0 0.0
      %2198 = vmatpush1.msra.mxu0 0.0
      %2199 = vmatprep.subr.mxu0 0.0
      %2200 = vmatpush1.msra.mxu0 0.0
      %2201 = vmatprep.subr.mxu0 0.0
      %2202 = vmatpush1.msra.mxu0 0.0
      %2203 = vmatprep.subr.mxu0 0.0
      %2204 = vmatpush1.msra.mxu0 0.0
      %2205 = vmatprep.subr.mxu0 0.0
      %2206 = vmatpush1.msra.mxu0 0.0
      %2207 = vmatprep.subr.mxu0 0.0
      %2208 = vmatpush1.msra.mxu0 0.0
      %2209 = vmatprep.subr.mxu0 0.0
      %2210 = vmatpush1.msra.mxu0 0.0
      %2211 = vmatprep.subr.mxu0 0.0
      %2212 = vmatpush1.msra.mxu0 0.0
      %2213 = vmatprep.subr.mxu0 0.0
      %2214 = vmatpush1.msra.mxu0 0.0
      %2215 = vmatprep.subr.mxu0 0.0
      %2216 = vmatpush1.msra.mxu0 0.0
      %2217 = vmatprep.subr.mxu0 0.0
      %2218 = vmatpush1.msra.mxu0 0.0
      %2219 = vmatprep.subr.mxu0 0.0
      %2220 = vmatpush1.msra.mxu0 0.0
      %2221 = vmatprep.subr.mxu0 0.0
      %2222 = vmatpush1.msra.mxu0 0.0
      %2223 = vmatprep.subr.mxu0 0.0
      %2224 = vmatpush1.msra.mxu0 0.0
      %2225 = vmatprep.subr.mxu0 0.0
      %2226 = vmatpush1.msra.mxu0 0.0
      %2227 = vmatprep.subr.mxu0 0.0
      %2228 = vmatpush1.msra.mxu0 0.0
      %2229 = vmatprep.subr.mxu0 0.0
      %2230 = vmatpush1.msra.mxu0 0.0
      %2231 = vmatprep.subr.mxu0 0.0
      %2232 = vmatpush1.msra.mxu0 0.0
      %2233 = vmatprep.subr.mxu0 0.0
      %2234 = vmatpush1.msra.mxu0 0.0
      %2235 = vmatprep.subr.mxu0 0.0
      %2236 = vmatpush1.msra.mxu0 0.0
      %2237 = vmatprep.subr.mxu0 0.0
      %2238 = vmatpush1.msra.mxu0 0.0
      %2239 = vmatprep.subr.mxu0 0.0
      %2240 = vmatpush1.msra.mxu0 0.0
      %2241 = vmatprep.subr.mxu0 0.0
      %2242 = vmatpush1.msra.mxu0 0.0
      %2243 = vmatprep.mubr.f32.mxu0 0.0
      %2244 = vmatmul.mubr.f32.gmra.mrb[0].mxu0 %v2177
      %v2245 = vpop.f32.mrb[0].mxu0
      %v2246 = vadd.f32 0.0, %v2245
      %v2247 = vpop.f32.mrb[0].mxu0
      %2248 = vdwg.mxu0
      %v2249 = vadd.f32 %v2172, %v2246
      %v2250 = vld [vmem:[#allocation3 + $0x8] sm:$0x1]
      %s2251 = scalar_lea.vmem %s6, 48
      %v2252 = vld [vmem:[%s2251] sm:$0xff]
      %v2254 = vsel %vm718, %v2250, 0
      %2256 = vmatprep.subr.mxu0 0.0
      %2257 = vmatpush1.msra.mxu0 %v2252
      %2258 = vmatprep.subr.mxu0 0.0
      %2259 = vmatpush1.msra.mxu0 0.0
      %2260 = vmatprep.subr.mxu0 0.0
      %2261 = vmatpush1.msra.mxu0 0.0
      %2262 = vmatprep.subr.mxu0 0.0
      %2263 = vmatpush1.msra.mxu0 0.0
      %2264 = vmatprep.subr.mxu0 0.0
      %2265 = vmatpush1.msra.mxu0 0.0
      %2266 = vmatprep.subr.mxu0 0.0
      %2267 = vmatpush1.msra.mxu0 0.0
      %2268 = vmatprep.subr.mxu0 0.0
      %2269 = vmatpush1.msra.mxu0 0.0
      %2270 = vmatprep.subr.mxu0 0.0
      %2271 = vmatpush1.msra.mxu0 0.0
      %2272 = vmatprep.subr.mxu0 0.0
      %2273 = vmatpush1.msra.mxu0 0.0
      %2274 = vmatprep.subr.mxu0 0.0
      %2275 = vmatpush1.msra.mxu0 0.0
      %2276 = vmatprep.subr.mxu0 0.0
      %2277 = vmatpush1.msra.mxu0 0.0
      %2278 = vmatprep.subr.mxu0 0.0
      %2279 = vmatpush1.msra.mxu0 0.0
      %2280 = vmatprep.subr.mxu0 0.0
      %2281 = vmatpush1.msra.mxu0 0.0
      %2282 = vmatprep.subr.mxu0 0.0
      %2283 = vmatpush1.msra.mxu0 0.0
      %2284 = vmatprep.subr.mxu0 0.0
      %2285 = vmatpush1.msra.mxu0 0.0
      %2286 = vmatprep.subr.mxu0 0.0
      %2287 = vmatpush1.msra.mxu0 0.0
      %2288 = vmatprep.subr.mxu0 0.0
      %2289 = vmatpush1.msra.mxu0 0.0
      %2290 = vmatprep.subr.mxu0 0.0
      %2291 = vmatpush1.msra.mxu0 0.0
      %2292 = vmatprep.subr.mxu0 0.0
      %2293 = vmatpush1.msra.mxu0 0.0
      %2294 = vmatprep.subr.mxu0 0.0
      %2295 = vmatpush1.msra.mxu0 0.0
      %2296 = vmatprep.subr.mxu0 0.0
      %2297 = vmatpush1.msra.mxu0 0.0
      %2298 = vmatprep.subr.mxu0 0.0
      %2299 = vmatpush1.msra.mxu0 0.0
      %2300 = vmatprep.subr.mxu0 0.0
      %2301 = vmatpush1.msra.mxu0 0.0
      %2302 = vmatprep.subr.mxu0 0.0
      %2303 = vmatpush1.msra.mxu0 0.0
      %2304 = vmatprep.subr.mxu0 0.0
      %2305 = vmatpush1.msra.mxu0 0.0
      %2306 = vmatprep.subr.mxu0 0.0
      %2307 = vmatpush1.msra.mxu0 0.0
      %2308 = vmatprep.subr.mxu0 0.0
      %2309 = vmatpush1.msra.mxu0 0.0
      %2310 = vmatprep.subr.mxu0 0.0
      %2311 = vmatpush1.msra.mxu0 0.0
      %2312 = vmatprep.subr.mxu0 0.0
      %2313 = vmatpush1.msra.mxu0 0.0
      %2314 = vmatprep.subr.mxu0 0.0
      %2315 = vmatpush1.msra.mxu0 0.0
      %2316 = vmatprep.subr.mxu0 0.0
      %2317 = vmatpush1.msra.mxu0 0.0
      %2318 = vmatprep.subr.mxu0 0.0
      %2319 = vmatpush1.msra.mxu0 0.0
      %2320 = vmatprep.mubr.f32.mxu0 0.0
      %2321 = vmatmul.mubr.f32.gmra.mrb[0].mxu0 %v2254
      %v2322 = vpop.f32.mrb[0].mxu0
      %v2323 = vadd.f32 0.0, %v2322
      %v2324 = vpop.f32.mrb[0].mxu0
      %2325 = vdwg.mxu0
      %v2326 = vadd.f32 %v2249, %v2323
      %v2327 = vld [vmem:[#allocation3 + $0x9] sm:$0x1]
      %s2328 = scalar_lea.vmem %s6, 56
      %v2329 = vld [vmem:[%s2328] sm:$0xff]
      %v2331 = vsel %vm718, %v2327, 0
      %2333 = vmatprep.subr.mxu0 0.0
      %2334 = vmatpush1.msra.mxu0 %v2329
      %2335 = vmatprep.subr.mxu0 0.0
      %2336 = vmatpush1.msra.mxu0 0.0
      %2337 = vmatprep.subr.mxu0 0.0
      %2338 = vmatpush1.msra.mxu0 0.0
      %2339 = vmatprep.subr.mxu0 0.0
      %2340 = vmatpush1.msra.mxu0 0.0
      %2341 = vmatprep.subr.mxu0 0.0
      %2342 = vmatpush1.msra.mxu0 0.0
      %2343 = vmatprep.subr.mxu0 0.0
      %2344 = vmatpush1.msra.mxu0 0.0
      %2345 = vmatprep.subr.mxu0 0.0
      %2346 = vmatpush1.msra.mxu0 0.0
      %2347 = vmatprep.subr.mxu0 0.0
      %2348 = vmatpush1.msra.mxu0 0.0
      %2349 = vmatprep.subr.mxu0 0.0
      %2350 = vmatpush1.msra.mxu0 0.0
      %2351 = vmatprep.subr.mxu0 0.0
      %2352 = vmatpush1.msra.mxu0 0.0
      %2353 = vmatprep.subr.mxu0 0.0
      %2354 = vmatpush1.msra.mxu0 0.0
      %2355 = vmatprep.subr.mxu0 0.0
      %2356 = vmatpush1.msra.mxu0 0.0
      %2357 = vmatprep.subr.mxu0 0.0
      %2358 = vmatpush1.msra.mxu0 0.0
      %2359 = vmatprep.subr.mxu0 0.0
      %2360 = vmatpush1.msra.mxu0 0.0
      %2361 = vmatprep.subr.mxu0 0.0
      %2362 = vmatpush1.msra.mxu0 0.0
      %2363 = vmatprep.subr.mxu0 0.0
      %2364 = vmatpush1.msra.mxu0 0.0
      %2365 = vmatprep.subr.mxu0 0.0
      %2366 = vmatpush1.msra.mxu0 0.0
      %2367 = vmatprep.subr.mxu0 0.0
      %2368 = vmatpush1.msra.mxu0 0.0
      %2369 = vmatprep.subr.mxu0 0.0
      %2370 = vmatpush1.msra.mxu0 0.0
      %2371 = vmatprep.subr.mxu0 0.0
      %2372 = vmatpush1.msra.mxu0 0.0
      %2373 = vmatprep.subr.mxu0 0.0
      %2374 = vmatpush1.msra.mxu0 0.0
      %2375 = vmatprep.subr.mxu0 0.0
      %2376 = vmatpush1.msra.mxu0 0.0
      %2377 = vmatprep.subr.mxu0 0.0
      %2378 = vmatpush1.msra.mxu0 0.0
      %2379 = vmatprep.subr.mxu0 0.0
      %2380 = vmatpush1.msra.mxu0 0.0
      %2381 = vmatprep.subr.mxu0 0.0
      %2382 = vmatpush1.msra.mxu0 0.0
      %2383 = vmatprep.subr.mxu0 0.0
      %2384 = vmatpush1.msra.mxu0 0.0
      %2385 = vmatprep.subr.mxu0 0.0
      %2386 = vmatpush1.msra.mxu0 0.0
      %2387 = vmatprep.subr.mxu0 0.0
      %2388 = vmatpush1.msra.mxu0 0.0
      %2389 = vmatprep.subr.mxu0 0.0
      %2390 = vmatpush1.msra.mxu0 0.0
      %2391 = vmatprep.subr.mxu0 0.0
      %2392 = vmatpush1.msra.mxu0 0.0
      %2393 = vmatprep.subr.mxu0 0.0
      %2394 = vmatpush1.msra.mxu0 0.0
      %2395 = vmatprep.subr.mxu0 0.0
      %2396 = vmatpush1.msra.mxu0 0.0
      %2397 = vmatprep.mubr.f32.mxu0 0.0
      %2398 = vmatmul.mubr.f32.gmra.mrb[0].mxu0 %v2331
      %v2399 = vpop.f32.mrb[0].mxu0
      %v2400 = vadd.f32 0.0, %v2399
      %v2401 = vpop.f32.mrb[0].mxu0
      %2402 = vdwg.mxu0
      %v2403 = vadd.f32 %v2326, %v2400
      %v2404 = vld [vmem:[#allocation3 + $0xa] sm:$0x1]
      %s2405 = scalar_lea.vmem %s6, 64
      %v2406 = vld [vmem:[%s2405] sm:$0xff]
      %v2408 = vsel %vm718, %v2404, 0
      %2410 = vmatprep.subr.mxu0 0.0
      %2411 = vmatpush1.msra.mxu0 %v2406
      %2412 = vmatprep.subr.mxu0 0.0
      %2413 = vmatpush1.msra.mxu0 0.0
      %2414 = vmatprep.subr.mxu0 0.0
      %2415 = vmatpush1.msra.mxu0 0.0
      %2416 = vmatprep.subr.mxu0 0.0
      %2417 = vmatpush1.msra.mxu0 0.0
      %2418 = vmatprep.subr.mxu0 0.0
      %2419 = vmatpush1.msra.mxu0 0.0
      %2420 = vmatprep.subr.mxu0 0.0
      %2421 = vmatpush1.msra.mxu0 0.0
      %2422 = vmatprep.subr.mxu0 0.0
      %2423 = vmatpush1.msra.mxu0 0.0
      %2424 = vmatprep.subr.mxu0 0.0
      %2425 = vmatpush1.msra.mxu0 0.0
      %2426 = vmatprep.subr.mxu0 0.0
      %2427 = vmatpush1.msra.mxu0 0.0
      %2428 = vmatprep.subr.mxu0 0.0
      %2429 = vmatpush1.msra.mxu0 0.0
      %2430 = vmatprep.subr.mxu0 0.0
      %2431 = vmatpush1.msra.mxu0 0.0
      %2432 = vmatprep.subr.mxu0 0.0
      %2433 = vmatpush1.msra.mxu0 0.0
      %2434 = vmatprep.subr.mxu0 0.0
      %2435 = vmatpush1.msra.mxu0 0.0
      %2436 = vmatprep.subr.mxu0 0.0
      %2437 = vmatpush1.msra.mxu0 0.0
      %2438 = vmatprep.subr.mxu0 0.0
      %2439 = vmatpush1.msra.mxu0 0.0
      %2440 = vmatprep.subr.mxu0 0.0
      %2441 = vmatpush1.msra.mxu0 0.0
      %2442 = vmatprep.subr.mxu0 0.0
      %2443 = vmatpush1.msra.mxu0 0.0
      %2444 = vmatprep.subr.mxu0 0.0
      %2445 = vmatpush1.msra.mxu0 0.0
      %2446 = vmatprep.subr.mxu0 0.0
      %2447 = vmatpush1.msra.mxu0 0.0
      %2448 = vmatprep.subr.mxu0 0.0
      %2449 = vmatpush1.msra.mxu0 0.0
      %2450 = vmatprep.subr.mxu0 0.0
      %2451 = vmatpush1.msra.mxu0 0.0
      %2452 = vmatprep.subr.mxu0 0.0
      %2453 = vmatpush1.msra.mxu0 0.0
      %2454 = vmatprep.subr.mxu0 0.0
      %2455 = vmatpush1.msra.mxu0 0.0
      %2456 = vmatprep.subr.mxu0 0.0
      %2457 = vmatpush1.msra.mxu0 0.0
      %2458 = vmatprep.subr.mxu0 0.0
      %2459 = vmatpush1.msra.mxu0 0.0
      %2460 = vmatprep.subr.mxu0 0.0
      %2461 = vmatpush1.msra.mxu0 0.0
      %2462 = vmatprep.subr.mxu0 0.0
      %2463 = vmatpush1.msra.mxu0 0.0
      %2464 = vmatprep.subr.mxu0 0.0
      %2465 = vmatpush1.msra.mxu0 0.0
      %2466 = vmatprep.subr.mxu0 0.0
      %2467 = vmatpush1.msra.mxu0 0.0
      %2468 = vmatprep.subr.mxu0 0.0
      %2469 = vmatpush1.msra.mxu0 0.0
      %2470 = vmatprep.subr.mxu0 0.0
      %2471 = vmatpush1.msra.mxu0 0.0
      %2472 = vmatprep.subr.mxu0 0.0
      %2473 = vmatpush1.msra.mxu0 0.0
      %2474 = vmatprep.mubr.f32.mxu0 0.0
      %2475 = vmatmul.mubr.f32.gmra.mrb[0].mxu0 %v2408
      %v2476 = vpop.f32.mrb[0].mxu0
      %v2477 = vadd.f32 0.0, %v2476
      %v2478 = vpop.f32.mrb[0].mxu0
      %2479 = vdwg.mxu0
      %v2480 = vadd.f32 %v2403, %v2477
      %v2481 = vld [vmem:[#allocation3 + $0xb] sm:$0x1]
      %s2482 = scalar_lea.vmem %s6, 72
      %v2483 = vld [vmem:[%s2482] sm:$0xff]
      %v2485 = vsel %vm718, %v2481, 0
      %2487 = vmatprep.subr.mxu0 0.0
      %2488 = vmatpush1.msra.mxu0 %v2483
      %2489 = vmatprep.subr.mxu0 0.0
      %2490 = vmatpush1.msra.mxu0 0.0
      %2491 = vmatprep.subr.mxu0 0.0
      %2492 = vmatpush1.msra.mxu0 0.0
      %2493 = vmatprep.subr.mxu0 0.0
      %2494 = vmatpush1.msra.mxu0 0.0
      %2495 = vmatprep.subr.mxu0 0.0
      %2496 = vmatpush1.msra.mxu0 0.0
      %2497 = vmatprep.subr.mxu0 0.0
      %2498 = vmatpush1.msra.mxu0 0.0
      %2499 = vmatprep.subr.mxu0 0.0
      %2500 = vmatpush1.msra.mxu0 0.0
      %2501 = vmatprep.subr.mxu0 0.0
      %2502 = vmatpush1.msra.mxu0 0.0
      %2503 = vmatprep.subr.mxu0 0.0
      %2504 = vmatpush1.msra.mxu0 0.0
      %2505 = vmatprep.subr.mxu0 0.0
      %2506 = vmatpush1.msra.mxu0 0.0
      %2507 = vmatprep.subr.mxu0 0.0
      %2508 = vmatpush1.msra.mxu0 0.0
      %2509 = vmatprep.subr.mxu0 0.0
      %2510 = vmatpush1.msra.mxu0 0.0
      %2511 = vmatprep.subr.mxu0 0.0
      %2512 = vmatpush1.msra.mxu0 0.0
      %2513 = vmatprep.subr.mxu0 0.0
      %2514 = vmatpush1.msra.mxu0 0.0
      %2515 = vmatprep.subr.mxu0 0.0
      %2516 = vmatpush1.msra.mxu0 0.0
      %2517 = vmatprep.subr.mxu0 0.0
      %2518 = vmatpush1.msra.mxu0 0.0
      %2519 = vmatprep.subr.mxu0 0.0
      %2520 = vmatpush1.msra.mxu0 0.0
      %2521 = vmatprep.subr.mxu0 0.0
      %2522 = vmatpush1.msra.mxu0 0.0
      %2523 = vmatprep.subr.mxu0 0.0
      %2524 = vmatpush1.msra.mxu0 0.0
      %2525 = vmatprep.subr.mxu0 0.0
      %2526 = vmatpush1.msra.mxu0 0.0
      %2527 = vmatprep.subr.mxu0 0.0
      %2528 = vmatpush1.msra.mxu0 0.0
      %2529 = vmatprep.subr.mxu0 0.0
      %2530 = vmatpush1.msra.mxu0 0.0
      %2531 = vmatprep.subr.mxu0 0.0
      %2532 = vmatpush1.msra.mxu0 0.0
      %2533 = vmatprep.subr.mxu0 0.0
      %2534 = vmatpush1.msra.mxu0 0.0
      %2535 = vmatprep.subr.mxu0 0.0
      %2536 = vmatpush1.msra.mxu0 0.0
      %2537 = vmatprep.subr.mxu0 0.0
      %2538 = vmatpush1.msra.mxu0 0.0
      %2539 = vmatprep.subr.mxu0 0.0
      %2540 = vmatpush1.msra.mxu0 0.0
      %2541 = vmatprep.subr.mxu0 0.0
      %2542 = vmatpush1.msra.mxu0 0.0
      %2543 = vmatprep.subr.mxu0 0.0
      %2544 = vmatpush1.msra.mxu0 0.0
      %2545 = vmatprep.subr.mxu0 0.0
      %2546 = vmatpush1.msra.mxu0 0.0
      %2547 = vmatprep.subr.mxu0 0.0
      %2548 = vmatpush1.msra.mxu0 0.0
      %2549 = vmatprep.subr.mxu0 0.0
      %2550 = vmatpush1.msra.mxu0 0.0
      %2551 = vmatprep.mubr.f32.mxu0 0.0
      %2552 = vmatmul.mubr.f32.gmra.mrb[0].mxu0 %v2485
      %v2553 = vpop.f32.mrb[0].mxu0
      %v2554 = vadd.f32 0.0, %v2553
      %v2555 = vpop.f32.mrb[0].mxu0
      %2556 = vdwg.mxu0
      %v2557 = vadd.f32 %v2480, %v2554
      %v2558 = vld [vmem:[#allocation3 + $0xe] sm:$0x1]
      %s2559 = scalar_lea.vmem %s6, 80
      %v2560 = vld [vmem:[%s2559] sm:$0xff]
      %v2562 = vsel %vm718, %v2558, 0
      %2564 = vmatprep.subr.mxu0 0.0
      %2565 = vmatpush1.msra.mxu0 %v2560
      %2566 = vmatprep.subr.mxu0 0.0
      %2567 = vmatpush1.msra.mxu0 0.0
      %2568 = vmatprep.subr.mxu0 0.0
      %2569 = vmatpush1.msra.mxu0 0.0
      %2570 = vmatprep.subr.mxu0 0.0
      %2571 = vmatpush1.msra.mxu0 0.0
      %2572 = vmatprep.subr.mxu0 0.0
      %2573 = vmatpush1.msra.mxu0 0.0
      %2574 = vmatprep.subr.mxu0 0.0
      %2575 = vmatpush1.msra.mxu0 0.0
      %2576 = vmatprep.subr.mxu0 0.0
      %2577 = vmatpush1.msra.mxu0 0.0
      %2578 = vmatprep.subr.mxu0 0.0
      %2579 = vmatpush1.msra.mxu0 0.0
      %2580 = vmatprep.subr.mxu0 0.0
      %2581 = vmatpush1.msra.mxu0 0.0
      %2582 = vmatprep.subr.mxu0 0.0
      %2583 = vmatpush1.msra.mxu0 0.0
      %2584 = vmatprep.subr.mxu0 0.0
      %2585 = vmatpush1.msra.mxu0 0.0
      %2586 = vmatprep.subr.mxu0 0.0
      %2587 = vmatpush1.msra.mxu0 0.0
      %2588 = vmatprep.subr.mxu0 0.0
      %2589 = vmatpush1.msra.mxu0 0.0
      %2590 = vmatprep.subr.mxu0 0.0
      %2591 = vmatpush1.msra.mxu0 0.0
      %2592 = vmatprep.subr.mxu0 0.0
      %2593 = vmatpush1.msra.mxu0 0.0
      %2594 = vmatprep.subr.mxu0 0.0
      %2595 = vmatpush1.msra.mxu0 0.0
      %2596 = vmatprep.subr.mxu0 0.0
      %2597 = vmatpush1.msra.mxu0 0.0
      %2598 = vmatprep.subr.mxu0 0.0
      %2599 = vmatpush1.msra.mxu0 0.0
      %2600 = vmatprep.subr.mxu0 0.0
      %2601 = vmatpush1.msra.mxu0 0.0
      %2602 = vmatprep.subr.mxu0 0.0
      %2603 = vmatpush1.msra.mxu0 0.0
      %2604 = vmatprep.subr.mxu0 0.0
      %2605 = vmatpush1.msra.mxu0 0.0
      %2606 = vmatprep.subr.mxu0 0.0
      %2607 = vmatpush1.msra.mxu0 0.0
      %2608 = vmatprep.subr.mxu0 0.0
      %2609 = vmatpush1.msra.mxu0 0.0
      %2610 = vmatprep.subr.mxu0 0.0
      %2611 = vmatpush1.msra.mxu0 0.0
      %2612 = vmatprep.subr.mxu0 0.0
      %2613 = vmatpush1.msra.mxu0 0.0
      %2614 = vmatprep.subr.mxu0 0.0
      %2615 = vmatpush1.msra.mxu0 0.0
      %2616 = vmatprep.subr.mxu0 0.0
      %2617 = vmatpush1.msra.mxu0 0.0
      %2618 = vmatprep.subr.mxu0 0.0
      %2619 = vmatpush1.msra.mxu0 0.0
      %2620 = vmatprep.subr.mxu0 0.0
      %2621 = vmatpush1.msra.mxu0 0.0
      %2622 = vmatprep.subr.mxu0 0.0
      %2623 = vmatpush1.msra.mxu0 0.0
      %2624 = vmatprep.subr.mxu0 0.0
      %2625 = vmatpush1.msra.mxu0 0.0
      %2626 = vmatprep.subr.mxu0 0.0
      %2627 = vmatpush1.msra.mxu0 0.0
      %2628 = vmatprep.mubr.f32.mxu0 0.0
      %2629 = vmatmul.mubr.f32.gmra.mrb[0].mxu0 %v2562
      %v2630 = vpop.f32.mrb[0].mxu0
      %v2631 = vadd.f32 0.0, %v2630
      %v2632 = vpop.f32.mrb[0].mxu0
      %2633 = vdwg.mxu0
      %v2634 = vadd.f32 %v2557, %v2631
      %v2635 = vld [vmem:[#allocation3 + $0xf] sm:$0x1]
      %s2636 = scalar_lea.vmem %s6, 88
      %v2637 = vld [vmem:[%s2636] sm:$0xff]
      %v2639 = vsel %vm718, %v2635, 0
      %2641 = vmatprep.subr.mxu0 0.0
      %2642 = vmatpush1.msra.mxu0 %v2637
      %2643 = vmatprep.subr.mxu0 0.0
      %2644 = vmatpush1.msra.mxu0 0.0
      %2645 = vmatprep.subr.mxu0 0.0
      %2646 = vmatpush1.msra.mxu0 0.0
      %2647 = vmatprep.subr.mxu0 0.0
      %2648 = vmatpush1.msra.mxu0 0.0
      %2649 = vmatprep.subr.mxu0 0.0
      %2650 = vmatpush1.msra.mxu0 0.0
      %2651 = vmatprep.subr.mxu0 0.0
      %2652 = vmatpush1.msra.mxu0 0.0
      %2653 = vmatprep.subr.mxu0 0.0
      %2654 = vmatpush1.msra.mxu0 0.0
      %2655 = vmatprep.subr.mxu0 0.0
      %2656 = vmatpush1.msra.mxu0 0.0
      %2657 = vmatprep.subr.mxu0 0.0
      %2658 = vmatpush1.msra.mxu0 0.0
      %2659 = vmatprep.subr.mxu0 0.0
      %2660 = vmatpush1.msra.mxu0 0.0
      %2661 = vmatprep.subr.mxu0 0.0
      %2662 = vmatpush1.msra.mxu0 0.0
      %2663 = vmatprep.subr.mxu0 0.0
      %2664 = vmatpush1.msra.mxu0 0.0
      %2665 = vmatprep.subr.mxu0 0.0
      %2666 = vmatpush1.msra.mxu0 0.0
      %2667 = vmatprep.subr.mxu0 0.0
      %2668 = vmatpush1.msra.mxu0 0.0
      %2669 = vmatprep.subr.mxu0 0.0
      %2670 = vmatpush1.msra.mxu0 0.0
      %2671 = vmatprep.subr.mxu0 0.0
      %2672 = vmatpush1.msra.mxu0 0.0
      %2673 = vmatprep.subr.mxu0 0.0
      %2674 = vmatpush1.msra.mxu0 0.0
      %2675 = vmatprep.subr.mxu0 0.0
      %2676 = vmatpush1.msra.mxu0 0.0
      %2677 = vmatprep.subr.mxu0 0.0
      %2678 = vmatpush1.msra.mxu0 0.0
      %2679 = vmatprep.subr.mxu0 0.0
      %2680 = vmatpush1.msra.mxu0 0.0
      %2681 = vmatprep.subr.mxu0 0.0
      %2682 = vmatpush1.msra.mxu0 0.0
      %2683 = vmatprep.subr.mxu0 0.0
      %2684 = vmatpush1.msra.mxu0 0.0
      %2685 = vmatprep.subr.mxu0 0.0
      %2686 = vmatpush1.msra.mxu0 0.0
      %2687 = vmatprep.subr.mxu0 0.0
      %2688 = vmatpush1.msra.mxu0 0.0
      %2689 = vmatprep.subr.mxu0 0.0
      %2690 = vmatpush1.msra.mxu0 0.0
      %2691 = vmatprep.subr.mxu0 0.0
      %2692 = vmatpush1.msra.mxu0 0.0
      %2693 = vmatprep.subr.mxu0 0.0
      %2694 = vmatpush1.msra.mxu0 0.0
      %2695 = vmatprep.subr.mxu0 0.0
      %2696 = vmatpush1.msra.mxu0 0.0
      %2697 = vmatprep.subr.mxu0 0.0
      %2698 = vmatpush1.msra.mxu0 0.0
      %2699 = vmatprep.subr.mxu0 0.0
      %2700 = vmatpush1.msra.mxu0 0.0
      %2701 = vmatprep.subr.mxu0 0.0
      %2702 = vmatpush1.msra.mxu0 0.0
      %2703 = vmatprep.subr.mxu0 0.0
      %2704 = vmatpush1.msra.mxu0 0.0
      %2705 = vmatprep.mubr.f32.mxu0 0.0
      %2706 = vmatmul.mubr.f32.gmra.mrb[0].mxu0 %v2639
      %v2707 = vpop.f32.mrb[0].mxu0
      %v2708 = vadd.f32 0.0, %v2707
      %v2709 = vpop.f32.mrb[0].mxu0
      %2710 = vdwg.mxu0
      %v2711 = vadd.f32 %v2634, %v2708
      %v2712 = vld [vmem:[#allocation3 + $0x10] sm:$0x1]
      %s2713 = scalar_lea.vmem %s6, 96
      %v2714 = vld [vmem:[%s2713] sm:$0xff]
      %v2716 = vsel %vm718, %v2712, 0
      %2718 = vmatprep.subr.mxu0 0.0
      %2719 = vmatpush1.msra.mxu0 %v2714
      %2720 = vmatprep.subr.mxu0 0.0
      %2721 = vmatpush1.msra.mxu0 0.0
      %2722 = vmatprep.subr.mxu0 0.0
      %2723 = vmatpush1.msra.mxu0 0.0
      %2724 = vmatprep.subr.mxu0 0.0
      %2725 = vmatpush1.msra.mxu0 0.0
      %2726 = vmatprep.subr.mxu0 0.0
      %2727 = vmatpush1.msra.mxu0 0.0
      %2728 = vmatprep.subr.mxu0 0.0
      %2729 = vmatpush1.msra.mxu0 0.0
      %2730 = vmatprep.subr.mxu0 0.0
      %2731 = vmatpush1.msra.mxu0 0.0
      %2732 = vmatprep.subr.mxu0 0.0
      %2733 = vmatpush1.msra.mxu0 0.0
      %2734 = vmatprep.subr.mxu0 0.0
      %2735 = vmatpush1.msra.mxu0 0.0
      %2736 = vmatprep.subr.mxu0 0.0
      %2737 = vmatpush1.msra.mxu0 0.0
      %2738 = vmatprep.subr.mxu0 0.0
      %2739 = vmatpush1.msra.mxu0 0.0
      %2740 = vmatprep.subr.mxu0 0.0
      %2741 = vmatpush1.msra.mxu0 0.0
      %2742 = vmatprep.subr.mxu0 0.0
      %2743 = vmatpush1.msra.mxu0 0.0
      %2744 = vmatprep.subr.mxu0 0.0
      %2745 = vmatpush1.msra.mxu0 0.0
      %2746 = vmatprep.subr.mxu0 0.0
      %2747 = vmatpush1.msra.mxu0 0.0
      %2748 = vmatprep.subr.mxu0 0.0
      %2749 = vmatpush1.msra.mxu0 0.0
      %2750 = vmatprep.subr.mxu0 0.0
      %2751 = vmatpush1.msra.mxu0 0.0
      %2752 = vmatprep.subr.mxu0 0.0
      %2753 = vmatpush1.msra.mxu0 0.0
      %2754 = vmatprep.subr.mxu0 0.0
      %2755 = vmatpush1.msra.mxu0 0.0
      %2756 = vmatprep.subr.mxu0 0.0
      %2757 = vmatpush1.msra.mxu0 0.0
      %2758 = vmatprep.subr.mxu0 0.0
      %2759 = vmatpush1.msra.mxu0 0.0
      %2760 = vmatprep.subr.mxu0 0.0
      %2761 = vmatpush1.msra.mxu0 0.0
      %2762 = vmatprep.subr.mxu0 0.0
      %2763 = vmatpush1.msra.mxu0 0.0
      %2764 = vmatprep.subr.mxu0 0.0
      %2765 = vmatpush1.msra.mxu0 0.0
      %2766 = vmatprep.subr.mxu0 0.0
      %2767 = vmatpush1.msra.mxu0 0.0
      %2768 = vmatprep.subr.mxu0 0.0
      %2769 = vmatpush1.msra.mxu0 0.0
      %2770 = vmatprep.subr.mxu0 0.0
      %2771 = vmatpush1.msra.mxu0 0.0
      %2772 = vmatprep.subr.mxu0 0.0
      %2773 = vmatpush1.msra.mxu0 0.0
      %2774 = vmatprep.subr.mxu0 0.0
      %2775 = vmatpush1.msra.mxu0 0.0
      %2776 = vmatprep.subr.mxu0 0.0
      %2777 = vmatpush1.msra.mxu0 0.0
      %2778 = vmatprep.subr.mxu0 0.0
      %2779 = vmatpush1.msra.mxu0 0.0
      %2780 = vmatprep.subr.mxu0 0.0
      %2781 = vmatpush1.msra.mxu0 0.0
      %2782 = vmatprep.mubr.f32.mxu0 0.0
      %2783 = vmatmul.mubr.f32.gmra.mrb[0].mxu0 %v2716
      %v2784 = vpop.f32.mrb[0].mxu0
      %v2785 = vadd.f32 0.0, %v2784
      %v2786 = vpop.f32.mrb[0].mxu0
      %2787 = vdwg.mxu0
      %v2788 = vadd.f32 %v2711, %v2785
      %v2789 = vld [vmem:[#allocation3 + $0x11] sm:$0x1]
      %s2790 = scalar_lea.vmem %s6, 104
      %v2791 = vld [vmem:[%s2790] sm:$0xff]
      %v2793 = vsel %vm718, %v2789, 0
      %2795 = vmatprep.subr.mxu0 0.0
      %2796 = vmatpush1.msra.mxu0 %v2791
      %2797 = vmatprep.subr.mxu0 0.0
      %2798 = vmatpush1.msra.mxu0 0.0
      %2799 = vmatprep.subr.mxu0 0.0
      %2800 = vmatpush1.msra.mxu0 0.0
      %2801 = vmatprep.subr.mxu0 0.0
      %2802 = vmatpush1.msra.mxu0 0.0
      %2803 = vmatprep.subr.mxu0 0.0
      %2804 = vmatpush1.msra.mxu0 0.0
      %2805 = vmatprep.subr.mxu0 0.0
      %2806 = vmatpush1.msra.mxu0 0.0
      %2807 = vmatprep.subr.mxu0 0.0
      %2808 = vmatpush1.msra.mxu0 0.0
      %2809 = vmatprep.subr.mxu0 0.0
      %2810 = vmatpush1.msra.mxu0 0.0
      %2811 = vmatprep.subr.mxu0 0.0
      %2812 = vmatpush1.msra.mxu0 0.0
      %2813 = vmatprep.subr.mxu0 0.0
      %2814 = vmatpush1.msra.mxu0 0.0
      %2815 = vmatprep.subr.mxu0 0.0
      %2816 = vmatpush1.msra.mxu0 0.0
      %2817 = vmatprep.subr.mxu0 0.0
      %2818 = vmatpush1.msra.mxu0 0.0
      %2819 = vmatprep.subr.mxu0 0.0
      %2820 = vmatpush1.msra.mxu0 0.0
      %2821 = vmatprep.subr.mxu0 0.0
      %2822 = vmatpush1.msra.mxu0 0.0
      %2823 = vmatprep.subr.mxu0 0.0
      %2824 = vmatpush1.msra.mxu0 0.0
      %2825 = vmatprep.subr.mxu0 0.0
      %2826 = vmatpush1.msra.mxu0 0.0
      %2827 = vmatprep.subr.mxu0 0.0
      %2828 = vmatpush1.msra.mxu0 0.0
      %2829 = vmatprep.subr.mxu0 0.0
      %2830 = vmatpush1.msra.mxu0 0.0
      %2831 = vmatprep.subr.mxu0 0.0
      %2832 = vmatpush1.msra.mxu0 0.0
      %2833 = vmatprep.subr.mxu0 0.0
      %2834 = vmatpush1.msra.mxu0 0.0
      %2835 = vmatprep.subr.mxu0 0.0
      %2836 = vmatpush1.msra.mxu0 0.0
      %2837 = vmatprep.subr.mxu0 0.0
      %2838 = vmatpush1.msra.mxu0 0.0
      %2839 = vmatprep.subr.mxu0 0.0
      %2840 = vmatpush1.msra.mxu0 0.0
      %2841 = vmatprep.subr.mxu0 0.0
      %2842 = vmatpush1.msra.mxu0 0.0
      %2843 = vmatprep.subr.mxu0 0.0
      %2844 = vmatpush1.msra.mxu0 0.0
      %2845 = vmatprep.subr.mxu0 0.0
      %2846 = vmatpush1.msra.mxu0 0.0
      %2847 = vmatprep.subr.mxu0 0.0
      %2848 = vmatpush1.msra.mxu0 0.0
      %2849 = vmatprep.subr.mxu0 0.0
      %2850 = vmatpush1.msra.mxu0 0.0
      %2851 = vmatprep.subr.mxu0 0.0
      %2852 = vmatpush1.msra.mxu0 0.0
      %2853 = vmatprep.subr.mxu0 0.0
      %2854 = vmatpush1.msra.mxu0 0.0
      %2855 = vmatprep.subr.mxu0 0.0
      %2856 = vmatpush1.msra.mxu0 0.0
      %2857 = vmatprep.subr.mxu0 0.0
      %2858 = vmatpush1.msra.mxu0 0.0
      %2859 = vmatprep.mubr.f32.mxu0 0.0
      %2860 = vmatmul.mubr.f32.gmra.mrb[0].mxu0 %v2793
      %v2861 = vpop.f32.mrb[0].mxu0
      %v2862 = vadd.f32 0.0, %v2861
      %v2863 = vpop.f32.mrb[0].mxu0
      %2864 = vdwg.mxu0
      %v2865 = vadd.f32 %v2788, %v2862
      %v2866 = vld [vmem:[#allocation3 + $0x12] sm:$0x1]
      %s2867 = scalar_lea.vmem %s6, 112
      %v2868 = vld [vmem:[%s2867] sm:$0xff]
      %v2870 = vsel %vm718, %v2866, 0
      %2872 = vmatprep.subr.mxu0 0.0
      %2873 = vmatpush1.msra.mxu0 %v2868
      %2874 = vmatprep.subr.mxu0 0.0
      %2875 = vmatpush1.msra.mxu0 0.0
      %2876 = vmatprep.subr.mxu0 0.0
      %2877 = vmatpush1.msra.mxu0 0.0
      %2878 = vmatprep.subr.mxu0 0.0
      %2879 = vmatpush1.msra.mxu0 0.0
      %2880 = vmatprep.subr.mxu0 0.0
      %2881 = vmatpush1.msra.mxu0 0.0
      %2882 = vmatprep.subr.mxu0 0.0
      %2883 = vmatpush1.msra.mxu0 0.0
      %2884 = vmatprep.subr.mxu0 0.0
      %2885 = vmatpush1.msra.mxu0 0.0
      %2886 = vmatprep.subr.mxu0 0.0
      %2887 = vmatpush1.msra.mxu0 0.0
      %2888 = vmatprep.subr.mxu0 0.0
      %2889 = vmatpush1.msra.mxu0 0.0
      %2890 = vmatprep.subr.mxu0 0.0
      %2891 = vmatpush1.msra.mxu0 0.0
      %2892 = vmatprep.subr.mxu0 0.0
      %2893 = vmatpush1.msra.mxu0 0.0
      %2894 = vmatprep.subr.mxu0 0.0
      %2895 = vmatpush1.msra.mxu0 0.0
      %2896 = vmatprep.subr.mxu0 0.0
      %2897 = vmatpush1.msra.mxu0 0.0
      %2898 = vmatprep.subr.mxu0 0.0
      %2899 = vmatpush1.msra.mxu0 0.0
      %2900 = vmatprep.subr.mxu0 0.0
      %2901 = vmatpush1.msra.mxu0 0.0
      %2902 = vmatprep.subr.mxu0 0.0
      %2903 = vmatpush1.msra.mxu0 0.0
      %2904 = vmatprep.subr.mxu0 0.0
      %2905 = vmatpush1.msra.mxu0 0.0
      %2906 = vmatprep.subr.mxu0 0.0
      %2907 = vmatpush1.msra.mxu0 0.0
      %2908 = vmatprep.subr.mxu0 0.0
      %2909 = vmatpush1.msra.mxu0 0.0
      %2910 = vmatprep.subr.mxu0 0.0
      %2911 = vmatpush1.msra.mxu0 0.0
      %2912 = vmatprep.subr.mxu0 0.0
      %2913 = vmatpush1.msra.mxu0 0.0
      %2914 = vmatprep.subr.mxu0 0.0
      %2915 = vmatpush1.msra.mxu0 0.0
      %2916 = vmatprep.subr.mxu0 0.0
      %2917 = vmatpush1.msra.mxu0 0.0
      %2918 = vmatprep.subr.mxu0 0.0
      %2919 = vmatpush1.msra.mxu0 0.0
      %2920 = vmatprep.subr.mxu0 0.0
      %2921 = vmatpush1.msra.mxu0 0.0
      %2922 = vmatprep.subr.mxu0 0.0
      %2923 = vmatpush1.msra.mxu0 0.0
      %2924 = vmatprep.subr.mxu0 0.0
      %2925 = vmatpush1.msra.mxu0 0.0
      %2926 = vmatprep.subr.mxu0 0.0
      %2927 = vmatpush1.msra.mxu0 0.0
      %2928 = vmatprep.subr.mxu0 0.0
      %2929 = vmatpush1.msra.mxu0 0.0
      %2930 = vmatprep.subr.mxu0 0.0
      %2931 = vmatpush1.msra.mxu0 0.0
      %2932 = vmatprep.subr.mxu0 0.0
      %2933 = vmatpush1.msra.mxu0 0.0
      %2934 = vmatprep.subr.mxu0 0.0
      %2935 = vmatpush1.msra.mxu0 0.0
      %2936 = vmatprep.mubr.f32.mxu0 0.0
      %2937 = vmatmul.mubr.f32.gmra.mrb[0].mxu0 %v2870
      %v2938 = vpop.f32.mrb[0].mxu0
      %v2939 = vadd.f32 0.0, %v2938
      %v2940 = vpop.f32.mrb[0].mxu0
      %2941 = vdwg.mxu0
      %v2942 = vadd.f32 %v2865, %v2939
      %v2943 = vld [vmem:[#allocation3 + $0x15] sm:$0x1]
      %s2944 = scalar_lea.vmem %s6, 120
      %v2945 = vld [vmem:[%s2944] sm:$0xff]
      %v2947 = vsel %vm718, %v2943, 0
      %2949 = vmatprep.subr.mxu0 0.0
      %2950 = vmatpush1.msra.mxu0 %v2945
      %2951 = vmatprep.subr.mxu0 0.0
      %2952 = vmatpush1.msra.mxu0 0.0
      %2953 = vmatprep.subr.mxu0 0.0
      %2954 = vmatpush1.msra.mxu0 0.0
      %2955 = vmatprep.subr.mxu0 0.0
      %2956 = vmatpush1.msra.mxu0 0.0
      %2957 = vmatprep.subr.mxu0 0.0
      %2958 = vmatpush1.msra.mxu0 0.0
      %2959 = vmatprep.subr.mxu0 0.0
      %2960 = vmatpush1.msra.mxu0 0.0
      %2961 = vmatprep.subr.mxu0 0.0
      %2962 = vmatpush1.msra.mxu0 0.0
      %2963 = vmatprep.subr.mxu0 0.0
      %2964 = vmatpush1.msra.mxu0 0.0
      %2965 = vmatprep.subr.mxu0 0.0
      %2966 = vmatpush1.msra.mxu0 0.0
      %2967 = vmatprep.subr.mxu0 0.0
      %2968 = vmatpush1.msra.mxu0 0.0
      %2969 = vmatprep.subr.mxu0 0.0
      %2970 = vmatpush1.msra.mxu0 0.0
      %2971 = vmatprep.subr.mxu0 0.0
      %2972 = vmatpush1.msra.mxu0 0.0
      %2973 = vmatprep.subr.mxu0 0.0
      %2974 = vmatpush1.msra.mxu0 0.0
      %2975 = vmatprep.subr.mxu0 0.0
      %2976 = vmatpush1.msra.mxu0 0.0
      %2977 = vmatprep.subr.mxu0 0.0
      %2978 = vmatpush1.msra.mxu0 0.0
      %2979 = vmatprep.subr.mxu0 0.0
      %2980 = vmatpush1.msra.mxu0 0.0
      %2981 = vmatprep.subr.mxu0 0.0
      %2982 = vmatpush1.msra.mxu0 0.0
      %2983 = vmatprep.subr.mxu0 0.0
      %2984 = vmatpush1.msra.mxu0 0.0
      %2985 = vmatprep.subr.mxu0 0.0
      %2986 = vmatpush1.msra.mxu0 0.0
      %2987 = vmatprep.subr.mxu0 0.0
      %2988 = vmatpush1.msra.mxu0 0.0
      %2989 = vmatprep.subr.mxu0 0.0
      %2990 = vmatpush1.msra.mxu0 0.0
      %2991 = vmatprep.subr.mxu0 0.0
      %2992 = vmatpush1.msra.mxu0 0.0
      %2993 = vmatprep.subr.mxu0 0.0
      %2994 = vmatpush1.msra.mxu0 0.0
      %2995 = vmatprep.subr.mxu0 0.0
      %2996 = vmatpush1.msra.mxu0 0.0
      %2997 = vmatprep.subr.mxu0 0.0
      %2998 = vmatpush1.msra.mxu0 0.0
      %2999 = vmatprep.subr.mxu0 0.0
      %3000 = vmatpush1.msra.mxu0 0.0
      %3001 = vmatprep.subr.mxu0 0.0
      %3002 = vmatpush1.msra.mxu0 0.0
      %3003 = vmatprep.subr.mxu0 0.0
      %3004 = vmatpush1.msra.mxu0 0.0
      %3005 = vmatprep.subr.mxu0 0.0
      %3006 = vmatpush1.msra.mxu0 0.0
      %3007 = vmatprep.subr.mxu0 0.0
      %3008 = vmatpush1.msra.mxu0 0.0
      %3009 = vmatprep.subr.mxu0 0.0
      %3010 = vmatpush1.msra.mxu0 0.0
      %3011 = vmatprep.subr.mxu0 0.0
      %3012 = vmatpush1.msra.mxu0 0.0
      %3013 = vmatprep.mubr.f32.mxu0 0.0
      %3014 = vmatmul.mubr.f32.gmra.mrb[0].mxu0 %v2947
      %v3015 = vpop.f32.mrb[0].mxu0
      %v3016 = vadd.f32 0.0, %v3015
      %v3017 = vpop.f32.mrb[0].mxu0
      %3018 = vdwg.mxu0
      %v3019 = vadd.f32 %v2942, %v3016
      %v3020 = vld [vmem:[#allocation3 + $0x16] sm:$0x1]
      %s3021 = scalar_lea.vmem %s6, 128
      %v3022 = vld [vmem:[%s3021] sm:$0xff]
      %v3024 = vsel %vm718, %v3020, 0
      %3026 = vmatprep.subr.mxu0 0.0
      %3027 = vmatpush1.msra.mxu0 %v3022
      %3028 = vmatprep.subr.mxu0 0.0
      %3029 = vmatpush1.msra.mxu0 0.0
      %3030 = vmatprep.subr.mxu0 0.0
      %3031 = vmatpush1.msra.mxu0 0.0
      %3032 = vmatprep.subr.mxu0 0.0
      %3033 = vmatpush1.msra.mxu0 0.0
      %3034 = vmatprep.subr.mxu0 0.0
      %3035 = vmatpush1.msra.mxu0 0.0
      %3036 = vmatprep.subr.mxu0 0.0
      %3037 = vmatpush1.msra.mxu0 0.0
      %3038 = vmatprep.subr.mxu0 0.0
      %3039 = vmatpush1.msra.mxu0 0.0
      %3040 = vmatprep.subr.mxu0 0.0
      %3041 = vmatpush1.msra.mxu0 0.0
      %3042 = vmatprep.subr.mxu0 0.0
      %3043 = vmatpush1.msra.mxu0 0.0
      %3044 = vmatprep.subr.mxu0 0.0
      %3045 = vmatpush1.msra.mxu0 0.0
      %3046 = vmatprep.subr.mxu0 0.0
      %3047 = vmatpush1.msra.mxu0 0.0
      %3048 = vmatprep.subr.mxu0 0.0
      %3049 = vmatpush1.msra.mxu0 0.0
      %3050 = vmatprep.subr.mxu0 0.0
      %3051 = vmatpush1.msra.mxu0 0.0
      %3052 = vmatprep.subr.mxu0 0.0
      %3053 = vmatpush1.msra.mxu0 0.0
      %3054 = vmatprep.subr.mxu0 0.0
      %3055 = vmatpush1.msra.mxu0 0.0
      %3056 = vmatprep.subr.mxu0 0.0
      %3057 = vmatpush1.msra.mxu0 0.0
      %3058 = vmatprep.subr.mxu0 0.0
      %3059 = vmatpush1.msra.mxu0 0.0
      %3060 = vmatprep.subr.mxu0 0.0
      %3061 = vmatpush1.msra.mxu0 0.0
      %3062 = vmatprep.subr.mxu0 0.0
      %3063 = vmatpush1.msra.mxu0 0.0
      %3064 = vmatprep.subr.mxu0 0.0
      %3065 = vmatpush1.msra.mxu0 0.0
      %3066 = vmatprep.subr.mxu0 0.0
      %3067 = vmatpush1.msra.mxu0 0.0
      %3068 = vmatprep.subr.mxu0 0.0
      %3069 = vmatpush1.msra.mxu0 0.0
      %3070 = vmatprep.subr.mxu0 0.0
      %3071 = vmatpush1.msra.mxu0 0.0
      %3072 = vmatprep.subr.mxu0 0.0
      %3073 = vmatpush1.msra.mxu0 0.0
      %3074 = vmatprep.subr.mxu0 0.0
      %3075 = vmatpush1.msra.mxu0 0.0
      %3076 = vmatprep.subr.mxu0 0.0
      %3077 = vmatpush1.msra.mxu0 0.0
      %3078 = vmatprep.subr.mxu0 0.0
      %3079 = vmatpush1.msra.mxu0 0.0
      %3080 = vmatprep.subr.mxu0 0.0
      %3081 = vmatpush1.msra.mxu0 0.0
      %3082 = vmatprep.subr.mxu0 0.0
      %3083 = vmatpush1.msra.mxu0 0.0
      %3084 = vmatprep.subr.mxu0 0.0
      %3085 = vmatpush1.msra.mxu0 0.0
      %3086 = vmatprep.subr.mxu0 0.0
      %3087 = vmatpush1.msra.mxu0 0.0
      %3088 = vmatprep.subr.mxu0 0.0
      %3089 = vmatpush1.msra.mxu0 0.0
      %3090 = vmatprep.mubr.f32.mxu0 0.0
      %3091 = vmatmul.mubr.f32.gmra.mrb[0].mxu0 %v3024
      %v3092 = vpop.f32.mrb[0].mxu0
      %v3093 = vadd.f32 0.0, %v3092
      %v3094 = vpop.f32.mrb[0].mxu0
      %3095 = vdwg.mxu0
      %v3096 = vadd.f32 %v3019, %v3093
      %v3097 = vld [vmem:[#allocation3 + $0x17] sm:$0x1]
      %s3098 = scalar_lea.vmem %s6, 136
      %v3099 = vld [vmem:[%s3098] sm:$0xff]
      %v3101 = vsel %vm718, %v3097, 0
      %3103 = vmatprep.subr.mxu0 0.0
      %3104 = vmatpush1.msra.mxu0 %v3099
      %3105 = vmatprep.subr.mxu0 0.0
      %3106 = vmatpush1.msra.mxu0 0.0
      %3107 = vmatprep.subr.mxu0 0.0
      %3108 = vmatpush1.msra.mxu0 0.0
      %3109 = vmatprep.subr.mxu0 0.0
      %3110 = vmatpush1.msra.mxu0 0.0
      %3111 = vmatprep.subr.mxu0 0.0
      %3112 = vmatpush1.msra.mxu0 0.0
      %3113 = vmatprep.subr.mxu0 0.0
      %3114 = vmatpush1.msra.mxu0 0.0
      %3115 = vmatprep.subr.mxu0 0.0
      %3116 = vmatpush1.msra.mxu0 0.0
      %3117 = vmatprep.subr.mxu0 0.0
      %3118 = vmatpush1.msra.mxu0 0.0
      %3119 = vmatprep.subr.mxu0 0.0
      %3120 = vmatpush1.msra.mxu0 0.0
      %3121 = vmatprep.subr.mxu0 0.0
      %3122 = vmatpush1.msra.mxu0 0.0
      %3123 = vmatprep.subr.mxu0 0.0
      %3124 = vmatpush1.msra.mxu0 0.0
      %3125 = vmatprep.subr.mxu0 0.0
      %3126 = vmatpush1.msra.mxu0 0.0
      %3127 = vmatprep.subr.mxu0 0.0
      %3128 = vmatpush1.msra.mxu0 0.0
      %3129 = vmatprep.subr.mxu0 0.0
      %3130 = vmatpush1.msra.mxu0 0.0
      %3131 = vmatprep.subr.mxu0 0.0
      %3132 = vmatpush1.msra.mxu0 0.0
      %3133 = vmatprep.subr.mxu0 0.0
      %3134 = vmatpush1.msra.mxu0 0.0
      %3135 = vmatprep.subr.mxu0 0.0
      %3136 = vmatpush1.msra.mxu0 0.0
      %3137 = vmatprep.subr.mxu0 0.0
      %3138 = vmatpush1.msra.mxu0 0.0
      %3139 = vmatprep.subr.mxu0 0.0
      %3140 = vmatpush1.msra.mxu0 0.0
      %3141 = vmatprep.subr.mxu0 0.0
      %3142 = vmatpush1.msra.mxu0 0.0
      %3143 = vmatprep.subr.mxu0 0.0
      %3144 = vmatpush1.msra.mxu0 0.0
      %3145 = vmatprep.subr.mxu0 0.0
      %3146 = vmatpush1.msra.mxu0 0.0
      %3147 = vmatprep.subr.mxu0 0.0
      %3148 = vmatpush1.msra.mxu0 0.0
      %3149 = vmatprep.subr.mxu0 0.0
      %3150 = vmatpush1.msra.mxu0 0.0
      %3151 = vmatprep.subr.mxu0 0.0
      %3152 = vmatpush1.msra.mxu0 0.0
      %3153 = vmatprep.subr.mxu0 0.0
      %3154 = vmatpush1.msra.mxu0 0.0
      %3155 = vmatprep.subr.mxu0 0.0
      %3156 = vmatpush1.msra.mxu0 0.0
      %3157 = vmatprep.subr.mxu0 0.0
      %3158 = vmatpush1.msra.mxu0 0.0
      %3159 = vmatprep.subr.mxu0 0.0
      %3160 = vmatpush1.msra.mxu0 0.0
      %3161 = vmatprep.subr.mxu0 0.0
      %3162 = vmatpush1.msra.mxu0 0.0
      %3163 = vmatprep.subr.mxu0 0.0
      %3164 = vmatpush1.msra.mxu0 0.0
      %3165 = vmatprep.subr.mxu0 0.0
      %3166 = vmatpush1.msra.mxu0 0.0
      %3167 = vmatprep.mubr.f32.mxu0 0.0
      %3168 = vmatmul.mubr.f32.gmra.mrb[0].mxu0 %v3101
      %v3169 = vpop.f32.mrb[0].mxu0
      %v3170 = vadd.f32 0.0, %v3169
      %v3171 = vpop.f32.mrb[0].mxu0
      %3172 = vdwg.mxu0
      %v3173 = vadd.f32 %v3096, %v3170
      %v3174 = vld [vmem:[#allocation3 + $0x18] sm:$0x1]
      %s3175 = scalar_lea.vmem %s6, 144
      %v3176 = vld [vmem:[%s3175] sm:$0xff]
      %v3178 = vsel %vm718, %v3174, 0
      %3180 = vmatprep.subr.mxu0 0.0
      %3181 = vmatpush1.msra.mxu0 %v3176
      %3182 = vmatprep.subr.mxu0 0.0
      %3183 = vmatpush1.msra.mxu0 0.0
      %3184 = vmatprep.subr.mxu0 0.0
      %3185 = vmatpush1.msra.mxu0 0.0
      %3186 = vmatprep.subr.mxu0 0.0
      %3187 = vmatpush1.msra.mxu0 0.0
      %3188 = vmatprep.subr.mxu0 0.0
      %3189 = vmatpush1.msra.mxu0 0.0
      %3190 = vmatprep.subr.mxu0 0.0
      %3191 = vmatpush1.msra.mxu0 0.0
      %3192 = vmatprep.subr.mxu0 0.0
      %3193 = vmatpush1.msra.mxu0 0.0
      %3194 = vmatprep.subr.mxu0 0.0
      %3195 = vmatpush1.msra.mxu0 0.0
      %3196 = vmatprep.subr.mxu0 0.0
      %3197 = vmatpush1.msra.mxu0 0.0
      %3198 = vmatprep.subr.mxu0 0.0
      %3199 = vmatpush1.msra.mxu0 0.0
      %3200 = vmatprep.subr.mxu0 0.0
      %3201 = vmatpush1.msra.mxu0 0.0
      %3202 = vmatprep.subr.mxu0 0.0
      %3203 = vmatpush1.msra.mxu0 0.0
      %3204 = vmatprep.subr.mxu0 0.0
      %3205 = vmatpush1.msra.mxu0 0.0
      %3206 = vmatprep.subr.mxu0 0.0
      %3207 = vmatpush1.msra.mxu0 0.0
      %3208 = vmatprep.subr.mxu0 0.0
      %3209 = vmatpush1.msra.mxu0 0.0
      %3210 = vmatprep.subr.mxu0 0.0
      %3211 = vmatpush1.msra.mxu0 0.0
      %3212 = vmatprep.subr.mxu0 0.0
      %3213 = vmatpush1.msra.mxu0 0.0
      %3214 = vmatprep.subr.mxu0 0.0
      %3215 = vmatpush1.msra.mxu0 0.0
      %3216 = vmatprep.subr.mxu0 0.0
      %3217 = vmatpush1.msra.mxu0 0.0
      %3218 = vmatprep.subr.mxu0 0.0
      %3219 = vmatpush1.msra.mxu0 0.0
      %3220 = vmatprep.subr.mxu0 0.0
      %3221 = vmatpush1.msra.mxu0 0.0
      %3222 = vmatprep.subr.mxu0 0.0
      %3223 = vmatpush1.msra.mxu0 0.0
      %3224 = vmatprep.subr.mxu0 0.0
      %3225 = vmatpush1.msra.mxu0 0.0
      %3226 = vmatprep.subr.mxu0 0.0
      %3227 = vmatpush1.msra.mxu0 0.0
      %3228 = vmatprep.subr.mxu0 0.0
      %3229 = vmatpush1.msra.mxu0 0.0
      %3230 = vmatprep.subr.mxu0 0.0
      %3231 = vmatpush1.msra.mxu0 0.0
      %3232 = vmatprep.subr.mxu0 0.0
      %3233 = vmatpush1.msra.mxu0 0.0
      %3234 = vmatprep.subr.mxu0 0.0
      %3235 = vmatpush1.msra.mxu0 0.0
      %3236 = vmatprep.subr.mxu0 0.0
      %3237 = vmatpush1.msra.mxu0 0.0
      %3238 = vmatprep.subr.mxu0 0.0
      %3239 = vmatpush1.msra.mxu0 0.0
      %3240 = vmatprep.subr.mxu0 0.0
      %3241 = vmatpush1.msra.mxu0 0.0
      %3242 = vmatprep.subr.mxu0 0.0
      %3243 = vmatpush1.msra.mxu0 0.0
      %3244 = vmatprep.mubr.f32.mxu0 0.0
      %3245 = vmatmul.mubr.f32.gmra.mrb[0].mxu0 %v3178
      %v3246 = vpop.f32.mrb[0].mxu0
      %v3247 = vadd.f32 0.0, %v3246
      %v3248 = vpop.f32.mrb[0].mxu0
      %3249 = vdwg.mxu0
      %v3250 = vadd.f32 %v3173, %v3247
      %v3251 = vld [vmem:[#allocation3 + $0x19] sm:$0x1]
      %s3252 = scalar_lea.vmem %s6, 152
      %v3253 = vld [vmem:[%s3252] sm:$0xff]
      %v3255 = vsel %vm718, %v3251, 0
      %3257 = vmatprep.subr.mxu0 0.0
      %3258 = vmatpush1.msra.mxu0 %v3253
      %3259 = vmatprep.subr.mxu0 0.0
      %3260 = vmatpush1.msra.mxu0 0.0
      %3261 = vmatprep.subr.mxu0 0.0
      %3262 = vmatpush1.msra.mxu0 0.0
      %3263 = vmatprep.subr.mxu0 0.0
      %3264 = vmatpush1.msra.mxu0 0.0
      %3265 = vmatprep.subr.mxu0 0.0
      %3266 = vmatpush1.msra.mxu0 0.0
      %3267 = vmatprep.subr.mxu0 0.0
      %3268 = vmatpush1.msra.mxu0 0.0
      %3269 = vmatprep.subr.mxu0 0.0
      %3270 = vmatpush1.msra.mxu0 0.0
      %3271 = vmatprep.subr.mxu0 0.0
      %3272 = vmatpush1.msra.mxu0 0.0
      %3273 = vmatprep.subr.mxu0 0.0
      %3274 = vmatpush1.msra.mxu0 0.0
      %3275 = vmatprep.subr.mxu0 0.0
      %3276 = vmatpush1.msra.mxu0 0.0
      %3277 = vmatprep.subr.mxu0 0.0
      %3278 = vmatpush1.msra.mxu0 0.0
      %3279 = vmatprep.subr.mxu0 0.0
      %3280 = vmatpush1.msra.mxu0 0.0
      %3281 = vmatprep.subr.mxu0 0.0
      %3282 = vmatpush1.msra.mxu0 0.0
      %3283 = vmatprep.subr.mxu0 0.0
      %3284 = vmatpush1.msra.mxu0 0.0
      %3285 = vmatprep.subr.mxu0 0.0
      %3286 = vmatpush1.msra.mxu0 0.0
      %3287 = vmatprep.subr.mxu0 0.0
      %3288 = vmatpush1.msra.mxu0 0.0
      %3289 = vmatprep.subr.mxu0 0.0
      %3290 = vmatpush1.msra.mxu0 0.0
      %3291 = vmatprep.subr.mxu0 0.0
      %3292 = vmatpush1.msra.mxu0 0.0
      %3293 = vmatprep.subr.mxu0 0.0
      %3294 = vmatpush1.msra.mxu0 0.0
      %3295 = vmatprep.subr.mxu0 0.0
      %3296 = vmatpush1.msra.mxu0 0.0
      %3297 = vmatprep.subr.mxu0 0.0
      %3298 = vmatpush1.msra.mxu0 0.0
      %3299 = vmatprep.subr.mxu0 0.0
      %3300 = vmatpush1.msra.mxu0 0.0
      %3301 = vmatprep.subr.mxu0 0.0
      %3302 = vmatpush1.msra.mxu0 0.0
      %3303 = vmatprep.subr.mxu0 0.0
      %3304 = vmatpush1.msra.mxu0 0.0
      %3305 = vmatprep.subr.mxu0 0.0
      %3306 = vmatpush1.msra.mxu0 0.0
      %3307 = vmatprep.subr.mxu0 0.0
      %3308 = vmatpush1.msra.mxu0 0.0
      %3309 = vmatprep.subr.mxu0 0.0
      %3310 = vmatpush1.msra.mxu0 0.0
      %3311 = vmatprep.subr.mxu0 0.0
      %3312 = vmatpush1.msra.mxu0 0.0
      %3313 = vmatprep.subr.mxu0 0.0
      %3314 = vmatpush1.msra.mxu0 0.0
      %3315 = vmatprep.subr.mxu0 0.0
      %3316 = vmatpush1.msra.mxu0 0.0
      %3317 = vmatprep.subr.mxu0 0.0
      %3318 = vmatpush1.msra.mxu0 0.0
      %3319 = vmatprep.subr.mxu0 0.0
      %3320 = vmatpush1.msra.mxu0 0.0
      %3321 = vmatprep.mubr.f32.mxu0 0.0
      %3322 = vmatmul.mubr.f32.gmra.mrb[0].mxu0 %v3255
      %v3323 = vpop.f32.mrb[0].mxu0
      %v3324 = vadd.f32 0.0, %v3323
      %v3325 = vpop.f32.mrb[0].mxu0
      %3326 = vdwg.mxu0
      %v3327 = vadd.f32 %v3250, %v3324
      %v3328 = vld [vmem:[#allocation3 + $0x1c] sm:$0x1]
      %s3329 = scalar_lea.vmem %s6, 160
      %v3330 = vld [vmem:[%s3329] sm:$0xff]
      %v3332 = vsel %vm718, %v3328, 0
      %3334 = vmatprep.subr.mxu0 0.0
      %3335 = vmatpush1.msra.mxu0 %v3330
      %3336 = vmatprep.subr.mxu0 0.0
      %3337 = vmatpush1.msra.mxu0 0.0
      %3338 = vmatprep.subr.mxu0 0.0
      %3339 = vmatpush1.msra.mxu0 0.0
      %3340 = vmatprep.subr.mxu0 0.0
      %3341 = vmatpush1.msra.mxu0 0.0
      %3342 = vmatprep.subr.mxu0 0.0
      %3343 = vmatpush1.msra.mxu0 0.0
      %3344 = vmatprep.subr.mxu0 0.0
      %3345 = vmatpush1.msra.mxu0 0.0
      %3346 = vmatprep.subr.mxu0 0.0
      %3347 = vmatpush1.msra.mxu0 0.0
      %3348 = vmatprep.subr.mxu0 0.0
      %3349 = vmatpush1.msra.mxu0 0.0
      %3350 = vmatprep.subr.mxu0 0.0
      %3351 = vmatpush1.msra.mxu0 0.0
      %3352 = vmatprep.subr.mxu0 0.0
      %3353 = vmatpush1.msra.mxu0 0.0
      %3354 = vmatprep.subr.mxu0 0.0
      %3355 = vmatpush1.msra.mxu0 0.0
      %3356 = vmatprep.subr.mxu0 0.0
      %3357 = vmatpush1.msra.mxu0 0.0
      %3358 = vmatprep.subr.mxu0 0.0
      %3359 = vmatpush1.msra.mxu0 0.0
      %3360 = vmatprep.subr.mxu0 0.0
      %3361 = vmatpush1.msra.mxu0 0.0
      %3362 = vmatprep.subr.mxu0 0.0
      %3363 = vmatpush1.msra.mxu0 0.0
      %3364 = vmatprep.subr.mxu0 0.0
      %3365 = vmatpush1.msra.mxu0 0.0
      %3366 = vmatprep.subr.mxu0 0.0
      %3367 = vmatpush1.msra.mxu0 0.0
      %3368 = vmatprep.subr.mxu0 0.0
      %3369 = vmatpush1.msra.mxu0 0.0
      %3370 = vmatprep.subr.mxu0 0.0
      %3371 = vmatpush1.msra.mxu0 0.0
      %3372 = vmatprep.subr.mxu0 0.0
      %3373 = vmatpush1.msra.mxu0 0.0
      %3374 = vmatprep.subr.mxu0 0.0
      %3375 = vmatpush1.msra.mxu0 0.0
      %3376 = vmatprep.subr.mxu0 0.0
      %3377 = vmatpush1.msra.mxu0 0.0
      %3378 = vmatprep.subr.mxu0 0.0
      %3379 = vmatpush1.msra.mxu0 0.0
      %3380 = vmatprep.subr.mxu0 0.0
      %3381 = vmatpush1.msra.mxu0 0.0
      %3382 = vmatprep.subr.mxu0 0.0
      %3383 = vmatpush1.msra.mxu0 0.0
      %3384 = vmatprep.subr.mxu0 0.0
      %3385 = vmatpush1.msra.mxu0 0.0
      %3386 = vmatprep.subr.mxu0 0.0
      %3387 = vmatpush1.msra.mxu0 0.0
      %3388 = vmatprep.subr.mxu0 0.0
      %3389 = vmatpush1.msra.mxu0 0.0
      %3390 = vmatprep.subr.mxu0 0.0
      %3391 = vmatpush1.msra.mxu0 0.0
      %3392 = vmatprep.subr.mxu0 0.0
      %3393 = vmatpush1.msra.mxu0 0.0
      %3394 = vmatprep.subr.mxu0 0.0
      %3395 = vmatpush1.msra.mxu0 0.0
      %3396 = vmatprep.subr.mxu0 0.0
      %3397 = vmatpush1.msra.mxu0 0.0
      %3398 = vmatprep.mubr.f32.mxu0 0.0
      %3399 = vmatmul.mubr.f32.gmra.mrb[0].mxu0 %v3332
      %v3400 = vpop.f32.mrb[0].mxu0
      %v3401 = vadd.f32 0.0, %v3400
      %v3402 = vpop.f32.mrb[0].mxu0
      %3403 = vdwg.mxu0
      %v3404 = vadd.f32 %v3327, %v3401
      %v3405 = vld [vmem:[#allocation3 + $0x1d] sm:$0x1]
      %s3406 = scalar_lea.vmem %s6, 168
      %v3407 = vld [vmem:[%s3406] sm:$0xff]
      %v3409 = vsel %vm718, %v3405, 0
      %3411 = vmatprep.subr.mxu0 0.0
      %3412 = vmatpush1.msra.mxu0 %v3407
      %3413 = vmatprep.subr.mxu0 0.0
      %3414 = vmatpush1.msra.mxu0 0.0
      %3415 = vmatprep.subr.mxu0 0.0
      %3416 = vmatpush1.msra.mxu0 0.0
      %3417 = vmatprep.subr.mxu0 0.0
      %3418 = vmatpush1.msra.mxu0 0.0
      %3419 = vmatprep.subr.mxu0 0.0
      %3420 = vmatpush1.msra.mxu0 0.0
      %3421 = vmatprep.subr.mxu0 0.0
      %3422 = vmatpush1.msra.mxu0 0.0
      %3423 = vmatprep.subr.mxu0 0.0
      %3424 = vmatpush1.msra.mxu0 0.0
      %3425 = vmatprep.subr.mxu0 0.0
      %3426 = vmatpush1.msra.mxu0 0.0
      %3427 = vmatprep.subr.mxu0 0.0
      %3428 = vmatpush1.msra.mxu0 0.0
      %3429 = vmatprep.subr.mxu0 0.0
      %3430 = vmatpush1.msra.mxu0 0.0
      %3431 = vmatprep.subr.mxu0 0.0
      %3432 = vmatpush1.msra.mxu0 0.0
      %3433 = vmatprep.subr.mxu0 0.0
      %3434 = vmatpush1.msra.mxu0 0.0
      %3435 = vmatprep.subr.mxu0 0.0
      %3436 = vmatpush1.msra.mxu0 0.0
      %3437 = vmatprep.subr.mxu0 0.0
      %3438 = vmatpush1.msra.mxu0 0.0
      %3439 = vmatprep.subr.mxu0 0.0
      %3440 = vmatpush1.msra.mxu0 0.0
      %3441 = vmatprep.subr.mxu0 0.0
      %3442 = vmatpush1.msra.mxu0 0.0
      %3443 = vmatprep.subr.mxu0 0.0
      %3444 = vmatpush1.msra.mxu0 0.0
      %3445 = vmatprep.subr.mxu0 0.0
      %3446 = vmatpush1.msra.mxu0 0.0
      %3447 = vmatprep.subr.mxu0 0.0
      %3448 = vmatpush1.msra.mxu0 0.0
      %3449 = vmatprep.subr.mxu0 0.0
      %3450 = vmatpush1.msra.mxu0 0.0
      %3451 = vmatprep.subr.mxu0 0.0
      %3452 = vmatpush1.msra.mxu0 0.0
      %3453 = vmatprep.subr.mxu0 0.0
      %3454 = vmatpush1.msra.mxu0 0.0
      %3455 = vmatprep.subr.mxu0 0.0
      %3456 = vmatpush1.msra.mxu0 0.0
      %3457 = vmatprep.subr.mxu0 0.0
      %3458 = vmatpush1.msra.mxu0 0.0
      %3459 = vmatprep.subr.mxu0 0.0
      %3460 = vmatpush1.msra.mxu0 0.0
      %3461 = vmatprep.subr.mxu0 0.0
      %3462 = vmatpush1.msra.mxu0 0.0
      %3463 = vmatprep.subr.mxu0 0.0
      %3464 = vmatpush1.msra.mxu0 0.0
      %3465 = vmatprep.subr.mxu0 0.0
      %3466 = vmatpush1.msra.mxu0 0.0
      %3467 = vmatprep.subr.mxu0 0.0
      %3468 = vmatpush1.msra.mxu0 0.0
      %3469 = vmatprep.subr.mxu0 0.0
      %3470 = vmatpush1.msra.mxu0 0.0
      %3471 = vmatprep.subr.mxu0 0.0
      %3472 = vmatpush1.msra.mxu0 0.0
      %3473 = vmatprep.subr.mxu0 0.0
      %3474 = vmatpush1.msra.mxu0 0.0
      %3475 = vmatprep.mubr.f32.mxu0 0.0
      %3476 = vmatmul.mubr.f32.gmra.mrb[0].mxu0 %v3409
      %v3477 = vpop.f32.mrb[0].mxu0
      %v3478 = vadd.f32 0.0, %v3477
      %v3479 = vpop.f32.mrb[0].mxu0
      %3480 = vdwg.mxu0
      %v3481 = vadd.f32 %v3404, %v3478
      %v3482 = vld [vmem:[#allocation3 + $0x1e] sm:$0x1]
      %s3483 = scalar_lea.vmem %s6, 176
      %v3484 = vld [vmem:[%s3483] sm:$0xff]
      %v3486 = vsel %vm718, %v3482, 0
      %3488 = vmatprep.subr.mxu0 0.0
      %3489 = vmatpush1.msra.mxu0 %v3484
      %3490 = vmatprep.subr.mxu0 0.0
      %3491 = vmatpush1.msra.mxu0 0.0
      %3492 = vmatprep.subr.mxu0 0.0
      %3493 = vmatpush1.msra.mxu0 0.0
      %3494 = vmatprep.subr.mxu0 0.0
      %3495 = vmatpush1.msra.mxu0 0.0
      %3496 = vmatprep.subr.mxu0 0.0
      %3497 = vmatpush1.msra.mxu0 0.0
      %3498 = vmatprep.subr.mxu0 0.0
      %3499 = vmatpush1.msra.mxu0 0.0
      %3500 = vmatprep.subr.mxu0 0.0
      %3501 = vmatpush1.msra.mxu0 0.0
      %3502 = vmatprep.subr.mxu0 0.0
      %3503 = vmatpush1.msra.mxu0 0.0
      %3504 = vmatprep.subr.mxu0 0.0
      %3505 = vmatpush1.msra.mxu0 0.0
      %3506 = vmatprep.subr.mxu0 0.0
      %3507 = vmatpush1.msra.mxu0 0.0
      %3508 = vmatprep.subr.mxu0 0.0
      %3509 = vmatpush1.msra.mxu0 0.0
      %3510 = vmatprep.subr.mxu0 0.0
      %3511 = vmatpush1.msra.mxu0 0.0
      %3512 = vmatprep.subr.mxu0 0.0
      %3513 = vmatpush1.msra.mxu0 0.0
      %3514 = vmatprep.subr.mxu0 0.0
      %3515 = vmatpush1.msra.mxu0 0.0
      %3516 = vmatprep.subr.mxu0 0.0
      %3517 = vmatpush1.msra.mxu0 0.0
      %3518 = vmatprep.subr.mxu0 0.0
      %3519 = vmatpush1.msra.mxu0 0.0
      %3520 = vmatprep.subr.mxu0 0.0
      %3521 = vmatpush1.msra.mxu0 0.0
      %3522 = vmatprep.subr.mxu0 0.0
      %3523 = vmatpush1.msra.mxu0 0.0
      %3524 = vmatprep.subr.mxu0 0.0
      %3525 = vmatpush1.msra.mxu0 0.0
      %3526 = vmatprep.subr.mxu0 0.0
      %3527 = vmatpush1.msra.mxu0 0.0
      %3528 = vmatprep.subr.mxu0 0.0
      %3529 = vmatpush1.msra.mxu0 0.0
      %3530 = vmatprep.subr.mxu0 0.0
      %3531 = vmatpush1.msra.mxu0 0.0
      %3532 = vmatprep.subr.mxu0 0.0
      %3533 = vmatpush1.msra.mxu0 0.0
      %3534 = vmatprep.subr.mxu0 0.0
      %3535 = vmatpush1.msra.mxu0 0.0
      %3536 = vmatprep.subr.mxu0 0.0
      %3537 = vmatpush1.msra.mxu0 0.0
      %3538 = vmatprep.subr.mxu0 0.0
      %3539 = vmatpush1.msra.mxu0 0.0
      %3540 = vmatprep.subr.mxu0 0.0
      %3541 = vmatpush1.msra.mxu0 0.0
      %3542 = vmatprep.subr.mxu0 0.0
      %3543 = vmatpush1.msra.mxu0 0.0
      %3544 = vmatprep.subr.mxu0 0.0
      %3545 = vmatpush1.msra.mxu0 0.0
      %3546 = vmatprep.subr.mxu0 0.0
      %3547 = vmatpush1.msra.mxu0 0.0
      %3548 = vmatprep.subr.mxu0 0.0
      %3549 = vmatpush1.msra.mxu0 0.0
      %3550 = vmatprep.subr.mxu0 0.0
      %3551 = vmatpush1.msra.mxu0 0.0
      %3552 = vmatprep.mubr.f32.mxu0 0.0
      %3553 = vmatmul.mubr.f32.gmra.mrb[0].mxu0 %v3486
      %v3554 = vpop.f32.mrb[0].mxu0
      %v3555 = vadd.f32 0.0, %v3554
      %v3556 = vpop.f32.mrb[0].mxu0
      %3557 = vdwg.mxu0
      %v3558 = vadd.f32 %v3481, %v3555
      %v3559 = vld [vmem:[#allocation3 + $0x1f] sm:$0x1]
      %s3560 = scalar_lea.vmem %s6, 184
      %v3561 = vld [vmem:[%s3560] sm:$0xff]
      %v3563 = vsel %vm718, %v3559, 0
      %3565 = vmatprep.subr.mxu0 0.0
      %3566 = vmatpush1.msra.mxu0 %v3561
      %3567 = vmatprep.subr.mxu0 0.0
      %3568 = vmatpush1.msra.mxu0 0.0
      %3569 = vmatprep.subr.mxu0 0.0
      %3570 = vmatpush1.msra.mxu0 0.0
      %3571 = vmatprep.subr.mxu0 0.0
      %3572 = vmatpush1.msra.mxu0 0.0
      %3573 = vmatprep.subr.mxu0 0.0
      %3574 = vmatpush1.msra.mxu0 0.0
      %3575 = vmatprep.subr.mxu0 0.0
      %3576 = vmatpush1.msra.mxu0 0.0
      %3577 = vmatprep.subr.mxu0 0.0
      %3578 = vmatpush1.msra.mxu0 0.0
      %3579 = vmatprep.subr.mxu0 0.0
      %3580 = vmatpush1.msra.mxu0 0.0
      %3581 = vmatprep.subr.mxu0 0.0
      %3582 = vmatpush1.msra.mxu0 0.0
      %3583 = vmatprep.subr.mxu0 0.0
      %3584 = vmatpush1.msra.mxu0 0.0
      %3585 = vmatprep.subr.mxu0 0.0
      %3586 = vmatpush1.msra.mxu0 0.0
      %3587 = vmatprep.subr.mxu0 0.0
      %3588 = vmatpush1.msra.mxu0 0.0
      %3589 = vmatprep.subr.mxu0 0.0
      %3590 = vmatpush1.msra.mxu0 0.0
      %3591 = vmatprep.subr.mxu0 0.0
      %3592 = vmatpush1.msra.mxu0 0.0
      %3593 = vmatprep.subr.mxu0 0.0
      %3594 = vmatpush1.msra.mxu0 0.0
      %3595 = vmatprep.subr.mxu0 0.0
      %3596 = vmatpush1.msra.mxu0 0.0
      %3597 = vmatprep.subr.mxu0 0.0
      %3598 = vmatpush1.msra.mxu0 0.0
      %3599 = vmatprep.subr.mxu0 0.0
      %3600 = vmatpush1.msra.mxu0 0.0
      %3601 = vmatprep.subr.mxu0 0.0
      %3602 = vmatpush1.msra.mxu0 0.0
      %3603 = vmatprep.subr.mxu0 0.0
      %3604 = vmatpush1.msra.mxu0 0.0
      %3605 = vmatprep.subr.mxu0 0.0
      %3606 = vmatpush1.msra.mxu0 0.0
      %3607 = vmatprep.subr.mxu0 0.0
      %3608 = vmatpush1.msra.mxu0 0.0
      %3609 = vmatprep.subr.mxu0 0.0
      %3610 = vmatpush1.msra.mxu0 0.0
      %3611 = vmatprep.subr.mxu0 0.0
      %3612 = vmatpush1.msra.mxu0 0.0
      %3613 = vmatprep.subr.mxu0 0.0
      %3614 = vmatpush1.msra.mxu0 0.0
      %3615 = vmatprep.subr.mxu0 0.0
      %3616 = vmatpush1.msra.mxu0 0.0
      %3617 = vmatprep.subr.mxu0 0.0
      %3618 = vmatpush1.msra.mxu0 0.0
      %3619 = vmatprep.subr.mxu0 0.0
      %3620 = vmatpush1.msra.mxu0 0.0
      %3621 = vmatprep.subr.mxu0 0.0
      %3622 = vmatpush1.msra.mxu0 0.0
      %3623 = vmatprep.subr.mxu0 0.0
      %3624 = vmatpush1.msra.mxu0 0.0
      %3625 = vmatprep.subr.mxu0 0.0
      %3626 = vmatpush1.msra.mxu0 0.0
      %3627 = vmatprep.subr.mxu0 0.0
      %3628 = vmatpush1.msra.mxu0 0.0
      %3629 = vmatprep.mubr.f32.mxu0 0.0
      %3630 = vmatmul.mubr.f32.gmra.mrb[0].mxu0 %v3563
      %v3631 = vpop.f32.mrb[0].mxu0
      %v3632 = vadd.f32 0.0, %v3631
      %v3633 = vpop.f32.mrb[0].mxu0
      %3634 = vdwg.mxu0
      %v3635 = vadd.f32 %v3558, %v3632
      %v3636 = vld [vmem:[#allocation3 + $0x20] sm:$0x1]
      %s3637 = scalar_lea.vmem %s6, 192
      %v3638 = vld [vmem:[%s3637] sm:$0xff]
      %v3640 = vsel %vm718, %v3636, 0
      %3642 = vmatprep.subr.mxu0 0.0
      %3643 = vmatpush1.msra.mxu0 %v3638
      %3644 = vmatprep.subr.mxu0 0.0
      %3645 = vmatpush1.msra.mxu0 0.0
      %3646 = vmatprep.subr.mxu0 0.0
      %3647 = vmatpush1.msra.mxu0 0.0
      %3648 = vmatprep.subr.mxu0 0.0
      %3649 = vmatpush1.msra.mxu0 0.0
      %3650 = vmatprep.subr.mxu0 0.0
      %3651 = vmatpush1.msra.mxu0 0.0
      %3652 = vmatprep.subr.mxu0 0.0
      %3653 = vmatpush1.msra.mxu0 0.0
      %3654 = vmatprep.subr.mxu0 0.0
      %3655 = vmatpush1.msra.mxu0 0.0
      %3656 = vmatprep.subr.mxu0 0.0
      %3657 = vmatpush1.msra.mxu0 0.0
      %3658 = vmatprep.subr.mxu0 0.0
      %3659 = vmatpush1.msra.mxu0 0.0
      %3660 = vmatprep.subr.mxu0 0.0
      %3661 = vmatpush1.msra.mxu0 0.0
      %3662 = vmatprep.subr.mxu0 0.0
      %3663 = vmatpush1.msra.mxu0 0.0
      %3664 = vmatprep.subr.mxu0 0.0
      %3665 = vmatpush1.msra.mxu0 0.0
      %3666 = vmatprep.subr.mxu0 0.0
      %3667 = vmatpush1.msra.mxu0 0.0
      %3668 = vmatprep.subr.mxu0 0.0
      %3669 = vmatpush1.msra.mxu0 0.0
      %3670 = vmatprep.subr.mxu0 0.0
      %3671 = vmatpush1.msra.mxu0 0.0
      %3672 = vmatprep.subr.mxu0 0.0
      %3673 = vmatpush1.msra.mxu0 0.0
      %3674 = vmatprep.subr.mxu0 0.0
      %3675 = vmatpush1.msra.mxu0 0.0
      %3676 = vmatprep.subr.mxu0 0.0
      %3677 = vmatpush1.msra.mxu0 0.0
      %3678 = vmatprep.subr.mxu0 0.0
      %3679 = vmatpush1.msra.mxu0 0.0
      %3680 = vmatprep.subr.mxu0 0.0
      %3681 = vmatpush1.msra.mxu0 0.0
      %3682 = vmatprep.subr.mxu0 0.0
      %3683 = vmatpush1.msra.mxu0 0.0
      %3684 = vmatprep.subr.mxu0 0.0
      %3685 = vmatpush1.msra.mxu0 0.0
      %3686 = vmatprep.subr.mxu0 0.0
      %3687 = vmatpush1.msra.mxu0 0.0
      %3688 = vmatprep.subr.mxu0 0.0
      %3689 = vmatpush1.msra.mxu0 0.0
      %3690 = vmatprep.subr.mxu0 0.0
      %3691 = vmatpush1.msra.mxu0 0.0
      %3692 = vmatprep.subr.mxu0 0.0
      %3693 = vmatpush1.msra.mxu0 0.0
      %3694 = vmatprep.subr.mxu0 0.0
      %3695 = vmatpush1.msra.mxu0 0.0
      %3696 = vmatprep.subr.mxu0 0.0
      %3697 = vmatpush1.msra.mxu0 0.0
      %3698 = vmatprep.subr.mxu0 0.0
      %3699 = vmatpush1.msra.mxu0 0.0
      %3700 = vmatprep.subr.mxu0 0.0
      %3701 = vmatpush1.msra.mxu0 0.0
      %3702 = vmatprep.subr.mxu0 0.0
      %3703 = vmatpush1.msra.mxu0 0.0
      %3704 = vmatprep.subr.mxu0 0.0
      %3705 = vmatpush1.msra.mxu0 0.0
      %3706 = vmatprep.mubr.f32.mxu0 0.0
      %3707 = vmatmul.mubr.f32.gmra.mrb[0].mxu0 %v3640
      %v3708 = vpop.f32.mrb[0].mxu0
      %v3709 = vadd.f32 0.0, %v3708
      %v3710 = vpop.f32.mrb[0].mxu0
      %3711 = vdwg.mxu0
      %v3712 = vadd.f32 %v3635, %v3709
      %v3713 = vld [vmem:[%s7] sm:$0x1]
      %v3714 = vadd.f32 %v3712, %v3713
      %vm3715 = vcmask 253952
      %v3716 = vsel %vm3715, %v3714, 0.0
      %3717 = vadd.xlane.f32.xlu0 %v3716
      %v3718 = vpop.xlane.xlu0 %3717
      %v3719 = vrcp.pop 32.0
      %v3720 = vmul.f32 %v3718, %v3719
      %v3721 = vsub.f32 %v3714, %v3720
      %v3722 = vmul.f32 %v3721, %v3721
      %v3723 = vsel %vm3715, %v3722, 0.0
      %3724 = vadd.xlane.f32.xlu0 %v3723
      %v3725 = vpop.xlane.xlu0 %3724
      %v3726 = vmul.f32 %v3725, %v3719
      %v3727 = vadd.f32 %v3726, 1e-05
      %v3728 = vrsqrt.pop %v3727
      %v3729 = vmul.f32 %v3721, %v3728
      %v3730 = vld [vmem:[%s8] sm:$0x1]
      %v3731 = vmul.f32 %v3729, %v3730
      %v3732 = vld [vmem:[%s9] sm:$0x1]
      %v3733 = vadd.f32 %v3731, %v3732
      %v3734 = vld [vmem:[%s555] sm:$0x1]
      %v3735 = vld [vmem:[%s10] sm:$0xff]
      %v3736 = vld [vmem:[%s10 + $0x8] sm:$0xff]
      %v3737 = vld [vmem:[%s10 + $0x10] sm:$0xff]
      %v3738 = vld [vmem:[%s10 + $0x18] sm:$0xff]
      %v3739 = vld [vmem:[%s11] sm:$0xf]
      %vm3740 = vcmask 31744
      %v3742 = vsel %vm3740, %v3734, 0
      %v3745 = vsel %vm607, %v3739, 0
      %3747 = vmatprep.subr.mxu0 0.0
      %3748 = vmatpush1.msra.mxu0 %v3745
      %3749 = vmatprep.subr.mxu0 0.0
      %3750 = vmatpush1.msra.mxu0 0.0
      %3751 = vmatprep.subr.mxu0 0.0
      %3752 = vmatpush1.msra.mxu0 0.0
      %3753 = vmatprep.subr.mxu0 0.0
      %3754 = vmatpush1.msra.mxu0 0.0
      %3755 = vmatprep.subr.mxu0 0.0
      %3756 = vmatpush1.msra.mxu0 0.0
      %3757 = vmatprep.subr.mxu0 0.0
      %3758 = vmatpush1.msra.mxu0 0.0
      %3759 = vmatprep.subr.mxu0 0.0
      %3760 = vmatpush1.msra.mxu0 0.0
      %3761 = vmatprep.subr.mxu0 0.0
      %3762 = vmatpush1.msra.mxu0 0.0
      %3763 = vmatprep.subr.mxu0 0.0
      %3764 = vmatpush1.msra.mxu0 0.0
      %3765 = vmatprep.subr.mxu0 0.0
      %3766 = vmatpush1.msra.mxu0 0.0
      %3767 = vmatprep.subr.mxu0 0.0
      %3768 = vmatpush1.msra.mxu0 0.0
      %3769 = vmatprep.subr.mxu0 0.0
      %3770 = vmatpush1.msra.mxu0 0.0
      %3771 = vmatprep.subr.mxu0 0.0
      %3772 = vmatpush1.msra.mxu0 0.0
      %3773 = vmatprep.subr.mxu0 0.0
      %3774 = vmatpush1.msra.mxu0 0.0
      %3775 = vmatprep.subr.mxu0 0.0
      %3776 = vmatpush1.msra.mxu0 0.0
      %3777 = vmatprep.subr.mxu0 0.0
      %3778 = vmatpush1.msra.mxu0 0.0
      %3779 = vmatprep.subr.mxu0 0.0
      %3780 = vmatpush1.msra.mxu0 0.0
      %3781 = vmatprep.subr.mxu0 0.0
      %3782 = vmatpush1.msra.mxu0 0.0
      %3783 = vmatprep.subr.mxu0 0.0
      %3784 = vmatpush1.msra.mxu0 0.0
      %3785 = vmatprep.subr.mxu0 0.0
      %3786 = vmatpush1.msra.mxu0 0.0
      %3787 = vmatprep.subr.mxu0 0.0
      %3788 = vmatpush1.msra.mxu0 0.0
      %3789 = vmatprep.subr.mxu0 0.0
      %3790 = vmatpush1.msra.mxu0 0.0
      %3791 = vmatprep.subr.mxu0 0.0
      %3792 = vmatpush1.msra.mxu0 0.0
      %3793 = vmatprep.subr.mxu0 0.0
      %3794 = vmatpush1.msra.mxu0 0.0
      %3795 = vmatprep.subr.mxu0 0.0
      %3796 = vmatpush1.msra.mxu0 0.0
      %3797 = vmatprep.subr.mxu0 0.0
      %3798 = vmatpush1.msra.mxu0 0.0
      %3799 = vmatprep.subr.mxu0 0.0
      %3800 = vmatpush1.msra.mxu0 0.0
      %3801 = vmatprep.subr.mxu0 0.0
      %3802 = vmatpush1.msra.mxu0 0.0
      %3803 = vmatprep.subr.mxu0 0.0
      %3804 = vmatpush1.msra.mxu0 0.0
      %3805 = vmatprep.subr.mxu0 0.0
      %3806 = vmatpush1.msra.mxu0 0.0
      %3807 = vmatprep.subr.mxu0 0.0
      %3808 = vmatpush1.msra.mxu0 0.0
      %3809 = vmatprep.subr.mxu0 0.0
      %3810 = vmatpush1.msra.mxu0 0.0
      %3811 = vmatprep.mubr.f32.mxu0 0.0
      %3812 = vmatmul.mubr.f32.gmra.mrb[0].mxu0 %v3742
      %v3813 = vpop.f32.mrb[0].mxu0
      %v3814 = vadd.f32 0.0, %v3813
      %v3815 = vpop.f32.mrb[0].mxu0
      %3816 = vdwg.mxu0
      %vm3817 = vcmask 261120
      %v3819 = vsel %vm3817, %v3733, 0
      %3821 = vmatprep.subr.mxu0 0.0
      %3822 = vmatpush1.msra.mxu0 %v3735
      %3823 = vmatprep.subr.mxu0 0.0
      %3824 = vmatpush1.msra.mxu0 %v3736
      %3825 = vmatprep.subr.mxu0 0.0
      %3826 = vmatpush1.msra.mxu0 %v3737
      %3827 = vmatprep.subr.mxu0 0.0
      %3828 = vmatpush1.msra.mxu0 %v3738
      %3829 = vmatprep.subr.mxu0 0.0
      %3830 = vmatpush1.msra.mxu0 0.0
      %3831 = vmatprep.subr.mxu0 0.0
      %3832 = vmatpush1.msra.mxu0 0.0
      %3833 = vmatprep.subr.mxu0 0.0
      %3834 = vmatpush1.msra.mxu0 0.0
      %3835 = vmatprep.subr.mxu0 0.0
      %3836 = vmatpush1.msra.mxu0 0.0
      %3837 = vmatprep.subr.mxu0 0.0
      %3838 = vmatpush1.msra.mxu0 0.0
      %3839 = vmatprep.subr.mxu0 0.0
      %3840 = vmatpush1.msra.mxu0 0.0
      %3841 = vmatprep.subr.mxu0 0.0
      %3842 = vmatpush1.msra.mxu0 0.0
      %3843 = vmatprep.subr.mxu0 0.0
      %3844 = vmatpush1.msra.mxu0 0.0
      %3845 = vmatprep.subr.mxu0 0.0
      %3846 = vmatpush1.msra.mxu0 0.0
      %3847 = vmatprep.subr.mxu0 0.0
      %3848 = vmatpush1.msra.mxu0 0.0
      %3849 = vmatprep.subr.mxu0 0.0
      %3850 = vmatpush1.msra.mxu0 0.0
      %3851 = vmatprep.subr.mxu0 0.0
      %3852 = vmatpush1.msra.mxu0 0.0
      %3853 = vmatprep.subr.mxu0 0.0
      %3854 = vmatpush1.msra.mxu0 0.0
      %3855 = vmatprep.subr.mxu0 0.0
      %3856 = vmatpush1.msra.mxu0 0.0
      %3857 = vmatprep.subr.mxu0 0.0
      %3858 = vmatpush1.msra.mxu0 0.0
      %3859 = vmatprep.subr.mxu0 0.0
      %3860 = vmatpush1.msra.mxu0 0.0
      %3861 = vmatprep.subr.mxu0 0.0
      %3862 = vmatpush1.msra.mxu0 0.0
      %3863 = vmatprep.subr.mxu0 0.0
      %3864 = vmatpush1.msra.mxu0 0.0
      %3865 = vmatprep.subr.mxu0 0.0
      %3866 = vmatpush1.msra.mxu0 0.0
      %3867 = vmatprep.subr.mxu0 0.0
      %3868 = vmatpush1.msra.mxu0 0.0
      %3869 = vmatprep.subr.mxu0 0.0
      %3870 = vmatpush1.msra.mxu0 0.0
      %3871 = vmatprep.subr.mxu0 0.0
      %3872 = vmatpush1.msra.mxu0 0.0
      %3873 = vmatprep.subr.mxu0 0.0
      %3874 = vmatpush1.msra.mxu0 0.0
      %3875 = vmatprep.subr.mxu0 0.0
      %3876 = vmatpush1.msra.mxu0 0.0
      %3877 = vmatprep.subr.mxu0 0.0
      %3878 = vmatpush1.msra.mxu0 0.0
      %3879 = vmatprep.subr.mxu0 0.0
      %3880 = vmatpush1.msra.mxu0 0.0
      %3881 = vmatprep.subr.mxu0 0.0
      %3882 = vmatpush1.msra.mxu0 0.0
      %3883 = vmatprep.subr.mxu0 0.0
      %3884 = vmatpush1.msra.mxu0 0.0
      %3885 = vmatprep.mubr.f32.mxu0 0.0
      %3886 = vmatmul.mubr.f32.gmra.mrb[0].mxu0 %v3819
      %v3887 = vpop.f32.mrb[0].mxu0
      %v3888 = vadd.f32 %v3814, %v3887
      %v3889 = vpop.f32.mrb[0].mxu0
      %3890 = vdwg.mxu0
      %v3891 = vld [vmem:[%s12] sm:$0x1]
      %v3892 = vadd.f32 %v3888, %v3891
      %v3893 = vmax.f32 %v3892, 0.0
      %v3894 = vld [vmem:[%s13] sm:$0xff]
      %v3895 = vld [vmem:[%s13 + $0x8] sm:$0xff]
      %v3896 = vld [vmem:[%s13 + $0x10] sm:$0xff]
      %v3897 = vld [vmem:[%s13 + $0x18] sm:$0xff]
      %v3898 = vld [vmem:[%s13 + $0x20] sm:$0xff]
      %v3899 = vld [vmem:[%s13 + $0x28] sm:$0xff]
      %v3900 = vld [vmem:[%s13 + $0x30] sm:$0xff]
      %v3901 = vld [vmem:[%s13 + $0x38] sm:$0xff]
      %v3902 = vld [vmem:[%s14] sm:$0x1]
      %vm3903 = vcmask 523264
      %v3905 = vsel %vm3903, %v3893, 0
      %3907 = vmatprep.subr.mxu0 0.0
      %3908 = vmatpush1.msra.mxu0 %v3894
      %3909 = vmatprep.subr.mxu0 0.0
      %3910 = vmatpush1.msra.mxu0 %v3895
      %3911 = vmatprep.subr.mxu0 0.0
      %3912 = vmatpush1.msra.mxu0 %v3896
      %3913 = vmatprep.subr.mxu0 0.0
      %3914 = vmatpush1.msra.mxu0 %v3897
      %3915 = vmatprep.subr.mxu0 0.0
      %3916 = vmatpush1.msra.mxu0 %v3898
      %3917 = vmatprep.subr.mxu0 0.0
      %3918 = vmatpush1.msra.mxu0 %v3899
      %3919 = vmatprep.subr.mxu0 0.0
      %3920 = vmatpush1.msra.mxu0 %v3900
      %3921 = vmatprep.subr.mxu0 0.0
      %3922 = vmatpush1.msra.mxu0 %v3901
      %3923 = vmatprep.subr.mxu0 0.0
      %3924 = vmatpush1.msra.mxu0 0.0
      %3925 = vmatprep.subr.mxu0 0.0
      %3926 = vmatpush1.msra.mxu0 0.0
      %3927 = vmatprep.subr.mxu0 0.0
      %3928 = vmatpush1.msra.mxu0 0.0
      %3929 = vmatprep.subr.mxu0 0.0
      %3930 = vmatpush1.msra.mxu0 0.0
      %3931 = vmatprep.subr.mxu0 0.0
      %3932 = vmatpush1.msra.mxu0 0.0
      %3933 = vmatprep.subr.mxu0 0.0
      %3934 = vmatpush1.msra.mxu0 0.0
      %3935 = vmatprep.subr.mxu0 0.0
      %3936 = vmatpush1.msra.mxu0 0.0
      %3937 = vmatprep.subr.mxu0 0.0
      %3938 = vmatpush1.msra.mxu0 0.0
      %3939 = vmatprep.subr.mxu0 0.0
      %3940 = vmatpush1.msra.mxu0 0.0
      %3941 = vmatprep.subr.mxu0 0.0
      %3942 = vmatpush1.msra.mxu0 0.0
      %3943 = vmatprep.subr.mxu0 0.0
      %3944 = vmatpush1.msra.mxu0 0.0
      %3945 = vmatprep.subr.mxu0 0.0
      %3946 = vmatpush1.msra.mxu0 0.0
      %3947 = vmatprep.subr.mxu0 0.0
      %3948 = vmatpush1.msra.mxu0 0.0
      %3949 = vmatprep.subr.mxu0 0.0
      %3950 = vmatpush1.msra.mxu0 0.0
      %3951 = vmatprep.subr.mxu0 0.0
      %3952 = vmatpush1.msra.mxu0 0.0
      %3953 = vmatprep.subr.mxu0 0.0
      %3954 = vmatpush1.msra.mxu0 0.0
      %3955 = vmatprep.subr.mxu0 0.0
      %3956 = vmatpush1.msra.mxu0 0.0
      %3957 = vmatprep.subr.mxu0 0.0
      %3958 = vmatpush1.msra.mxu0 0.0
      %3959 = vmatprep.subr.mxu0 0.0
      %3960 = vmatpush1.msra.mxu0 0.0
      %3961 = vmatprep.subr.mxu0 0.0
      %3962 = vmatpush1.msra.mxu0 0.0
      %3963 = vmatprep.subr.mxu0 0.0
      %3964 = vmatpush1.msra.mxu0 0.0
      %3965 = vmatprep.subr.mxu0 0.0
      %3966 = vmatpush1.msra.mxu0 0.0
      %3967 = vmatprep.subr.mxu0 0.0
      %3968 = vmatpush1.msra.mxu0 0.0
      %3969 = vmatprep.subr.mxu0 0.0
      %3970 = vmatpush1.msra.mxu0 0.0
      %3971 = vmatprep.mubr.f32.mxu0 0.0
      %3972 = vmatmul.mubr.f32.gmra.mrb[0].mxu0 %v3905
      %v3973 = vpop.f32.mrb[0].mxu0
      %v3974 = vadd.f32 %v3902, %v3973
      %v3975 = vpop.f32.mrb[0].mxu0
      %3976 = vdwg.mxu0
      %v3977 = vmax.f32 %v3974, 0.0
      %v3978 = vld [vmem:[%s15] sm:$0xff]
      %v3979 = vld [vmem:[%s15 + $0x8] sm:$0xff]
      %v3980 = vld [vmem:[%s15 + $0x10] sm:$0xff]
      %v3981 = vld [vmem:[%s15 + $0x18] sm:$0xff]
      %v3982 = vld [vmem:[%s15 + $0x20] sm:$0xff]
      %v3983 = vld [vmem:[%s15 + $0x28] sm:$0xff]
      %v3984 = vld [vmem:[%s15 + $0x30] sm:$0xff]
      %v3985 = vld [vmem:[%s15 + $0x38] sm:$0xff]
      %v3986 = vld [vmem:[%s16] sm:$0x1]
      %v3988 = vsel %vm3903, %v3977, 0
      %3990 = vmatprep.subr.mxu0 0.0
      %3991 = vmatpush1.msra.mxu0 %v3978
      %3992 = vmatprep.subr.mxu0 0.0
      %3993 = vmatpush1.msra.mxu0 %v3979
      %3994 = vmatprep.subr.mxu0 0.0
      %3995 = vmatpush1.msra.mxu0 %v3980
      %3996 = vmatprep.subr.mxu0 0.0
      %3997 = vmatpush1.msra.mxu0 %v3981
      %3998 = vmatprep.subr.mxu0 0.0
      %3999 = vmatpush1.msra.mxu0 %v3982
      %4000 = vmatprep.subr.mxu0 0.0
      %4001 = vmatpush1.msra.mxu0 %v3983
      %4002 = vmatprep.subr.mxu0 0.0
      %4003 = vmatpush1.msra.mxu0 %v3984
      %4004 = vmatprep.subr.mxu0 0.0
      %4005 = vmatpush1.msra.mxu0 %v3985
      %4006 = vmatprep.subr.mxu0 0.0
      %4007 = vmatpush1.msra.mxu0 0.0
      %4008 = vmatprep.subr.mxu0 0.0
      %4009 = vmatpush1.msra.mxu0 0.0
      %4010 = vmatprep.subr.mxu0 0.0
      %4011 = vmatpush1.msra.mxu0 0.0
      %4012 = vmatprep.subr.mxu0 0.0
      %4013 = vmatpush1.msra.mxu0 0.0
      %4014 = vmatprep.subr.mxu0 0.0
      %4015 = vmatpush1.msra.mxu0 0.0
      %4016 = vmatprep.subr.mxu0 0.0
      %4017 = vmatpush1.msra.mxu0 0.0
      %4018 = vmatprep.subr.mxu0 0.0
      %4019 = vmatpush1.msra.mxu0 0.0
      %4020 = vmatprep.subr.mxu0 0.0
      %4021 = vmatpush1.msra.mxu0 0.0
      %4022 = vmatprep.subr.mxu0 0.0
      %4023 = vmatpush1.msra.mxu0 0.0
      %4024 = vmatprep.subr.mxu0 0.0
      %4025 = vmatpush1.msra.mxu0 0.0
      %4026 = vmatprep.subr.mxu0 0.0
      %4027 = vmatpush1.msra.mxu0 0.0
      %4028 = vmatprep.subr.mxu0 0.0
      %4029 = vmatpush1.msra.mxu0 0.0
      %4030 = vmatprep.subr.mxu0 0.0
      %4031 = vmatpush1.msra.mxu0 0.0
      %4032 = vmatprep.subr.mxu0 0.0
      %4033 = vmatpush1.msra.mxu0 0.0
      %4034 = vmatprep.subr.mxu0 0.0
      %4035 = vmatpush1.msra.mxu0 0.0
      %4036 = vmatprep.subr.mxu0 0.0
      %4037 = vmatpush1.msra.mxu0 0.0
      %4038 = vmatprep.subr.mxu0 0.0
      %4039 = vmatpush1.msra.mxu0 0.0
      %4040 = vmatprep.subr.mxu0 0.0
      %4041 = vmatpush1.msra.mxu0 0.0
      %4042 = vmatprep.subr.mxu0 0.0
      %4043 = vmatpush1.msra.mxu0 0.0
      %4044 = vmatprep.subr.mxu0 0.0
      %4045 = vmatpush1.msra.mxu0 0.0
      %4046 = vmatprep.subr.mxu0 0.0
      %4047 = vmatpush1.msra.mxu0 0.0
      %4048 = vmatprep.subr.mxu0 0.0
      %4049 = vmatpush1.msra.mxu0 0.0
      %4050 = vmatprep.subr.mxu0 0.0
      %4051 = vmatpush1.msra.mxu0 0.0
      %4052 = vmatprep.subr.mxu0 0.0
      %4053 = vmatpush1.msra.mxu0 0.0
      %4054 = vmatprep.mubr.f32.mxu0 0.0
      %4055 = vmatmul.mubr.f32.gmra.mrb[0].mxu0 %v3988
      %v4056 = vpop.f32.mrb[0].mxu0
      %v4057 = vadd.f32 %v3986, %v4056
      %v4058 = vpop.f32.mrb[0].mxu0
      %4059 = vdwg.mxu0
      %vm4060 = vcmask 8192
      %4061 = vst.msk [vmem:[%s558] sm:$0x1] %vm4060, %v4057
      %p4062 = scmp.lt.s32.totalorder %s28, 1
      %s4063 = scalar_select %p4062, %s28, 1
      %s4064 = scalar_lea.vmem %s17, %s4063
      // Predicated region
      $region89: #{critic_forward.1} parent=87 // pred_check
        %p4065 = pneg %p413
      $region90: #{critic_forward.1} parent=87 // pred_check_branch
        %4067 = sbr.rel (%p4065) target = $region92
      $region91: #{critic_forward.1} parent=87 // pred_region
        _
      $region92: #{critic_forward.1} parent=87 // pred_fallthru
        _
    $region88: #{critic_forward.1} parent=5 // pred_fallthru
      _
    %p4068 = scmp.le.s32.totalorder 2, %s23
    // Predicated region
    $region93: #{critic_forward.1} parent=5 // pred_check
      %p4069 = pneg %p4068
    $region94: #{critic_forward.1} parent=5 // pred_check_branch
      %4071 = sbr.rel (%p4069) target = $region96
    $region95: #{critic_forward.1} parent=5 // pred_region
      %s4072 = ssub.s32 %s23, 2
      // Predicated region
      $region97: #{critic_forward.1} parent=95 // pred_check
        %p4073 = pneg %p419
      $region98: #{critic_forward.1} parent=95 // pred_check_branch
        %4075 = sbr.rel (%p4073) target = $region100
      $region99: #{critic_forward.1} parent=95 // pred_region
        %p4076 = scmp.lt.s32.totalorder %s29, 1
        %s4077 = scalar_select %p4076, %s29, 1
        %s4078 = scalar_lea.vmem %s17, %s4077
      $region100: #{critic_forward.1} parent=95 // pred_fallthru
        _
    $region96: #{critic_forward.1} parent=5 // pred_fallthru
      _
  $region6: #{critic_forward.1} parent=0 // loop_footer
    %s27 = sadd.s32 1, %s23
  $region7: #{critic_forward.1} parent=0 // loop_footer_branch
    %22 = sbr.rel target = $region3
  $region8: #{critic_forward.1} parent=0 // loop_exit
    _

</llo_original>
